<compile_context>
chip_gen: v7x
topology: tpu7x:2x2x1
jax: 0.10.0
libtpu: 0.0.40
codegen_flags: <defaults>
</compile_context>

<pallas_src>
import math
from functools import partial

import jax
import jax.numpy as jnp
from jax import lax
from jax.experimental import pallas as pl
from jax.experimental.pallas import tpu as pltpu

_NUM_LAYERS = 2


def _round_up(x, m):
    return ((x + m - 1) // m) * m


# ---------------------------------------------------------------------------
# Kernel 1: tiled matmul, bf16 MXU inputs, f32 accumulation, fused bias and
# optional LeakyReLU(0.1) epilogue.  Two variants: single-K-block (no scratch)
# and multi-K-block (f32 accumulator scratch).
# ---------------------------------------------------------------------------
def _matmul_kernel_single_k(a_ref, b_ref, bias_ref, o_ref, *, activation):
    y = jnp.dot(a_ref[...], b_ref[...],
                preferred_element_type=jnp.float32) + bias_ref[...]
    if activation == "leaky_relu":
        y = jnp.where(y >= 0, y, 0.1 * y)
    o_ref[...] = y.astype(o_ref.dtype)


def _matmul_kernel_multi_k(a_ref, b_ref, bias_ref, o_ref, acc_ref, *, activation):
    k = pl.program_id(2)

    @pl.when(k == 0)
    def _():
        acc_ref[...] = jnp.zeros_like(acc_ref)

    acc_ref[...] += jnp.dot(a_ref[...], b_ref[...],
                            preferred_element_type=jnp.float32)

    @pl.when(k == pl.num_programs(2) - 1)
    def _():
        y = acc_ref[...] + bias_ref[...]
        if activation == "leaky_relu":
            y = jnp.where(y >= 0, y, 0.1 * y)
        o_ref[...] = y.astype(o_ref.dtype)


def matmul_bias(a, b, bias=None, activation=None, out_dtype=jnp.float32):
    """a: (M, K), b: (K, N), bias: (N,)|None -> (M, N) out_dtype."""
    M, K = a.shape
    K2, N = b.shape
    assert K == K2
    if bias is None:
        bias = jnp.zeros((N,), jnp.float32)

    tm = min(256, _round_up(M, 16))     # bf16 A operand -> 16-row alignment
    tn = min(256, _round_up(N, 128))    # <=256 so N=512 splits into 2 blocks (v7x)
    tk = min(512, _round_up(K, 128))
    Mp, Kp, Np = _round_up(M, tm), _round_up(K, tk), _round_up(N, tn)

    a_bf = a.astype(jnp.bfloat16)
    b_bf = b.astype(jnp.bfloat16)
    if (Mp, Kp) != (M, K):
        a_bf = jnp.zeros((Mp, Kp), jnp.bfloat16).at[:M, :K].set(a_bf)
    if (Kp, Np) != (K, N):
        b_bf = jnp.zeros((Kp, Np), jnp.bfloat16).at[:K, :N].set(b_bf)
    bias_p = bias.astype(jnp.float32).reshape(1, N)
    if Np != N:
        bias_p = jnp.zeros((1, Np), jnp.float32).at[:, :N].set(bias_p)

    nk = Kp // tk
    if nk == 1:
        out = pl.pallas_call(
            partial(_matmul_kernel_single_k, activation=activation),
            out_shape=jax.ShapeDtypeStruct((Mp, Np), out_dtype),
            grid_spec=pltpu.PrefetchScalarGridSpec(
                num_scalar_prefetch=0,
                grid=(Mp // tm, Np // tn),
                in_specs=[pl.BlockSpec((tm, tk), lambda i, j: (i, 0)),
                          pl.BlockSpec((tk, tn), lambda i, j: (0, j)),
                          pl.BlockSpec((1, tn), lambda i, j: (0, j))],
                out_specs=pl.BlockSpec((tm, tn), lambda i, j: (i, j))),
            compiler_params=pltpu.CompilerParams(
                dimension_semantics=("parallel", "parallel")),
        )(a_bf, b_bf, bias_p)
    else:
        out = pl.pallas_call(
            partial(_matmul_kernel_multi_k, activation=activation),
            out_shape=jax.ShapeDtypeStruct((Mp, Np), out_dtype),
            grid_spec=pltpu.PrefetchScalarGridSpec(
                num_scalar_prefetch=0,
                grid=(Mp // tm, Np // tn, nk),
                in_specs=[pl.BlockSpec((tm, tk), lambda i, j, k: (i, k)),
                          pl.BlockSpec((tk, tn), lambda i, j, k: (k, j)),
                          pl.BlockSpec((1, tn), lambda i, j, k: (0, j))],
                out_specs=pl.BlockSpec((tm, tn), lambda i, j, k: (i, j)),
                scratch_shapes=[pltpu.VMEM((tm, tn), jnp.float32)]),
            compiler_params=pltpu.CompilerParams(
                dimension_semantics=("parallel", "parallel", "arbitrary")),
        )(a_bf, b_bf, bias_p)

    if (Mp, Np) != (M, N):
        out = out[:M, :N]
    return out


# ---------------------------------------------------------------------------
# Kernel 2: one LSTM layer's full recurrence in a single pallas_call.
# Time loop is an in-kernel fori_loop; gates_in / W_hh / output stay resident
# in VMEM; recurrent dot uses bf16 operands with f32 accumulation; cell math
# is f32.  Gate order follows PyTorch: i, f, g, o.
# ---------------------------------------------------------------------------
def _lstm_layer_kernel(gates_ref, w_hh_ref, h0_ref, c0_ref,
                       out_ref, hT_ref, cT_ref, *, seq_len, hidden):
    w_hh = w_hh_ref[...]                      # (H, 4H) bf16, loaded once

    def step(t, carry):
        h, c = carry
        # gates_in already holds x @ W_ih^T + b_ih + b_hh (bf16); add the
        # recurrent contribution in f32.
        gates = gates_ref[t].astype(jnp.float32) + jnp.dot(
            h.astype(jnp.bfloat16), w_hh, preferred_element_type=jnp.float32)
        i = jax.nn.sigmoid(gates[:, 0:hidden])
        f = jax.nn.sigmoid(gates[:, hidden:2 * hidden])
        g = jnp.tanh(gates[:, 2 * hidden:3 * hidden])
        o = jax.nn.sigmoid(gates[:, 3 * hidden:4 * hidden])
        c_new = f * c + i * g
        h_new = o * jnp.tanh(c_new)
        out_ref[t] = h_new
        return h_new, c_new

    hT, cT = lax.fori_loop(0, seq_len, step, (h0_ref[...], c0_ref[...]),
                           unroll=(seq_len <= 32))
    hT_ref[...] = hT
    cT_ref[...] = cT


def lstm_layer_pallas(gates_in, w_hh_t, h0, c0):
    """gates_in: (T, Bp, 4H) bf16 (time-major, batch pre-padded).
    w_hh_t: (H, 4H) bf16.  h0/c0: (Bp, H) f32.
    Returns (out (T, Bp, H) f32, h_T (Bp, H) f32, c_T (Bp, H) f32)."""
    T, Bp, G = gates_in.shape
    H = G // 4

    out, hT, cT = pl.pallas_call(
        partial(_lstm_layer_kernel, seq_len=T, hidden=H),
        out_shape=(jax.ShapeDtypeStruct((T, Bp, H), jnp.float32),
                   jax.ShapeDtypeStruct((Bp, H), jnp.float32),
                   jax.ShapeDtypeStruct((Bp, H), jnp.float32)),
        grid_spec=pltpu.PrefetchScalarGridSpec(
            num_scalar_prefetch=0,
            grid=(1,),
            in_specs=[pl.BlockSpec((T, Bp, G), lambda i: (0, 0, 0)),
                      pl.BlockSpec((H, G), lambda i: (0, 0)),
                      pl.BlockSpec((Bp, H), lambda i: (0, 0)),
                      pl.BlockSpec((Bp, H), lambda i: (0, 0))],
            out_specs=(pl.BlockSpec((T, Bp, H), lambda i: (0, 0, 0)),
                       pl.BlockSpec((Bp, H), lambda i: (0, 0)),
                       pl.BlockSpec((Bp, H), lambda i: (0, 0)))),
        compiler_params=pltpu.CompilerParams(
            dimension_semantics=("arbitrary",)),
    )(gates_in, w_hh_t, h0, c0)
    return out, hT, cT


# ---------------------------------------------------------------------------
# Kernel 3: fused regressor Linear(H,128) -> LeakyReLU(0.1) -> Linear(128,6).
# The 128-wide intermediate never leaves the kernel; the 6-wide output is
# stored into a 128-lane padded slab (lane-dense store), sliced outside.
# ---------------------------------------------------------------------------
def _regressor_kernel(x_ref, w1_ref, b1_ref, w2_ref, b2_ref, o_ref):
    h = jnp.dot(x_ref[...], w1_ref[...],
                preferred_element_type=jnp.float32) + b1_ref[...]
    h = jnp.where(h >= 0, h, 0.1 * h)
    y = jnp.dot(h.astype(jnp.bfloat16), w2_ref[...],
                preferred_element_type=jnp.float32) + b2_ref[...]
    o_ref[...] = y


def regressor_fused(x, w1, b1, w2, b2):
    """x: (M, H).  w1: (128, H), b1: (128,), w2: (6, 128), b2: (6,).
    Returns (M, 6) f32."""
    M, H = x.shape
    N1 = w1.shape[0]
    N2 = w2.shape[0]
    N2p = _round_up(N2, 128)
    tm = min(512, _round_up(M, 16))
    Mp = _round_up(M, tm)

    x_bf = x.astype(jnp.bfloat16)
    if Mp != M:
        x_bf = jnp.zeros((Mp, H), jnp.bfloat16).at[:M].set(x_bf)
    w1_t = w1.T.astype(jnp.bfloat16)                               # (H, 128)
    b1_r = b1.astype(jnp.float32).reshape(1, N1)
    w2_t = jnp.zeros((N1, N2p), jnp.bfloat16).at[:, :N2].set(
        w2.T.astype(jnp.bfloat16))                                 # (128, 128)
    b2_r = jnp.zeros((1, N2p), jnp.float32).at[:, :N2].set(
        b2.astype(jnp.float32).reshape(1, N2))

    out = pl.pallas_call(
        _regressor_kernel,
        out_shape=jax.ShapeDtypeStruct((Mp, N2p), jnp.float32),
        grid_spec=pltpu.PrefetchScalarGridSpec(
            num_scalar_prefetch=0,
            grid=(Mp // tm,),
            in_specs=[pl.BlockSpec((tm, H), lambda i: (i, 0)),
                      pl.BlockSpec((H, N1), lambda i: (0, 0)),
                      pl.BlockSpec((1, N1), lambda i: (0, 0)),
                      pl.BlockSpec((N1, N2p), lambda i: (0, 0)),
                      pl.BlockSpec((1, N2p), lambda i: (0, 0))],
            out_specs=pl.BlockSpec((tm, N2p), lambda i: (i, 0))),
        compiler_params=pltpu.CompilerParams(
            dimension_semantics=("parallel",)),
    )(x_bf, w1_t, b1_r, w2_t, b2_r)
    return out[:M, :N2]


# ---------------------------------------------------------------------------
# RNN.forward (eval mode: both dropouts and inter-layer LSTM dropout = id).
# ---------------------------------------------------------------------------
def _pad_rows(x, rows):
    if x.shape[0] == rows:
        return x
    return jnp.zeros((rows,) + x.shape[1:], x.dtype).at[:x.shape[0]].set(x)


def rnn_forward(fused, params, prev=None):
    """fused: (B, T, f_len).  prev: None or (h, c) each (B, num_layers, H).
    Returns (pose (B, T, 6), (h, c) each (B, num_layers, H))."""
    B, T, F = fused.shape
    H = params['w_hh_l0'].shape[1]
    Bp = _round_up(max(B, 16), 16)

    # Time-major once, batch-padded once.  Padded batch rows carry harmless
    # finite garbage (independent per-row recurrence) and are never read back.
    x_tm = jnp.transpose(fused, (1, 0, 2)).astype(jnp.float32)      # (T, B, F)
    if Bp != B:
        x_tm = jnp.zeros((T, Bp, F), jnp.float32).at[:, :B].set(x_tm)

    if prev is None:
        h0s = [jnp.zeros((Bp, H), jnp.float32) for _ in range(_NUM_LAYERS)]
        c0s = [jnp.zeros((Bp, H), jnp.float32) for _ in range(_NUM_LAYERS)]
    else:
        h_prev = jnp.transpose(prev[0], (1, 0, 2)).astype(jnp.float32)
        c_prev = jnp.transpose(prev[1], (1, 0, 2)).astype(jnp.float32)
        h0s = [_pad_rows(h_prev[l], Bp) for l in range(_NUM_LAYERS)]
        c0s = [_pad_rows(c_prev[l], Bp) for l in range(_NUM_LAYERS)]

    layer_in = x_tm
    h_fin, c_fin = [], []
    for l in range(_NUM_LAYERS):
        # (a) batched input projection for every (t, b) row in one matmul;
        #     both LSTM biases folded into the fused epilogue; bf16 output.
        gates_in = matmul_bias(
            layer_in.reshape(T * Bp, -1),
            params[f'w_ih_l{l}'].T,
            params[f'b_ih_l{l}'] + params[f'b_hh_l{l}'],
            out_dtype=jnp.bfloat16,
        ).reshape(T, Bp, 4 * H)
        # (b) single-invocation recurrence: in-kernel time loop, resident
        #     bf16 W_hh, f32 cell math.
        out_tm, hT, cT = lstm_layer_pallas(
            gates_in, params[f'w_hh_l{l}'].T.astype(jnp.bfloat16),
            h0s[l], c0s[l])
        h_fin.append(hT[:B])
        c_fin.append(cT[:B])
        layer_in = out_tm          # inter-layer LSTM dropout: identity (eval)

    # rnn_drop_out: identity (eval).  Fused regressor over all (T*Bp) rows.
    pose_flat = regressor_fused(layer_in.reshape(T * Bp, H),
                                params['reg1_w'], params['reg1_b'],
                                params['reg2_w'], params['reg2_b'])
    pose = pose_flat.reshape(T, Bp, 6)[:, :B].transpose(1, 0, 2)    # (B, T, 6)

    hc = (jnp.stack(h_fin, axis=0).transpose(1, 0, 2),
          jnp.stack(c_fin, axis=0).transpose(1, 0, 2))
    return pose, hc


# ---------------------------------------------------------------------------
# Deterministic parameter initialization (PyTorch default uniform ranges).
# ---------------------------------------------------------------------------
def init_params(key, f_len, hidden):
    keys = iter(jax.random.split(key, 16))

    def uniform(shape, bound):
        return jax.random.uniform(next(keys), shape, jnp.float32, -bound, bound)

    k_lstm = 1.0 / math.sqrt(hidden)
    p = {}
    in_sizes = [f_len, hidden]
    for l in range(_NUM_LAYERS):
        p[f'w_ih_l{l}'] = uniform((4 * hidden, in_sizes[l]), k_lstm)
        p[f'w_hh_l{l}'] = uniform((4 * hidden, hidden), k_lstm)
        p[f'b_ih_l{l}'] = uniform((4 * hidden,), k_lstm)
        p[f'b_hh_l{l}'] = uniform((4 * hidden,), k_lstm)
    p['reg1_w'] = uniform((128, hidden), 1.0 / math.sqrt(hidden))
    p['reg1_b'] = uniform((128,), 1.0 / math.sqrt(hidden))
    p['reg2_w'] = uniform((6, 128), 1.0 / math.sqrt(128))
    p['reg2_b'] = uniform((6,), 1.0 / math.sqrt(128))
    return p


# ---------------------------------------------------------------------------
if __name__ == "__main__":
    # f_len = opt.v_f_len + opt.i_f_len = 256, opt.rnn_hidden_size = 128.
    B, T, f_len, hidden = 2, 8, 256, 128

    key = jax.random.PRNGKey(0)
    kp, kx = jax.random.split(key)
    params = init_params(kp, f_len, hidden)
    fused = jax.random.normal(kx, (B, T, f_len), jnp.float32)

    # Fresh-state path (prev=None).
    fwd = jax.jit(lambda x, p: rnn_forward(x, p, prev=None))
    pose, hc = fwd(fused, params)
    jax.block_until_ready(pose)
    jax.block_until_ready(hc)
    assert pose.shape == (B, T, 6)
    assert hc[0].shape == (B, _NUM_LAYERS, hidden)
    assert hc[1].shape == (B, _NUM_LAYERS, hidden)

    # Stateful continuation path (prev provided, as in the PyTorch forward).
    fwd_prev = jax.jit(lambda x, p, prev: rnn_forward(x, p, prev=prev))
    pose2, hc2 = fwd_prev(fused, params, hc)
    jax.block_until_ready(pose2)
    jax.block_until_ready(hc2)
    assert pose2.shape == (B, T, 6)
    assert bool(jnp.all(jnp.isfinite(pose))) and bool(jnp.all(jnp.isfinite(pose2)))

    print("KERNEL_OK")
</pallas_src>

<mosaic_0001>
module attributes {stable_mosaic.version = 11 : i64} {
  func.func @_lstm_layer_kernel(%arg0: i32, %arg1: memref<8x16x512xbf16, #tpu.memory_space<vmem>>, %arg2: memref<128x512xbf16, #tpu.memory_space<vmem>>, %arg3: memref<16x128xf32, #tpu.memory_space<vmem>>, %arg4: memref<16x128xf32, #tpu.memory_space<vmem>>, %arg5: memref<8x16x128xf32, #tpu.memory_space<vmem>>, %arg6: memref<16x128xf32, #tpu.memory_space<vmem>>, %arg7: memref<16x128xf32, #tpu.memory_space<vmem>>) attributes {dimension_semantics = [#tpu.dimension_semantics<arbitrary>], iteration_bounds = array<i64: 1>, scalar_prefetch = 0 : i64, scratch_operands = 0 : i64, tpu.core_type = #tpu.core_type<tc>, window_params = [{pipeline_mode = #tpu.pipeline_mode<synchronous>, transform_indices = @transform_0, window_bounds = array<i64: 8, 16, 512>}, {pipeline_mode = #tpu.pipeline_mode<synchronous>, transform_indices = @transform_1, window_bounds = array<i64: 128, 512>}, {pipeline_mode = #tpu.pipeline_mode<synchronous>, transform_indices = @transform_2, window_bounds = array<i64: 16, 128>}, {pipeline_mode = #tpu.pipeline_mode<synchronous>, transform_indices = @transform_3, window_bounds = array<i64: 16, 128>}, {pipeline_mode = #tpu.pipeline_mode<synchronous>, transform_indices = @transform_4, window_bounds = array<i64: 8, 16, 128>}, {pipeline_mode = #tpu.pipeline_mode<synchronous>, transform_indices = @transform_5, window_bounds = array<i64: 16, 128>}, {pipeline_mode = #tpu.pipeline_mode<synchronous>, transform_indices = @transform_6, window_bounds = array<i64: 16, 128>}]} {
    %c0 = arith.constant 0 : index
    %c0_0 = arith.constant 0 : index
    %0 = vector.load %arg2[%c0, %c0_0] : memref<128x512xbf16, #tpu.memory_space<vmem>>, vector<128x512xbf16>
    %c0_1 = arith.constant 0 : index
    %c0_2 = arith.constant 0 : index
    %1 = vector.load %arg3[%c0_1, %c0_2] : memref<16x128xf32, #tpu.memory_space<vmem>>, vector<16x128xf32>
    %c0_3 = arith.constant 0 : index
    %c0_4 = arith.constant 0 : index
    %2 = vector.load %arg4[%c0_3, %c0_4] : memref<16x128xf32, #tpu.memory_space<vmem>>, vector<16x128xf32>
    %c0_i32 = arith.constant 0 : i32
    %3 = arith.index_cast %c0_i32 : i32 to index
    %c0_5 = arith.constant 0 : index
    %c0_6 = arith.constant 0 : index
    %4 = vector.load %arg1[%3, %c0_5, %c0_6] : memref<8x16x512xbf16, #tpu.memory_space<vmem>>, vector<1x16x512xbf16>
    %5 = vector.shape_cast %4 : vector<1x16x512xbf16> to vector<16x512xbf16>
    %6 = arith.extf %5 : vector<16x512xbf16> to vector<16x512xf32>
    %7 = arith.truncf %1 : vector<16x128xf32> to vector<16x128xbf16>
    %cst = arith.constant dense<0.000000e+00> : vector<16x512xf32>
    %8 = tpu.matmul %7, %0, %cst {dimension_numbers = #tpu.dot_dimension_numbers<[1], [0], [0], [1], [0, 0, 1, 1], [], []>} : vector<16x128xbf16>, vector<128x512xbf16>, vector<16x512xf32> -> vector<16x512xf32>
    %9 = arith.addf %6, %8 : vector<16x512xf32>
    %10 = vector.extract_strided_slice %9 {offsets = [0, 0], sizes = [16, 128], strides = [1, 1]} : vector<16x512xf32> to vector<16x128xf32>
    %11 = arith.negf %10 : vector<16x128xf32>
    %12 = math.exp %11 : vector<16x128xf32>
    %cst_7 = arith.constant 1.000000e+00 : f32
    %13 = vector.broadcast %cst_7 : f32 to vector<16x128xf32>
    %14 = arith.addf %13, %12 : vector<16x128xf32>
    %15 = arith.divf %13, %14 : vector<16x128xf32>
    %16 = vector.extract_strided_slice %9 {offsets = [0, 128], sizes = [16, 128], strides = [1, 1]} : vector<16x512xf32> to vector<16x128xf32>
    %17 = arith.negf %16 : vector<16x128xf32>
    %18 = math.exp %17 : vector<16x128xf32>
    %cst_8 = arith.constant 1.000000e+00 : f32
    %19 = vector.broadcast %cst_8 : f32 to vector<16x128xf32>
    %20 = arith.addf %19, %18 : vector<16x128xf32>
    %21 = arith.divf %19, %20 : vector<16x128xf32>
    %22 = vector.extract_strided_slice %9 {offsets = [0, 256], sizes = [16, 128], strides = [1, 1]} : vector<16x512xf32> to vector<16x128xf32>
    %23 = math.tanh %22 : vector<16x128xf32>
    %24 = vector.extract_strided_slice %9 {offsets = [0, 384], sizes = [16, 128], strides = [1, 1]} : vector<16x512xf32> to vector<16x128xf32>
    %25 = arith.negf %24 : vector<16x128xf32>
    %26 = math.exp %25 : vector<16x128xf32>
    %cst_9 = arith.constant 1.000000e+00 : f32
    %27 = vector.broadcast %cst_9 : f32 to vector<16x128xf32>
    %28 = arith.addf %27, %26 : vector<16x128xf32>
    %29 = arith.divf %27, %28 : vector<16x128xf32>
    %30 = arith.mulf %21, %2 : vector<16x128xf32>
    %31 = arith.mulf %15, %23 : vector<16x128xf32>
    %32 = arith.addf %30, %31 : vector<16x128xf32>
    %33 = math.tanh %32 : vector<16x128xf32>
    %34 = arith.mulf %29, %33 : vector<16x128xf32>
    %35 = arith.index_cast %c0_i32 : i32 to index
    %c0_10 = arith.constant 0 : index
    %c0_11 = arith.constant 0 : index
    %36 = vector.load %arg5[%35, %c0_10, %c0_11] : memref<8x16x128xf32, #tpu.memory_space<vmem>>, vector<1x16x128xf32>
    %37 = vector.shape_cast %36 : vector<1x16x128xf32> to vector<16x128xf32>
    %38 = vector.shape_cast %34 : vector<16x128xf32> to vector<1x16x128xf32>
    tpu.vector_store %arg5[%35, %c0_10, %c0_11], %38 {strides = array<i32>} : memref<8x16x128xf32, #tpu.memory_space<vmem>>, vector<1x16x128xf32>,
    %c1_i32 = arith.constant 1 : i32
    %39 = arith.index_cast %c1_i32 : i32 to index
    %c0_12 = arith.constant 0 : index
    %c0_13 = arith.constant 0 : index
    %40 = vector.load %arg1[%39, %c0_12, %c0_13] : memref<8x16x512xbf16, #tpu.memory_space<vmem>>, vector<1x16x512xbf16>
    %41 = vector.shape_cast %40 : vector<1x16x512xbf16> to vector<16x512xbf16>
    %42 = arith.extf %41 : vector<16x512xbf16> to vector<16x512xf32>
    %43 = arith.truncf %34 : vector<16x128xf32> to vector<16x128xbf16>
    %cst_14 = arith.constant dense<0.000000e+00> : vector<16x512xf32>
    %44 = tpu.matmul %43, %0, %cst_14 {dimension_numbers = #tpu.dot_dimension_numbers<[1], [0], [0], [1], [0, 0, 1, 1], [], []>} : vector<16x128xbf16>, vector<128x512xbf16>, vector<16x512xf32> -> vector<16x512xf32>
    %45 = arith.addf %42, %44 : vector<16x512xf32>
    %46 = vector.extract_strided_slice %45 {offsets = [0, 0], sizes = [16, 128], strides = [1, 1]} : vector<16x512xf32> to vector<16x128xf32>
    %47 = arith.negf %46 : vector<16x128xf32>
    %48 = math.exp %47 : vector<16x128xf32>
    %cst_15 = arith.constant 1.000000e+00 : f32
    %49 = vector.broadcast %cst_15 : f32 to vector<16x128xf32>
    %50 = arith.addf %49, %48 : vector<16x128xf32>
    %51 = arith.divf %49, %50 : vector<16x128xf32>
    %52 = vector.extract_strided_slice %45 {offsets = [0, 128], sizes = [16, 128], strides = [1, 1]} : vector<16x512xf32> to vector<16x128xf32>
    %53 = arith.negf %52 : vector<16x128xf32>
    %54 = math.exp %53 : vector<16x128xf32>
    %cst_16 = arith.constant 1.000000e+00 : f32
    %55 = vector.broadcast %cst_16 : f32 to vector<16x128xf32>
    %56 = arith.addf %55, %54 : vector<16x128xf32>
    %57 = arith.divf %55, %56 : vector<16x128xf32>
    %58 = vector.extract_strided_slice %45 {offsets = [0, 256], sizes = [16, 128], strides = [1, 1]} : vector<16x512xf32> to vector<16x128xf32>
    %59 = math.tanh %58 : vector<16x128xf32>
    %60 = vector.extract_strided_slice %45 {offsets = [0, 384], sizes = [16, 128], strides = [1, 1]} : vector<16x512xf32> to vector<16x128xf32>
    %61 = arith.negf %60 : vector<16x128xf32>
    %62 = math.exp %61 : vector<16x128xf32>
    %cst_17 = arith.constant 1.000000e+00 : f32
    %63 = vector.broadcast %cst_17 : f32 to vector<16x128xf32>
    %64 = arith.addf %63, %62 : vector<16x128xf32>
    %65 = arith.divf %63, %64 : vector<16x128xf32>
    %66 = arith.mulf %57, %32 : vector<16x128xf32>
    %67 = arith.mulf %51, %59 : vector<16x128xf32>
    %68 = arith.addf %66, %67 : vector<16x128xf32>
    %69 = math.tanh %68 : vector<16x128xf32>
    %70 = arith.mulf %65, %69 : vector<16x128xf32>
    %71 = arith.index_cast %c1_i32 : i32 to index
    %c0_18 = arith.constant 0 : index
    %c0_19 = arith.constant 0 : index
    %72 = vector.load %arg5[%71, %c0_18, %c0_19] : memref<8x16x128xf32, #tpu.memory_space<vmem>>, vector<1x16x128xf32>
    %73 = vector.shape_cast %72 : vector<1x16x128xf32> to vector<16x128xf32>
    %74 = vector.shape_cast %70 : vector<16x128xf32> to vector<1x16x128xf32>
    tpu.vector_store %arg5[%71, %c0_18, %c0_19], %74 {strides = array<i32>} : memref<8x16x128xf32, #tpu.memory_space<vmem>>, vector<1x16x128xf32>,
    %c2_i32 = arith.constant 2 : i32
    %75 = arith.index_cast %c2_i32 : i32 to index
    %c0_20 = arith.constant 0 : index
    %c0_21 = arith.constant 0 : index
    %76 = vector.load %arg1[%75, %c0_20, %c0_21] : memref<8x16x512xbf16, #tpu.memory_space<vmem>>, vector<1x16x512xbf16>
    %77 = vector.shape_cast %76 : vector<1x16x512xbf16> to vector<16x512xbf16>
    %78 = arith.extf %77 : vector<16x512xbf16> to vector<16x512xf32>
    %79 = arith.truncf %70 : vector<16x128xf32> to vector<16x128xbf16>
    %cst_22 = arith.constant dense<0.000000e+00> : vector<16x512xf32>
    %80 = tpu.matmul %79, %0, %cst_22 {dimension_numbers = #tpu.dot_dimension_numbers<[1], [0], [0], [1], [0, 0, 1, 1], [], []>} : vector<16x128xbf16>, vector<128x512xbf16>, vector<16x512xf32> -> vector<16x512xf32>
    %81 = arith.addf %78, %80 : vector<16x512xf32>
    %82 = vector.extract_strided_slice %81 {offsets = [0, 0], sizes = [16, 128], strides = [1, 1]} : vector<16x512xf32> to vector<16x128xf32>
    %83 = arith.negf %82 : vector<16x128xf32>
    %84 = math.exp %83 : vector<16x128xf32>
    %cst_23 = arith.constant 1.000000e+00 : f32
    %85 = vector.broadcast %cst_23 : f32 to vector<16x128xf32>
    %86 = arith.addf %85, %84 : vector<16x128xf32>
    %87 = arith.divf %85, %86 : vector<16x128xf32>
    %88 = vector.extract_strided_slice %81 {offsets = [0, 128], sizes = [16, 128], strides = [1, 1]} : vector<16x512xf32> to vector<16x128xf32>
    %89 = arith.negf %88 : vector<16x128xf32>
    %90 = math.exp %89 : vector<16x128xf32>
    %cst_24 = arith.constant 1.000000e+00 : f32
    %91 = vector.broadcast %cst_24 : f32 to vector<16x128xf32>
    %92 = arith.addf %91, %90 : vector<16x128xf32>
    %93 = arith.divf %91, %92 : vector<16x128xf32>
    %94 = vector.extract_strided_slice %81 {offsets = [0, 256], sizes = [16, 128], strides = [1, 1]} : vector<16x512xf32> to vector<16x128xf32>
    %95 = math.tanh %94 : vector<16x128xf32>
    %96 = vector.extract_strided_slice %81 {offsets = [0, 384], sizes = [16, 128], strides = [1, 1]} : vector<16x512xf32> to vector<16x128xf32>
    %97 = arith.negf %96 : vector<16x128xf32>
    %98 = math.exp %97 : vector<16x128xf32>
    %cst_25 = arith.constant 1.000000e+00 : f32
    %99 = vector.broadcast %cst_25 : f32 to vector<16x128xf32>
    %100 = arith.addf %99, %98 : vector<16x128xf32>
    %101 = arith.divf %99, %100 : vector<16x128xf32>
    %102 = arith.mulf %93, %68 : vector<16x128xf32>
    %103 = arith.mulf %87, %95 : vector<16x128xf32>
    %104 = arith.addf %102, %103 : vector<16x128xf32>
    %105 = math.tanh %104 : vector<16x128xf32>
    %106 = arith.mulf %101, %105 : vector<16x128xf32>
    %107 = arith.index_cast %c2_i32 : i32 to index
    %c0_26 = arith.constant 0 : index
    %c0_27 = arith.constant 0 : index
    %108 = vector.load %arg5[%107, %c0_26, %c0_27] : memref<8x16x128xf32, #tpu.memory_space<vmem>>, vector<1x16x128xf32>
    %109 = vector.shape_cast %108 : vector<1x16x128xf32> to vector<16x128xf32>
    %110 = vector.shape_cast %106 : vector<16x128xf32> to vector<1x16x128xf32>
    tpu.vector_store %arg5[%107, %c0_26, %c0_27], %110 {strides = array<i32>} : memref<8x16x128xf32, #tpu.memory_space<vmem>>, vector<1x16x128xf32>,
    %c3_i32 = arith.constant 3 : i32
    %111 = arith.index_cast %c3_i32 : i32 to index
    %c0_28 = arith.constant 0 : index
    %c0_29 = arith.constant 0 : index
    %112 = vector.load %arg1[%111, %c0_28, %c0_29] : memref<8x16x512xbf16, #tpu.memory_space<vmem>>, vector<1x16x512xbf16>
    %113 = vector.shape_cast %112 : vector<1x16x512xbf16> to vector<16x512xbf16>
    %114 = arith.extf %113 : vector<16x512xbf16> to vector<16x512xf32>
    %115 = arith.truncf %106 : vector<16x128xf32> to vector<16x128xbf16>
    %cst_30 = arith.constant dense<0.000000e+00> : vector<16x512xf32>
    %116 = tpu.matmul %115, %0, %cst_30 {dimension_numbers = #tpu.dot_dimension_numbers<[1], [0], [0], [1], [0, 0, 1, 1], [], []>} : vector<16x128xbf16>, vector<128x512xbf16>, vector<16x512xf32> -> vector<16x512xf32>
    %117 = arith.addf %114, %116 : vector<16x512xf32>
    %118 = vector.extract_strided_slice %117 {offsets = [0, 0], sizes = [16, 128], strides = [1, 1]} : vector<16x512xf32> to vector<16x128xf32>
    %119 = arith.negf %118 : vector<16x128xf32>
    %120 = math.exp %119 : vector<16x128xf32>
    %cst_31 = arith.constant 1.000000e+00 : f32
    %121 = vector.broadcast %cst_31 : f32 to vector<16x128xf32>
    %122 = arith.addf %121, %120 : vector<16x128xf32>
    %123 = arith.divf %121, %122 : vector<16x128xf32>
    %124 = vector.extract_strided_slice %117 {offsets = [0, 128], sizes = [16, 128], strides = [1, 1]} : vector<16x512xf32> to vector<16x128xf32>
    %125 = arith.negf %124 : vector<16x128xf32>
    %126 = math.exp %125 : vector<16x128xf32>
    %cst_32 = arith.constant 1.000000e+00 : f32
    %127 = vector.broadcast %cst_32 : f32 to vector<16x128xf32>
    %128 = arith.addf %127, %126 : vector<16x128xf32>
    %129 = arith.divf %127, %128 : vector<16x128xf32>
    %130 = vector.extract_strided_slice %117 {offsets = [0, 256], sizes = [16, 128], strides = [1, 1]} : vector<16x512xf32> to vector<16x128xf32>
    %131 = math.tanh %130 : vector<16x128xf32>
    %132 = vector.extract_strided_slice %117 {offsets = [0, 384], sizes = [16, 128], strides = [1, 1]} : vector<16x512xf32> to vector<16x128xf32>
    %133 = arith.negf %132 : vector<16x128xf32>
    %134 = math.exp %133 : vector<16x128xf32>
    %cst_33 = arith.constant 1.000000e+00 : f32
    %135 = vector.broadcast %cst_33 : f32 to vector<16x128xf32>
    %136 = arith.addf %135, %134 : vector<16x128xf32>
    %137 = arith.divf %135, %136 : vector<16x128xf32>
    %138 = arith.mulf %129, %104 : vector<16x128xf32>
    %139 = arith.mulf %123, %131 : vector<16x128xf32>
    %140 = arith.addf %138, %139 : vector<16x128xf32>
    %141 = math.tanh %140 : vector<16x128xf32>
    %142 = arith.mulf %137, %141 : vector<16x128xf32>
    %143 = arith.index_cast %c3_i32 : i32 to index
    %c0_34 = arith.constant 0 : index
    %c0_35 = arith.constant 0 : index
    %144 = vector.load %arg5[%143, %c0_34, %c0_35] : memref<8x16x128xf32, #tpu.memory_space<vmem>>, vector<1x16x128xf32>
    %145 = vector.shape_cast %144 : vector<1x16x128xf32> to vector<16x128xf32>
    %146 = vector.shape_cast %142 : vector<16x128xf32> to vector<1x16x128xf32>
    tpu.vector_store %arg5[%143, %c0_34, %c0_35], %146 {strides = array<i32>} : memref<8x16x128xf32, #tpu.memory_space<vmem>>, vector<1x16x128xf32>,
    %c4_i32 = arith.constant 4 : i32
    %147 = arith.index_cast %c4_i32 : i32 to index
    %c0_36 = arith.constant 0 : index
    %c0_37 = arith.constant 0 : index
    %148 = vector.load %arg1[%147, %c0_36, %c0_37] : memref<8x16x512xbf16, #tpu.memory_space<vmem>>, vector<1x16x512xbf16>
    %149 = vector.shape_cast %148 : vector<1x16x512xbf16> to vector<16x512xbf16>
    %150 = arith.extf %149 : vector<16x512xbf16> to vector<16x512xf32>
    %151 = arith.truncf %142 : vector<16x128xf32> to vector<16x128xbf16>
    %cst_38 = arith.constant dense<0.000000e+00> : vector<16x512xf32>
    %152 = tpu.matmul %151, %0, %cst_38 {dimension_numbers = #tpu.dot_dimension_numbers<[1], [0], [0], [1], [0, 0, 1, 1], [], []>} : vector<16x128xbf16>, vector<128x512xbf16>, vector<16x512xf32> -> vector<16x512xf32>
    %153 = arith.addf %150, %152 : vector<16x512xf32>
    %154 = vector.extract_strided_slice %153 {offsets = [0, 0], sizes = [16, 128], strides = [1, 1]} : vector<16x512xf32> to vector<16x128xf32>
    %155 = arith.negf %154 : vector<16x128xf32>
    %156 = math.exp %155 : vector<16x128xf32>
    %cst_39 = arith.constant 1.000000e+00 : f32
    %157 = vector.broadcast %cst_39 : f32 to vector<16x128xf32>
    %158 = arith.addf %157, %156 : vector<16x128xf32>
    %159 = arith.divf %157, %158 : vector<16x128xf32>
    %160 = vector.extract_strided_slice %153 {offsets = [0, 128], sizes = [16, 128], strides = [1, 1]} : vector<16x512xf32> to vector<16x128xf32>
    %161 = arith.negf %160 : vector<16x128xf32>
    %162 = math.exp %161 : vector<16x128xf32>
    %cst_40 = arith.constant 1.000000e+00 : f32
    %163 = vector.broadcast %cst_40 : f32 to vector<16x128xf32>
    %164 = arith.addf %163, %162 : vector<16x128xf32>
    %165 = arith.divf %163, %164 : vector<16x128xf32>
    %166 = vector.extract_strided_slice %153 {offsets = [0, 256], sizes = [16, 128], strides = [1, 1]} : vector<16x512xf32> to vector<16x128xf32>
    %167 = math.tanh %166 : vector<16x128xf32>
    %168 = vector.extract_strided_slice %153 {offsets = [0, 384], sizes = [16, 128], strides = [1, 1]} : vector<16x512xf32> to vector<16x128xf32>
    %169 = arith.negf %168 : vector<16x128xf32>
    %170 = math.exp %169 : vector<16x128xf32>
    %cst_41 = arith.constant 1.000000e+00 : f32
    %171 = vector.broadcast %cst_41 : f32 to vector<16x128xf32>
    %172 = arith.addf %171, %170 : vector<16x128xf32>
    %173 = arith.divf %171, %172 : vector<16x128xf32>
    %174 = arith.mulf %165, %140 : vector<16x128xf32>
    %175 = arith.mulf %159, %167 : vector<16x128xf32>
    %176 = arith.addf %174, %175 : vector<16x128xf32>
    %177 = math.tanh %176 : vector<16x128xf32>
    %178 = arith.mulf %173, %177 : vector<16x128xf32>
    %179 = arith.index_cast %c4_i32 : i32 to index
    %c0_42 = arith.constant 0 : index
    %c0_43 = arith.constant 0 : index
    %180 = vector.load %arg5[%179, %c0_42, %c0_43] : memref<8x16x128xf32, #tpu.memory_space<vmem>>, vector<1x16x128xf32>
    %181 = vector.shape_cast %180 : vector<1x16x128xf32> to vector<16x128xf32>
    %182 = vector.shape_cast %178 : vector<16x128xf32> to vector<1x16x128xf32>
    tpu.vector_store %arg5[%179, %c0_42, %c0_43], %182 {strides = array<i32>} : memref<8x16x128xf32, #tpu.memory_space<vmem>>, vector<1x16x128xf32>,
    %c5_i32 = arith.constant 5 : i32
    %183 = arith.index_cast %c5_i32 : i32 to index
    %c0_44 = arith.constant 0 : index
    %c0_45 = arith.constant 0 : index
    %184 = vector.load %arg1[%183, %c0_44, %c0_45] : memref<8x16x512xbf16, #tpu.memory_space<vmem>>, vector<1x16x512xbf16>
    %185 = vector.shape_cast %184 : vector<1x16x512xbf16> to vector<16x512xbf16>
    %186 = arith.extf %185 : vector<16x512xbf16> to vector<16x512xf32>
    %187 = arith.truncf %178 : vector<16x128xf32> to vector<16x128xbf16>
    %cst_46 = arith.constant dense<0.000000e+00> : vector<16x512xf32>
    %188 = tpu.matmul %187, %0, %cst_46 {dimension_numbers = #tpu.dot_dimension_numbers<[1], [0], [0], [1], [0, 0, 1, 1], [], []>} : vector<16x128xbf16>, vector<128x512xbf16>, vector<16x512xf32> -> vector<16x512xf32>
    %189 = arith.addf %186, %188 : vector<16x512xf32>
    %190 = vector.extract_strided_slice %189 {offsets = [0, 0], sizes = [16, 128], strides = [1, 1]} : vector<16x512xf32> to vector<16x128xf32>
    %191 = arith.negf %190 : vector<16x128xf32>
    %192 = math.exp %191 : vector<16x128xf32>
    %cst_47 = arith.constant 1.000000e+00 : f32
    %193 = vector.broadcast %cst_47 : f32 to vector<16x128xf32>
    %194 = arith.addf %193, %192 : vector<16x128xf32>
    %195 = arith.divf %193, %194 : vector<16x128xf32>
    %196 = vector.extract_strided_slice %189 {offsets = [0, 128], sizes = [16, 128], strides = [1, 1]} : vector<16x512xf32> to vector<16x128xf32>
    %197 = arith.negf %196 : vector<16x128xf32>
    %198 = math.exp %197 : vector<16x128xf32>
    %cst_48 = arith.constant 1.000000e+00 : f32
    %199 = vector.broadcast %cst_48 : f32 to vector<16x128xf32>
    %200 = arith.addf %199, %198 : vector<16x128xf32>
    %201 = arith.divf %199, %200 : vector<16x128xf32>
    %202 = vector.extract_strided_slice %189 {offsets = [0, 256], sizes = [16, 128], strides = [1, 1]} : vector<16x512xf32> to vector<16x128xf32>
    %203 = math.tanh %202 : vector<16x128xf32>
    %204 = vector.extract_strided_slice %189 {offsets = [0, 384], sizes = [16, 128], strides = [1, 1]} : vector<16x512xf32> to vector<16x128xf32>
    %205 = arith.negf %204 : vector<16x128xf32>
    %206 = math.exp %205 : vector<16x128xf32>
    %cst_49 = arith.constant 1.000000e+00 : f32
    %207 = vector.broadcast %cst_49 : f32 to vector<16x128xf32>
    %208 = arith.addf %207, %206 : vector<16x128xf32>
    %209 = arith.divf %207, %208 : vector<16x128xf32>
    %210 = arith.mulf %201, %176 : vector<16x128xf32>
    %211 = arith.mulf %195, %203 : vector<16x128xf32>
    %212 = arith.addf %210, %211 : vector<16x128xf32>
    %213 = math.tanh %212 : vector<16x128xf32>
    %214 = arith.mulf %209, %213 : vector<16x128xf32>
    %215 = arith.index_cast %c5_i32 : i32 to index
    %c0_50 = arith.constant 0 : index
    %c0_51 = arith.constant 0 : index
    %216 = vector.load %arg5[%215, %c0_50, %c0_51] : memref<8x16x128xf32, #tpu.memory_space<vmem>>, vector<1x16x128xf32>
    %217 = vector.shape_cast %216 : vector<1x16x128xf32> to vector<16x128xf32>
    %218 = vector.shape_cast %214 : vector<16x128xf32> to vector<1x16x128xf32>
    tpu.vector_store %arg5[%215, %c0_50, %c0_51], %218 {strides = array<i32>} : memref<8x16x128xf32, #tpu.memory_space<vmem>>, vector<1x16x128xf32>,
    %c6_i32 = arith.constant 6 : i32
    %219 = arith.index_cast %c6_i32 : i32 to index
    %c0_52 = arith.constant 0 : index
    %c0_53 = arith.constant 0 : index
    %220 = vector.load %arg1[%219, %c0_52, %c0_53] : memref<8x16x512xbf16, #tpu.memory_space<vmem>>, vector<1x16x512xbf16>
    %221 = vector.shape_cast %220 : vector<1x16x512xbf16> to vector<16x512xbf16>
    %222 = arith.extf %221 : vector<16x512xbf16> to vector<16x512xf32>
    %223 = arith.truncf %214 : vector<16x128xf32> to vector<16x128xbf16>
    %cst_54 = arith.constant dense<0.000000e+00> : vector<16x512xf32>
    %224 = tpu.matmul %223, %0, %cst_54 {dimension_numbers = #tpu.dot_dimension_numbers<[1], [0], [0], [1], [0, 0, 1, 1], [], []>} : vector<16x128xbf16>, vector<128x512xbf16>, vector<16x512xf32> -> vector<16x512xf32>
    %225 = arith.addf %222, %224 : vector<16x512xf32>
    %226 = vector.extract_strided_slice %225 {offsets = [0, 0], sizes = [16, 128], strides = [1, 1]} : vector<16x512xf32> to vector<16x128xf32>
    %227 = arith.negf %226 : vector<16x128xf32>
    %228 = math.exp %227 : vector<16x128xf32>
    %cst_55 = arith.constant 1.000000e+00 : f32
    %229 = vector.broadcast %cst_55 : f32 to vector<16x128xf32>
    %230 = arith.addf %229, %228 : vector<16x128xf32>
    %231 = arith.divf %229, %230 : vector<16x128xf32>
    %232 = vector.extract_strided_slice %225 {offsets = [0, 128], sizes = [16, 128], strides = [1, 1]} : vector<16x512xf32> to vector<16x128xf32>
    %233 = arith.negf %232 : vector<16x128xf32>
    %234 = math.exp %233 : vector<16x128xf32>
    %cst_56 = arith.constant 1.000000e+00 : f32
    %235 = vector.broadcast %cst_56 : f32 to vector<16x128xf32>
    %236 = arith.addf %235, %234 : vector<16x128xf32>
    %237 = arith.divf %235, %236 : vector<16x128xf32>
    %238 = vector.extract_strided_slice %225 {offsets = [0, 256], sizes = [16, 128], strides = [1, 1]} : vector<16x512xf32> to vector<16x128xf32>
    %239 = math.tanh %238 : vector<16x128xf32>
    %240 = vector.extract_strided_slice %225 {offsets = [0, 384], sizes = [16, 128], strides = [1, 1]} : vector<16x512xf32> to vector<16x128xf32>
    %241 = arith.negf %240 : vector<16x128xf32>
    %242 = math.exp %241 : vector<16x128xf32>
    %cst_57 = arith.constant 1.000000e+00 : f32
    %243 = vector.broadcast %cst_57 : f32 to vector<16x128xf32>
    %244 = arith.addf %243, %242 : vector<16x128xf32>
    %245 = arith.divf %243, %244 : vector<16x128xf32>
    %246 = arith.mulf %237, %212 : vector<16x128xf32>
    %247 = arith.mulf %231, %239 : vector<16x128xf32>
    %248 = arith.addf %246, %247 : vector<16x128xf32>
    %249 = math.tanh %248 : vector<16x128xf32>
    %250 = arith.mulf %245, %249 : vector<16x128xf32>
    %251 = arith.index_cast %c6_i32 : i32 to index
    %c0_58 = arith.constant 0 : index
    %c0_59 = arith.constant 0 : index
    %252 = vector.load %arg5[%251, %c0_58, %c0_59] : memref<8x16x128xf32, #tpu.memory_space<vmem>>, vector<1x16x128xf32>
    %253 = vector.shape_cast %252 : vector<1x16x128xf32> to vector<16x128xf32>
    %254 = vector.shape_cast %250 : vector<16x128xf32> to vector<1x16x128xf32>
    tpu.vector_store %arg5[%251, %c0_58, %c0_59], %254 {strides = array<i32>} : memref<8x16x128xf32, #tpu.memory_space<vmem>>, vector<1x16x128xf32>,
    %c7_i32 = arith.constant 7 : i32
    %255 = arith.index_cast %c7_i32 : i32 to index
    %c0_60 = arith.constant 0 : index
    %c0_61 = arith.constant 0 : index
    %256 = vector.load %arg1[%255, %c0_60, %c0_61] : memref<8x16x512xbf16, #tpu.memory_space<vmem>>, vector<1x16x512xbf16>
    %257 = vector.shape_cast %256 : vector<1x16x512xbf16> to vector<16x512xbf16>
    %258 = arith.extf %257 : vector<16x512xbf16> to vector<16x512xf32>
    %259 = arith.truncf %250 : vector<16x128xf32> to vector<16x128xbf16>
    %cst_62 = arith.constant dense<0.000000e+00> : vector<16x512xf32>
    %260 = tpu.matmul %259, %0, %cst_62 {dimension_numbers = #tpu.dot_dimension_numbers<[1], [0], [0], [1], [0, 0, 1, 1], [], []>} : vector<16x128xbf16>, vector<128x512xbf16>, vector<16x512xf32> -> vector<16x512xf32>
    %261 = arith.addf %258, %260 : vector<16x512xf32>
    %262 = vector.extract_strided_slice %261 {offsets = [0, 0], sizes = [16, 128], strides = [1, 1]} : vector<16x512xf32> to vector<16x128xf32>
    %263 = arith.negf %262 : vector<16x128xf32>
    %264 = math.exp %263 : vector<16x128xf32>
    %cst_63 = arith.constant 1.000000e+00 : f32
    %265 = vector.broadcast %cst_63 : f32 to vector<16x128xf32>
    %266 = arith.addf %265, %264 : vector<16x128xf32>
    %267 = arith.divf %265, %266 : vector<16x128xf32>
    %268 = vector.extract_strided_slice %261 {offsets = [0, 128], sizes = [16, 128], strides = [1, 1]} : vector<16x512xf32> to vector<16x128xf32>
    %269 = arith.negf %268 : vector<16x128xf32>
    %270 = math.exp %269 : vector<16x128xf32>
    %cst_64 = arith.constant 1.000000e+00 : f32
    %271 = vector.broadcast %cst_64 : f32 to vector<16x128xf32>
    %272 = arith.addf %271, %270 : vector<16x128xf32>
    %273 = arith.divf %271, %272 : vector<16x128xf32>
    %274 = vector.extract_strided_slice %261 {offsets = [0, 256], sizes = [16, 128], strides = [1, 1]} : vector<16x512xf32> to vector<16x128xf32>
    %275 = math.tanh %274 : vector<16x128xf32>
    %276 = vector.extract_strided_slice %261 {offsets = [0, 384], sizes = [16, 128], strides = [1, 1]} : vector<16x512xf32> to vector<16x128xf32>
    %277 = arith.negf %276 : vector<16x128xf32>
    %278 = math.exp %277 : vector<16x128xf32>
    %cst_65 = arith.constant 1.000000e+00 : f32
    %279 = vector.broadcast %cst_65 : f32 to vector<16x128xf32>
    %280 = arith.addf %279, %278 : vector<16x128xf32>
    %281 = arith.divf %279, %280 : vector<16x128xf32>
    %282 = arith.mulf %273, %248 : vector<16x128xf32>
    %283 = arith.mulf %267, %275 : vector<16x128xf32>
    %284 = arith.addf %282, %283 : vector<16x128xf32>
    %285 = math.tanh %284 : vector<16x128xf32>
    %286 = arith.mulf %281, %285 : vector<16x128xf32>
    %287 = arith.index_cast %c7_i32 : i32 to index
    %c0_66 = arith.constant 0 : index
    %c0_67 = arith.constant 0 : index
    %288 = vector.load %arg5[%287, %c0_66, %c0_67] : memref<8x16x128xf32, #tpu.memory_space<vmem>>, vector<1x16x128xf32>
    %289 = vector.shape_cast %288 : vector<1x16x128xf32> to vector<16x128xf32>
    %290 = vector.shape_cast %286 : vector<16x128xf32> to vector<1x16x128xf32>
    tpu.vector_store %arg5[%287, %c0_66, %c0_67], %290 {strides = array<i32>} : memref<8x16x128xf32, #tpu.memory_space<vmem>>, vector<1x16x128xf32>,
    %c8_i32 = arith.constant 8 : i32
    %c0_68 = arith.constant 0 : index
    %c0_69 = arith.constant 0 : index
    %291 = vector.load %arg6[%c0_68, %c0_69] : memref<16x128xf32, #tpu.memory_space<vmem>>, vector<16x128xf32>
    tpu.vector_store %arg6[%c0_68, %c0_69], %286 {strides = array<i32>} : memref<16x128xf32, #tpu.memory_space<vmem>>, vector<16x128xf32>,
    %c0_70 = arith.constant 0 : index
    %c0_71 = arith.constant 0 : index
    %292 = vector.load %arg7[%c0_70, %c0_71] : memref<16x128xf32, #tpu.memory_space<vmem>>, vector<16x128xf32>
    tpu.vector_store %arg7[%c0_70, %c0_71], %284 {strides = array<i32>} : memref<16x128xf32, #tpu.memory_space<vmem>>, vector<16x128xf32>,
    return
  }
  func.func @transform_0(%arg0: i32) -> (i32, i32, i32) {
    %c0_i32 = arith.constant 0 : i32
    %c0_i32_0 = arith.constant 0 : i32
    %c0_i32_1 = arith.constant 0 : i32
    %c0_i32_2 = arith.constant 0 : i32
    return %c0_i32, %c0_i32_0, %c0_i32_1 : i32, i32, i32
  }
  func.func @transform_1(%arg0: i32) -> (i32, i32) {
    %c0_i32 = arith.constant 0 : i32
    %c0_i32_0 = arith.constant 0 : i32
    %c0_i32_1 = arith.constant 0 : i32
    return %c0_i32, %c0_i32_0 : i32, i32
  }
  func.func @transform_2(%arg0: i32) -> (i32, i32) {
    %c0_i32 = arith.constant 0 : i32
    %c0_i32_0 = arith.constant 0 : i32
    %c0_i32_1 = arith.constant 0 : i32
    return %c0_i32, %c0_i32_0 : i32, i32
  }
  func.func @transform_3(%arg0: i32) -> (i32, i32) {
    %c0_i32 = arith.constant 0 : i32
    %c0_i32_0 = arith.constant 0 : i32
    %c0_i32_1 = arith.constant 0 : i32
    return %c0_i32, %c0_i32_0 : i32, i32
  }
  func.func @transform_4(%arg0: i32) -> (i32, i32, i32) {
    %c0_i32 = arith.constant 0 : i32
    %c0_i32_0 = arith.constant 0 : i32
    %c0_i32_1 = arith.constant 0 : i32
    %c0_i32_2 = arith.constant 0 : i32
    return %c0_i32, %c0_i32_0, %c0_i32_1 : i32, i32, i32
  }
  func.func @transform_5(%arg0: i32) -> (i32, i32) {
    %c0_i32 = arith.constant 0 : i32
    %c0_i32_0 = arith.constant 0 : i32
    %c0_i32_1 = arith.constant 0 : i32
    return %c0_i32, %c0_i32_0 : i32, i32
  }
  func.func @transform_6(%arg0: i32) -> (i32, i32) {
    %c0_i32 = arith.constant 0 : i32
    %c0_i32_0 = arith.constant 0 : i32
    %c0_i32_1 = arith.constant 0 : i32
    return %c0_i32, %c0_i32_0 : i32, i32
  }
}

module attributes {stable_mosaic.version = 11 : i64} {
  func.func @_matmul_kernel_single_k(%arg0: i32, %arg1: i32, %arg2: memref<128x256xbf16, #tpu.memory_space<vmem>>, %arg3: memref<256x256xbf16, #tpu.memory_space<vmem>>, %arg4: memref<1x256xf32, #tpu.memory_space<vmem>>, %arg5: memref<128x256xbf16, #tpu.memory_space<vmem>>) attributes {dimension_semantics = [#tpu.dimension_semantics<parallel>, #tpu.dimension_semantics<parallel>], iteration_bounds = array<i64: 1, 2>, scalar_prefetch = 0 : i64, scratch_operands = 0 : i64, tpu.core_type = #tpu.core_type<tc>, window_params = [{transform_indices = @transform_0, window_bounds = array<i64: 128, 256>}, {transform_indices = @transform_1, window_bounds = array<i64: 256, 256>}, {transform_indices = @transform_2, window_bounds = array<i64: 1, 256>}, {transform_indices = @transform_3, window_bounds = array<i64: 128, 256>}]} {
    %c0 = arith.constant 0 : index
    %c0_0 = arith.constant 0 : index
    %0 = vector.load %arg2[%c0, %c0_0] : memref<128x256xbf16, #tpu.memory_space<vmem>>, vector<128x256xbf16>
    %c0_1 = arith.constant 0 : index
    %c0_2 = arith.constant 0 : index
    %1 = vector.load %arg3[%c0_1, %c0_2] : memref<256x256xbf16, #tpu.memory_space<vmem>>, vector<256x256xbf16>
    %cst = arith.constant dense<0.000000e+00> : vector<128x256xf32>
    %2 = tpu.matmul %0, %1, %cst {dimension_numbers = #tpu.dot_dimension_numbers<[1], [0], [0], [1], [0, 0, 1, 1], [], []>} : vector<128x256xbf16>, vector<256x256xbf16>, vector<128x256xf32> -> vector<128x256xf32>
    %c0_3 = arith.constant 0 : index
    %c0_4 = arith.constant 0 : index
    %3 = vector.load %arg4[%c0_3, %c0_4] : memref<1x256xf32, #tpu.memory_space<vmem>>, vector<1x256xf32>
    %4 = vector.broadcast %3 : vector<1x256xf32> to vector<128x256xf32>
    %5 = arith.addf %2, %4 : vector<128x256xf32>
    %6 = arith.truncf %5 : vector<128x256xf32> to vector<128x256xbf16>
    %c0_5 = arith.constant 0 : index
    %c0_6 = arith.constant 0 : index
    %7 = vector.load %arg5[%c0_5, %c0_6] : memref<128x256xbf16, #tpu.memory_space<vmem>>, vector<128x256xbf16>
    tpu.vector_store %arg5[%c0_5, %c0_6], %6 {strides = array<i32>} : memref<128x256xbf16, #tpu.memory_space<vmem>>, vector<128x256xbf16>,
    return
  }
  func.func @transform_0(%arg0: i32, %arg1: i32) -> (i32, i32) {
    %c0_i32 = arith.constant 0 : i32
    %c0_i32_0 = arith.constant 0 : i32
    return %arg0, %c0_i32 : i32, i32
  }
  func.func @transform_1(%arg0: i32, %arg1: i32) -> (i32, i32) {
    %c0_i32 = arith.constant 0 : i32
    %c0_i32_0 = arith.constant 0 : i32
    return %c0_i32, %arg1 : i32, i32
  }
  func.func @transform_2(%arg0: i32, %arg1: i32) -> (i32, i32) {
    %c0_i32 = arith.constant 0 : i32
    %c0_i32_0 = arith.constant 0 : i32
    return %c0_i32, %arg1 : i32, i32
  }
  func.func @transform_3(%arg0: i32, %arg1: i32) -> (i32, i32) {
    %c0_i32 = arith.constant 0 : i32
    return %arg0, %arg1 : i32, i32
  }
}

module attributes {stable_mosaic.version = 11 : i64} {
  func.func @_matmul_kernel_single_k(%arg0: i32, %arg1: i32, %arg2: memref<128x128xbf16, #tpu.memory_space<vmem>>, %arg3: memref<128x256xbf16, #tpu.memory_space<vmem>>, %arg4: memref<1x256xf32, #tpu.memory_space<vmem>>, %arg5: memref<128x256xbf16, #tpu.memory_space<vmem>>) attributes {dimension_semantics = [#tpu.dimension_semantics<parallel>, #tpu.dimension_semantics<parallel>], iteration_bounds = array<i64: 1, 2>, scalar_prefetch = 0 : i64, scratch_operands = 0 : i64, tpu.core_type = #tpu.core_type<tc>, window_params = [{transform_indices = @transform_0, window_bounds = array<i64: 128, 128>}, {transform_indices = @transform_1, window_bounds = array<i64: 128, 256>}, {transform_indices = @transform_2, window_bounds = array<i64: 1, 256>}, {transform_indices = @transform_3, window_bounds = array<i64: 128, 256>}]} {
    %c0 = arith.constant 0 : index
    %c0_0 = arith.constant 0 : index
    %0 = vector.load %arg2[%c0, %c0_0] : memref<128x128xbf16, #tpu.memory_space<vmem>>, vector<128x128xbf16>
    %c0_1 = arith.constant 0 : index
    %c0_2 = arith.constant 0 : index
    %1 = vector.load %arg3[%c0_1, %c0_2] : memref<128x256xbf16, #tpu.memory_space<vmem>>, vector<128x256xbf16>
    %cst = arith.constant dense<0.000000e+00> : vector<128x256xf32>
    %2 = tpu.matmul %0, %1, %cst {dimension_numbers = #tpu.dot_dimension_numbers<[1], [0], [0], [1], [0, 0, 1, 1], [], []>} : vector<128x128xbf16>, vector<128x256xbf16>, vector<128x256xf32> -> vector<128x256xf32>
    %c0_3 = arith.constant 0 : index
    %c0_4 = arith.constant 0 : index
    %3 = vector.load %arg4[%c0_3, %c0_4] : memref<1x256xf32, #tpu.memory_space<vmem>>, vector<1x256xf32>
    %4 = vector.broadcast %3 : vector<1x256xf32> to vector<128x256xf32>
    %5 = arith.addf %2, %4 : vector<128x256xf32>
    %6 = arith.truncf %5 : vector<128x256xf32> to vector<128x256xbf16>
    %c0_5 = arith.constant 0 : index
    %c0_6 = arith.constant 0 : index
    %7 = vector.load %arg5[%c0_5, %c0_6] : memref<128x256xbf16, #tpu.memory_space<vmem>>, vector<128x256xbf16>
    tpu.vector_store %arg5[%c0_5, %c0_6], %6 {strides = array<i32>} : memref<128x256xbf16, #tpu.memory_space<vmem>>, vector<128x256xbf16>,
    return
  }
  func.func @transform_0(%arg0: i32, %arg1: i32) -> (i32, i32) {
    %c0_i32 = arith.constant 0 : i32
    %c0_i32_0 = arith.constant 0 : i32
    return %arg0, %c0_i32 : i32, i32
  }
  func.func @transform_1(%arg0: i32, %arg1: i32) -> (i32, i32) {
    %c0_i32 = arith.constant 0 : i32
    %c0_i32_0 = arith.constant 0 : i32
    return %c0_i32, %arg1 : i32, i32
  }
  func.func @transform_2(%arg0: i32, %arg1: i32) -> (i32, i32) {
    %c0_i32 = arith.constant 0 : i32
    %c0_i32_0 = arith.constant 0 : i32
    return %c0_i32, %arg1 : i32, i32
  }
  func.func @transform_3(%arg0: i32, %arg1: i32) -> (i32, i32) {
    %c0_i32 = arith.constant 0 : i32
    return %arg0, %arg1 : i32, i32
  }
}

module attributes {stable_mosaic.version = 11 : i64} {
  func.func @_regressor_kernel(%arg0: i32, %arg1: memref<128x128xbf16, #tpu.memory_space<vmem>>, %arg2: memref<128x128xbf16, #tpu.memory_space<vmem>>, %arg3: memref<1x128xf32, #tpu.memory_space<vmem>>, %arg4: memref<128x128xbf16, #tpu.memory_space<vmem>>, %arg5: memref<1x128xf32, #tpu.memory_space<vmem>>, %arg6: memref<128x128xf32, #tpu.memory_space<vmem>>) attributes {dimension_semantics = [#tpu.dimension_semantics<parallel>], iteration_bounds = array<i64: 1>, scalar_prefetch = 0 : i64, scratch_operands = 0 : i64, tpu.core_type = #tpu.core_type<tc>, window_params = [{transform_indices = @transform_0, window_bounds = array<i64: 128, 128>}, {pipeline_mode = #tpu.pipeline_mode<synchronous>, transform_indices = @transform_1, window_bounds = array<i64: 128, 128>}, {pipeline_mode = #tpu.pipeline_mode<synchronous>, transform_indices = @transform_2, window_bounds = array<i64: 1, 128>}, {pipeline_mode = #tpu.pipeline_mode<synchronous>, transform_indices = @transform_3, window_bounds = array<i64: 128, 128>}, {pipeline_mode = #tpu.pipeline_mode<synchronous>, transform_indices = @transform_4, window_bounds = array<i64: 1, 128>}, {transform_indices = @transform_5, window_bounds = array<i64: 128, 128>}]} {
    %c0 = arith.constant 0 : index
    %c0_0 = arith.constant 0 : index
    %0 = vector.load %arg1[%c0, %c0_0] : memref<128x128xbf16, #tpu.memory_space<vmem>>, vector<128x128xbf16>
    %c0_1 = arith.constant 0 : index
    %c0_2 = arith.constant 0 : index
    %1 = vector.load %arg2[%c0_1, %c0_2] : memref<128x128xbf16, #tpu.memory_space<vmem>>, vector<128x128xbf16>
    %cst = arith.constant dense<0.000000e+00> : vector<128x128xf32>
    %2 = tpu.matmul %0, %1, %cst {dimension_numbers = #tpu.dot_dimension_numbers<[1], [0], [0], [1], [0, 0, 1, 1], [], []>} : vector<128x128xbf16>, vector<128x128xbf16>, vector<128x128xf32> -> vector<128x128xf32>
    %c0_3 = arith.constant 0 : index
    %c0_4 = arith.constant 0 : index
    %3 = vector.load %arg3[%c0_3, %c0_4] : memref<1x128xf32, #tpu.memory_space<vmem>>, vector<1x128xf32>
    %4 = vector.broadcast %3 : vector<1x128xf32> to vector<128x128xf32>
    %5 = arith.addf %2, %4 : vector<128x128xf32>
    %cst_5 = arith.constant 0.000000e+00 : f32
    %6 = vector.broadcast %cst_5 : f32 to vector<128x128xf32>
    %7 = arith.cmpf oge, %5, %6 : vector<128x128xf32>
    %cst_6 = arith.constant 1.000000e-01 : f32
    %8 = vector.broadcast %cst_6 : f32 to vector<128x128xf32>
    %9 = arith.mulf %8, %5 : vector<128x128xf32>
    %10 = arith.select %7, %5, %9 : vector<128x128xi1>, vector<128x128xf32>
    %11 = arith.truncf %10 : vector<128x128xf32> to vector<128x128xbf16>
    %c0_7 = arith.constant 0 : index
    %c0_8 = arith.constant 0 : index
    %12 = vector.load %arg4[%c0_7, %c0_8] : memref<128x128xbf16, #tpu.memory_space<vmem>>, vector<128x128xbf16>
    %cst_9 = arith.constant dense<0.000000e+00> : vector<128x128xf32>
    %13 = tpu.matmul %11, %12, %cst_9 {dimension_numbers = #tpu.dot_dimension_numbers<[1], [0], [0], [1], [0, 0, 1, 1], [], []>} : vector<128x128xbf16>, vector<128x128xbf16>, vector<128x128xf32> -> vector<128x128xf32>
    %c0_10 = arith.constant 0 : index
    %c0_11 = arith.constant 0 : index
    %14 = vector.load %arg5[%c0_10, %c0_11] : memref<1x128xf32, #tpu.memory_space<vmem>>, vector<1x128xf32>
    %15 = vector.broadcast %14 : vector<1x128xf32> to vector<128x128xf32>
    %16 = arith.addf %13, %15 : vector<128x128xf32>
    %c0_12 = arith.constant 0 : index
    %c0_13 = arith.constant 0 : index
    %17 = vector.load %arg6[%c0_12, %c0_13] : memref<128x128xf32, #tpu.memory_space<vmem>>, vector<128x128xf32>
    tpu.vector_store %arg6[%c0_12, %c0_13], %16 {strides = array<i32>} : memref<128x128xf32, #tpu.memory_space<vmem>>, vector<128x128xf32>,
    return
  }
  func.func @transform_0(%arg0: i32) -> (i32, i32) {
    %c0_i32 = arith.constant 0 : i32
    %c0_i32_0 = arith.constant 0 : i32
    return %arg0, %c0_i32 : i32, i32
  }
  func.func @transform_1(%arg0: i32) -> (i32, i32) {
    %c0_i32 = arith.constant 0 : i32
    %c0_i32_0 = arith.constant 0 : i32
    %c0_i32_1 = arith.constant 0 : i32
    return %c0_i32, %c0_i32_0 : i32, i32
  }
  func.func @transform_2(%arg0: i32) -> (i32, i32) {
    %c0_i32 = arith.constant 0 : i32
    %c0_i32_0 = arith.constant 0 : i32
    %c0_i32_1 = arith.constant 0 : i32
    return %c0_i32, %c0_i32_0 : i32, i32
  }
  func.func @transform_3(%arg0: i32) -> (i32, i32) {
    %c0_i32 = arith.constant 0 : i32
    %c0_i32_0 = arith.constant 0 : i32
    %c0_i32_1 = arith.constant 0 : i32
    return %c0_i32, %c0_i32_0 : i32, i32
  }
  func.func @transform_4(%arg0: i32) -> (i32, i32) {
    %c0_i32 = arith.constant 0 : i32
    %c0_i32_0 = arith.constant 0 : i32
    %c0_i32_1 = arith.constant 0 : i32
    return %c0_i32, %c0_i32_0 : i32, i32
  }
  func.func @transform_5(%arg0: i32) -> (i32, i32) {
    %c0_i32 = arith.constant 0 : i32
    %c0_i32_0 = arith.constant 0 : i32
    return %arg0, %c0_i32 : i32, i32
  }
}

</mosaic_0001>

<llo_original>
// kernel: _lambda_.5
$region0: #{_lambda_.5}
  #allocation0 [shape = 'u32[]', space=smem, size = 0x4, offset = 0x4, fixed_abs, tag = 'smem constant byte address 0x4 - core index']
  #allocation1 [shape = 'u32[144,128]{1,0:T(1,128)}', space=vmem, size = 0x12000, scoped, tag = 'internal scratch']
  %s0 = inlined_call_operand.vmem [shape: bf16[128,256], index: 0, kind: input, shape index: {}]
  %s1 = inlined_call_operand.vmem [shape: bf16[256,512], index: 1, kind: input, shape index: {}]
  %s2 = inlined_call_operand.vmem [shape: f32[1,512], index: 2, kind: input, shape index: {}]
  %s3 = inlined_call_operand.vmem [shape: bf16[128,512], index: 3, kind: output, shape index: {}]
  %s4 = sld [smem:[#allocation0]]
  $region117: #{_lambda_.5} parent=0
    _
  %s6 = ssub.s32 1, %s4
  %s7 = scalar_select 0, %s6, %s4
  $region1: #{_lambda_.5} parent=0
    #allocation2 [shape = 'u8[262144]{0}', space=vmem, size = 0x40000, scoped, tag = 'input window, operand 1']
    #allocation3 [shape = 'u8[131072]{0}', space=vmem, size = 0x20000, scoped, tag = 'output window, operand 0']
    loop: start=0, step=1, limit=4
    $region2: #{_lambda_.5} parent=1 // loop_pre_header
      _
    $region3: #{_lambda_.5} parent=1 // loop_header
      %s9 = sphi 0, %s13
      %p10 = scmp.ge.s32.totalorder %s9, 4
      %s16 = sphi 0, %s28
      %s17 = sphi 0, %s24
      %s18 = sphi 0, %s16
      %s19 = sphi 0, %s17
      %s20 = sphi 0, %s18
      %s21 = sphi 0, %s19
      %s31 = sphi 0, %s33
      %s34 = sphi 0, %s31
      %s35 = sphi 0, %s34
      %s51 = sphi 0, %s35
      %s57 = sphi 0, %s59
      %s60 = sphi 0, %s57
      %s61 = sphi 0, %s60
      %s77 = sphi 0, %s61
      %s83 = sphi 0, %s85
      %s86 = sphi 0, %s83
      %s87 = sphi 0, %s86
      %s103 = sphi 0, %s87
      %s111 = sphi 0, %s113
      %s114 = sphi 0, %s111
      %s115 = sphi 0, %s114
      %s131 = sphi 0, %s115
    $region4: #{_lambda_.5} parent=1 // loop_header_branch
      %12 = sbr.rel (%p10) target = $region8
    $region5: #{_lambda_.5} parent=1 // loop_body
      %s14 = ssub.s32 %s9, 1
      %s15 = ssub.s32 %s9, 2
      %s22 = sadd.s32 1, %s17
      %p23 = scmp.ge.s32.totalorder %s22, 2
      %s24 = scalar_select %p23, 0, %s22
      %s25 = sadd.s32 1, %s16
      %s26 = scalar_select %p23, %s25, %s16
      %p27 = scmp.ge.s32.totalorder %s26, 1
      %s28 = scalar_select %p27, 0, %s26
      %s29 = ssub.s32 %s16, %s28
      %p30 = scmp.eq.s32.totalorder %s29, 0
      %s32 = sadd.s32 %s31, 1
      %s33 = scalar_select %p30, %s31, %s32
      %p36 = pneg %p30
      %p37 = scmp.eq.s32.totalorder %s9, 1
      %p38 = por %p36, %p37
      %p39 = scmp.ne.s32.totalorder %s31, %s34
      %p40 = scmp.eq.s32.totalorder %s9, 0
      %p41 = por %p39, %p40
      %p42 = scmp.ne.s32.totalorder %s31, %s34
      %p43 = scmp.eq.s32.totalorder %s14, 1
      %p44 = por %p42, %p43
      %p45 = scmp.ne.s32.totalorder %s34, %s35
      %p46 = scmp.eq.s32.totalorder %s14, 0
      %p47 = por %p45, %p46
      %p48 = scmp.ne.s32.totalorder %s34, %s35
      %p49 = scmp.eq.s32.totalorder %s15, 1
      %p50 = por %p48, %p49
      %p52 = scmp.ne.s32.totalorder %s35, %s51
      %p53 = scmp.eq.s32.totalorder %s15, 0
      %p54 = por %p52, %p53
      %s55 = ssub.s32 %s17, %s24
      %p56 = scmp.eq.s32.totalorder %s55, 0
      %s58 = sadd.s32 %s57, 1
      %s59 = scalar_select %p56, %s57, %s58
      %p62 = pneg %p56
      %p63 = scmp.eq.s32.totalorder %s9, 1
      %p64 = por %p62, %p63
      %p65 = scmp.ne.s32.totalorder %s57, %s60
      %p66 = scmp.eq.s32.totalorder %s9, 0
      %p67 = por %p65, %p66
      %p68 = scmp.ne.s32.totalorder %s57, %s60
      %p69 = scmp.eq.s32.totalorder %s14, 1
      %p70 = por %p68, %p69
      %p71 = scmp.ne.s32.totalorder %s60, %s61
      %p72 = scmp.eq.s32.totalorder %s14, 0
      %p73 = por %p71, %p72
      %p74 = scmp.ne.s32.totalorder %s60, %s61
      %p75 = scmp.eq.s32.totalorder %s15, 1
      %p76 = por %p74, %p75
      %p78 = scmp.ne.s32.totalorder %s61, %s77
      %p79 = scmp.eq.s32.totalorder %s15, 0
      %p80 = por %p78, %p79
      %s81 = ssub.s32 %s17, %s24
      %p82 = scmp.eq.s32.totalorder %s81, 0
      %s84 = sadd.s32 %s83, 1
      %s85 = scalar_select %p82, %s83, %s84
      %p88 = pneg %p82
      %p89 = scmp.eq.s32.totalorder %s9, 1
      %p90 = por %p88, %p89
      %p91 = scmp.ne.s32.totalorder %s83, %s86
      %p92 = scmp.eq.s32.totalorder %s9, 0
      %p93 = por %p91, %p92
      %p94 = scmp.ne.s32.totalorder %s83, %s86
      %p95 = scmp.eq.s32.totalorder %s14, 1
      %p96 = por %p94, %p95
      %p97 = scmp.ne.s32.totalorder %s86, %s87
      %p98 = scmp.eq.s32.totalorder %s14, 0
      %p99 = por %p97, %p98
      %p100 = scmp.ne.s32.totalorder %s86, %s87
      %p101 = scmp.eq.s32.totalorder %s15, 1
      %p102 = por %p100, %p101
      %p104 = scmp.ne.s32.totalorder %s87, %s103
      %p105 = scmp.eq.s32.totalorder %s15, 0
      %p106 = por %p104, %p105
      %s107 = ssub.s32 %s16, %s28
      %s108 = ssub.s32 %s17, %s24
      %s109 = sor.u32 %s107, %s108
      %p110 = scmp.eq.s32.totalorder %s109, 0
      %s112 = sadd.s32 %s111, 1
      %s113 = scalar_select %p110, %s111, %s112
      %p116 = pneg %p110
      %p117 = scmp.eq.s32.totalorder %s9, 1
      %p118 = por %p116, %p117
      %p119 = scmp.ne.s32.totalorder %s111, %s114
      %p120 = scmp.eq.s32.totalorder %s9, 0
      %p121 = por %p119, %p120
      %p122 = scmp.ne.s32.totalorder %s111, %s114
      %p123 = scmp.eq.s32.totalorder %s14, 1
      %p124 = por %p122, %p123
      %p125 = scmp.ne.s32.totalorder %s114, %s115
      %p126 = scmp.eq.s32.totalorder %s14, 0
      %p127 = por %p125, %p126
      %p128 = scmp.ne.s32.totalorder %s114, %s115
      %p129 = scmp.eq.s32.totalorder %s15, 1
      %p130 = por %p128, %p129
      %p132 = scmp.ne.s32.totalorder %s115, %s131
      %p133 = scmp.eq.s32.totalorder %s15, 0
      %p134 = por %p132, %p133
      %p135 = scmp.le.s32.totalorder 1, %s9
      %p136 = scmp.lt.s32.totalorder %s9, 3
      %p137 = pnand %p135, %p136
      %p138 = pneg %p137
      // Predicated region
      $region9: #{_lambda_.5} parent=5 // pred_check
        _
      $region10: #{_lambda_.5} parent=5 // pred_check_branch
        %140 = sbr.rel (%p137) target = $region12
      $region11: #{_lambda_.5} parent=5 // pred_region
        %s141 = ssub.s32 %s9, 1
        // Predicated region
        $region13: #{_lambda_.5} parent=11 // pred_check
          %p142 = pneg %p47
        $region14: #{_lambda_.5} parent=11 // pred_check_branch
          %144 = sbr.rel (%p142) target = $region16
        $region15: #{_lambda_.5} parent=11 // pred_region
          %s145 = smul.u32 16, %s18
          %p146 = scmp.lt.s32.totalorder %s145, 15
          %s147 = scalar_select %p146, %s145, 15
          %s148 = smul.addr %s147, 2
          %s149 = smul.addr %s148, 4
          %s150 = scalar_lea.vmem %s0, %s149
          %s151 = smul.u32 16, %s18
        $region16: #{_lambda_.5} parent=11 // pred_fallthru
          _
      $region12: #{_lambda_.5} parent=5 // pred_fallthru
        _
      %p152 = scmp.lt.s32.totalorder %s9, 2
      // Predicated region
      $region17: #{_lambda_.5} parent=5 // pred_check
        %p153 = pneg %p152
      $region18: #{_lambda_.5} parent=5 // pred_check_branch
        %155 = sbr.rel (%p153) target = $region20
      $region19: #{_lambda_.5} parent=5 // pred_region
        // Predicated region
        $region21: #{_lambda_.5} parent=19 // pred_check
          %p156 = pneg %p67
        $region22: #{_lambda_.5} parent=19 // pred_check_branch
          %158 = sbr.rel (%p156) target = $region24
        $region23: #{_lambda_.5} parent=19 // pred_region
          %s159 = sand.u32 %s57, 1
          %s160 = sand.u32 %s57, 1
          %s161 = smul.addr %s160, 256
          %s162 = scalar_lea.vmem [#allocation2], %s161
          %s163 = smul.u32 2, %s17
          %s164 = smul.addr %s163, 4
          %s165 = scalar_lea.vmem %s1, %s164
          // Predicated region
          $region25: #{_lambda_.5} parent=23 // pred_check
            _
          $region26: #{_lambda_.5} parent=23 // pred_check_branch
            %167 = sbr.rel (0) target = $region28
          $region27: #{_lambda_.5} parent=23 // pred_region
            // Predicated region
            $region29: #{_lambda_.5} parent=27 // pred_check
              _
            $region30: #{_lambda_.5} parent=27 // pred_check_branch
              %169 = sbr.rel (0) target = $region32
            $region31: #{_lambda_.5} parent=27 // pred_region
              // Predicated region
              $region44: #{_lambda_.5} parent=31 // pred_check
                _
              $region45: #{_lambda_.5} parent=31 // pred_check_branch
                %246 = sbr.rel (0) target = $region47
              $region46: #{_lambda_.5} parent=31 // pred_region
                loop: start=0, step=1, limit=1
                $region48: #{_lambda_.5} parent=46 // loop_pre_header
                  _
                $region49: #{_lambda_.5} parent=46 // loop_header
                  %s248 = sphi 0, %s252
                  %p249 = scmp.ge.s32.totalorder %s248, 1
                  %s253 = sphi %s165, %s165
                  %s254 = sphi %s162, %s162
                $region50: #{_lambda_.5} parent=46 // loop_header_branch
                  %251 = sbr.rel (%p249) target = $region54
                $region51: #{_lambda_.5} parent=46 // loop_body
                  %v255 = vld [vmem:[%s253] sm:$0xff]
                  %256 = vst [vmem:[%s254] sm:$0xff] %v255
                  %v257 = vld [vmem:[%s253 + $0x10] sm:$0xff]
                  %258 = vst [vmem:[%s254 + $0x8] sm:$0xff] %v257
                  %v259 = vld [vmem:[%s253 + $0x20] sm:$0xff]
                  %260 = vst [vmem:[%s254 + $0x10] sm:$0xff] %v259
                  %v261 = vld [vmem:[%s253 + $0x30] sm:$0xff]
                  %262 = vst [vmem:[%s254 + $0x18] sm:$0xff] %v261
                  %v263 = vld [vmem:[%s253 + $0x40] sm:$0xff]
                  %264 = vst [vmem:[%s254 + $0x20] sm:$0xff] %v263
                  %v265 = vld [vmem:[%s253 + $0x50] sm:$0xff]
                  %266 = vst [vmem:[%s254 + $0x28] sm:$0xff] %v265
                  %v267 = vld [vmem:[%s253 + $0x60] sm:$0xff]
                  %268 = vst [vmem:[%s254 + $0x30] sm:$0xff] %v267
                  %v269 = vld [vmem:[%s253 + $0x70] sm:$0xff]
                  %270 = vst [vmem:[%s254 + $0x38] sm:$0xff] %v269
                  %v271 = vld [vmem:[%s253 + $0x80] sm:$0xff]
                  %272 = vst [vmem:[%s254 + $0x40] sm:$0xff] %v271
                  %v273 = vld [vmem:[%s253 + $0x90] sm:$0xff]
                  %274 = vst [vmem:[%s254 + $0x48] sm:$0xff] %v273
                  %v275 = vld [vmem:[%s253 + $0xa0] sm:$0xff]
                  %276 = vst [vmem:[%s254 + $0x50] sm:$0xff] %v275
                  %v277 = vld [vmem:[%s253 + $0xb0] sm:$0xff]
                  %278 = vst [vmem:[%s254 + $0x58] sm:$0xff] %v277
                  %v279 = vld [vmem:[%s253 + $0xc0] sm:$0xff]
                  %280 = vst [vmem:[%s254 + $0x60] sm:$0xff] %v279
                  %v281 = vld [vmem:[%s253 + $0xd0] sm:$0xff]
                  %282 = vst [vmem:[%s254 + $0x68] sm:$0xff] %v281
                  %v283 = vld [vmem:[%s253 + $0xe0] sm:$0xff]
                  %284 = vst [vmem:[%s254 + $0x70] sm:$0xff] %v283
                  %v285 = vld [vmem:[%s253 + $0xf0] sm:$0xff]
                  %286 = vst [vmem:[%s254 + $0x78] sm:$0xff] %v285
                  %v287 = vld [vmem:[%s253 + $0x100] sm:$0xff]
                  %288 = vst [vmem:[%s254 + $0x80] sm:$0xff] %v287
                  %v289 = vld [vmem:[%s253 + $0x110] sm:$0xff]
                  %290 = vst [vmem:[%s254 + $0x88] sm:$0xff] %v289
                  %v291 = vld [vmem:[%s253 + $0x120] sm:$0xff]
                  %292 = vst [vmem:[%s254 + $0x90] sm:$0xff] %v291
                  %v293 = vld [vmem:[%s253 + $0x130] sm:$0xff]
                  %294 = vst [vmem:[%s254 + $0x98] sm:$0xff] %v293
                  %v295 = vld [vmem:[%s253 + $0x140] sm:$0xff]
                  %296 = vst [vmem:[%s254 + $0xa0] sm:$0xff] %v295
                  %v297 = vld [vmem:[%s253 + $0x150] sm:$0xff]
                  %298 = vst [vmem:[%s254 + $0xa8] sm:$0xff] %v297
                  %v299 = vld [vmem:[%s253 + $0x160] sm:$0xff]
                  %300 = vst [vmem:[%s254 + $0xb0] sm:$0xff] %v299
                  %v301 = vld [vmem:[%s253 + $0x170] sm:$0xff]
                  %302 = vst [vmem:[%s254 + $0xb8] sm:$0xff] %v301
                  %v303 = vld [vmem:[%s253 + $0x180] sm:$0xff]
                  %304 = vst [vmem:[%s254 + $0xc0] sm:$0xff] %v303
                  %v305 = vld [vmem:[%s253 + $0x190] sm:$0xff]
                  %306 = vst [vmem:[%s254 + $0xc8] sm:$0xff] %v305
                  %v307 = vld [vmem:[%s253 + $0x1a0] sm:$0xff]
                  %308 = vst [vmem:[%s254 + $0xd0] sm:$0xff] %v307
                  %v309 = vld [vmem:[%s253 + $0x1b0] sm:$0xff]
                  %310 = vst [vmem:[%s254 + $0xd8] sm:$0xff] %v309
                  %v311 = vld [vmem:[%s253 + $0x1c0] sm:$0xff]
                  %312 = vst [vmem:[%s254 + $0xe0] sm:$0xff] %v311
                  %v313 = vld [vmem:[%s253 + $0x1d0] sm:$0xff]
                  %314 = vst [vmem:[%s254 + $0xe8] sm:$0xff] %v313
                  %v315 = vld [vmem:[%s253 + $0x1e0] sm:$0xff]
                  %316 = vst [vmem:[%s254 + $0xf0] sm:$0xff] %v315
                  %v317 = vld [vmem:[%s253 + $0x1f0] sm:$0xff]
                  %318 = vst [vmem:[%s254 + $0xf8] sm:$0xff] %v317
                $region52: #{_lambda_.5} parent=46 // loop_footer
                  %s252 = sadd.s32 1, %s248
                $region53: #{_lambda_.5} parent=46 // loop_footer_branch
                  %247 = sbr.rel target = $region49
                $region54: #{_lambda_.5} parent=46 // loop_exit
                  _
              $region47: #{_lambda_.5} parent=31 // pred_fallthru
                _
              // Predicated region
              $region55: #{_lambda_.5} parent=31 // pred_check
                _
              $region56: #{_lambda_.5} parent=31 // pred_check_branch
                %320 = sbr.rel target = $region58
              $region57: #{_lambda_.5} parent=31 // pred_region
                _
              $region58: #{_lambda_.5} parent=31 // pred_fallthru
                _
            $region32: #{_lambda_.5} parent=27 // pred_fallthru
              _
            // Predicated region
            $region33: #{_lambda_.5} parent=27 // pred_check
              _
            $region34: #{_lambda_.5} parent=27 // pred_check_branch
              %171 = sbr.rel target = $region36
            $region35: #{_lambda_.5} parent=27 // pred_region
              loop: start=0, step=1, limit=1
              $region37: #{_lambda_.5} parent=35 // loop_pre_header
                _
              $region38: #{_lambda_.5} parent=35 // loop_header
                %s174 = sphi 0, %s178
                %p175 = scmp.ge.s32.totalorder %s174, 1
                %s179 = sphi %s165, %s165
                %s180 = sphi %s162, %s162
              $region39: #{_lambda_.5} parent=35 // loop_header_branch
                %177 = sbr.rel (%p175) target = $region43
              $region40: #{_lambda_.5} parent=35 // loop_body
                %v181 = vld [vmem:[%s179] sm:$0xff]
                %182 = vst [vmem:[%s180] sm:$0xff] %v181
                %v183 = vld [vmem:[%s179 + $0x10] sm:$0xff]
                %184 = vst [vmem:[%s180 + $0x8] sm:$0xff] %v183
                %v185 = vld [vmem:[%s179 + $0x20] sm:$0xff]
                %186 = vst [vmem:[%s180 + $0x10] sm:$0xff] %v185
                %v187 = vld [vmem:[%s179 + $0x30] sm:$0xff]
                %188 = vst [vmem:[%s180 + $0x18] sm:$0xff] %v187
                %v189 = vld [vmem:[%s179 + $0x40] sm:$0xff]
                %190 = vst [vmem:[%s180 + $0x20] sm:$0xff] %v189
                %v191 = vld [vmem:[%s179 + $0x50] sm:$0xff]
                %192 = vst [vmem:[%s180 + $0x28] sm:$0xff] %v191
                %v193 = vld [vmem:[%s179 + $0x60] sm:$0xff]
                %194 = vst [vmem:[%s180 + $0x30] sm:$0xff] %v193
                %v195 = vld [vmem:[%s179 + $0x70] sm:$0xff]
                %196 = vst [vmem:[%s180 + $0x38] sm:$0xff] %v195
                %v197 = vld [vmem:[%s179 + $0x80] sm:$0xff]
                %198 = vst [vmem:[%s180 + $0x40] sm:$0xff] %v197
                %v199 = vld [vmem:[%s179 + $0x90] sm:$0xff]
                %200 = vst [vmem:[%s180 + $0x48] sm:$0xff] %v199
                %v201 = vld [vmem:[%s179 + $0xa0] sm:$0xff]
                %202 = vst [vmem:[%s180 + $0x50] sm:$0xff] %v201
                %v203 = vld [vmem:[%s179 + $0xb0] sm:$0xff]
                %204 = vst [vmem:[%s180 + $0x58] sm:$0xff] %v203
                %v205 = vld [vmem:[%s179 + $0xc0] sm:$0xff]
                %206 = vst [vmem:[%s180 + $0x60] sm:$0xff] %v205
                %v207 = vld [vmem:[%s179 + $0xd0] sm:$0xff]
                %208 = vst [vmem:[%s180 + $0x68] sm:$0xff] %v207
                %v209 = vld [vmem:[%s179 + $0xe0] sm:$0xff]
                %210 = vst [vmem:[%s180 + $0x70] sm:$0xff] %v209
                %v211 = vld [vmem:[%s179 + $0xf0] sm:$0xff]
                %212 = vst [vmem:[%s180 + $0x78] sm:$0xff] %v211
                %v213 = vld [vmem:[%s179 + $0x100] sm:$0xff]
                %214 = vst [vmem:[%s180 + $0x80] sm:$0xff] %v213
                %v215 = vld [vmem:[%s179 + $0x110] sm:$0xff]
                %216 = vst [vmem:[%s180 + $0x88] sm:$0xff] %v215
                %v217 = vld [vmem:[%s179 + $0x120] sm:$0xff]
                %218 = vst [vmem:[%s180 + $0x90] sm:$0xff] %v217
                %v219 = vld [vmem:[%s179 + $0x130] sm:$0xff]
                %220 = vst [vmem:[%s180 + $0x98] sm:$0xff] %v219
                %v221 = vld [vmem:[%s179 + $0x140] sm:$0xff]
                %222 = vst [vmem:[%s180 + $0xa0] sm:$0xff] %v221
                %v223 = vld [vmem:[%s179 + $0x150] sm:$0xff]
                %224 = vst [vmem:[%s180 + $0xa8] sm:$0xff] %v223
                %v225 = vld [vmem:[%s179 + $0x160] sm:$0xff]
                %226 = vst [vmem:[%s180 + $0xb0] sm:$0xff] %v225
                %v227 = vld [vmem:[%s179 + $0x170] sm:$0xff]
                %228 = vst [vmem:[%s180 + $0xb8] sm:$0xff] %v227
                %v229 = vld [vmem:[%s179 + $0x180] sm:$0xff]
                %230 = vst [vmem:[%s180 + $0xc0] sm:$0xff] %v229
                %v231 = vld [vmem:[%s179 + $0x190] sm:$0xff]
                %232 = vst [vmem:[%s180 + $0xc8] sm:$0xff] %v231
                %v233 = vld [vmem:[%s179 + $0x1a0] sm:$0xff]
                %234 = vst [vmem:[%s180 + $0xd0] sm:$0xff] %v233
                %v235 = vld [vmem:[%s179 + $0x1b0] sm:$0xff]
                %236 = vst [vmem:[%s180 + $0xd8] sm:$0xff] %v235
                %v237 = vld [vmem:[%s179 + $0x1c0] sm:$0xff]
                %238 = vst [vmem:[%s180 + $0xe0] sm:$0xff] %v237
                %v239 = vld [vmem:[%s179 + $0x1d0] sm:$0xff]
                %240 = vst [vmem:[%s180 + $0xe8] sm:$0xff] %v239
                %v241 = vld [vmem:[%s179 + $0x1e0] sm:$0xff]
                %242 = vst [vmem:[%s180 + $0xf0] sm:$0xff] %v241
                %v243 = vld [vmem:[%s179 + $0x1f0] sm:$0xff]
                %244 = vst [vmem:[%s180 + $0xf8] sm:$0xff] %v243
              $region41: #{_lambda_.5} parent=35 // loop_footer
                %s178 = sadd.s32 1, %s174
              $region42: #{_lambda_.5} parent=35 // loop_footer_branch
                %173 = sbr.rel target = $region38
              $region43: #{_lambda_.5} parent=35 // loop_exit
                _
            $region36: #{_lambda_.5} parent=27 // pred_fallthru
              _
          $region28: #{_lambda_.5} parent=23 // pred_fallthru
            _
          %321 = vnop
        $region24: #{_lambda_.5} parent=19 // pred_fallthru
          _
        // Predicated region
        $region59: #{_lambda_.5} parent=19 // pred_check
          %p322 = pneg %p93
        $region60: #{_lambda_.5} parent=19 // pred_check_branch
          %324 = sbr.rel (%p322) target = $region62
        $region61: #{_lambda_.5} parent=19 // pred_region
          %s325 = smul.u32 2, %s17
          %p326 = scmp.lt.s32.totalorder %s325, 3
          %s327 = scalar_select %p326, %s325, 3
          %s328 = scalar_lea.vmem %s2, %s327
          %s329 = smul.u32 2, %s17
        $region62: #{_lambda_.5} parent=19 // pred_fallthru
          _
      $region20: #{_lambda_.5} parent=5 // pred_fallthru
        _
      %p330 = scmp.le.s32.totalorder 1, %s9
      %p331 = scmp.lt.s32.totalorder %s9, 3
      %p332 = pnand %p330, %p331
      %p333 = pneg %p332
      // Predicated region
      $region63: #{_lambda_.5} parent=5 // pred_check
        _
      $region64: #{_lambda_.5} parent=5 // pred_check_branch
        %335 = sbr.rel (%p332) target = $region66
      $region65: #{_lambda_.5} parent=5 // pred_region
        %s336 = ssub.s32 %s9, 1
        %s337 = sand.u32 %s60, 1
        %s338 = sand.u32 %s60, 1
        %s339 = smul.addr %s338, 256
        %s340 = scalar_lea.vmem [#allocation2], %s339
        // Predicated region
        $region67: #{_lambda_.5} parent=65 // pred_check
          %p341 = pneg %p73
        $region68: #{_lambda_.5} parent=65 // pred_check_branch
          %343 = sbr.rel (%p341) target = $region70
        $region69: #{_lambda_.5} parent=65 // pred_region
          _
        $region70: #{_lambda_.5} parent=65 // pred_fallthru
          _
        %s344 = smul.u32 16, %s18
        %p345 = scmp.lt.s32.totalorder %s344, 15
        %s346 = scalar_select %p345, %s344, 15
        %s347 = smul.addr %s346, 2
        %s348 = smul.addr %s347, 4
        %s349 = scalar_lea.vmem %s0, %s348
        %p350 = pneg %p47
        %p351 = pneg %p44
        %s352 = sand.u32 %s60, 1
        %s353 = sand.u32 %s60, 1
        %s354 = smul.addr %s353, 256
        %s355 = scalar_lea.vmem [#allocation2], %s354
        %p356 = pneg %p73
        %p357 = pneg %p70
        %s358 = smul.u32 2, %s19
        %p359 = scmp.lt.s32.totalorder %s358, 3
        %s360 = scalar_select %p359, %s358, 3
        %s361 = scalar_lea.vmem %s2, %s360
        %p362 = pneg %p99
        %p363 = pneg %p96
        %p364 = pneg %p127
        %p365 = pneg %p124
        %s366 = sand.u32 %s114, 1
        %s367 = sand.u32 %s114, 1
        %s368 = smul.addr %s367, 128
        %s369 = scalar_lea.vmem [#allocation3], %s368
        %s370 = smul.u32 16, %s18
        %p371 = scmp.lt.s32.totalorder %s370, 15
        %s372 = scalar_select %p371, %s370, 15
        %s373 = smul.addr %s372, 2
        %s374 = smul.addr %s373, 4
        %s375 = scalar_lea.vmem %s0, %s374
        %s376 = smul.u32 16, %s18
        %s377 = smul.u32 2, %s19
        %s378 = smul.u32 2, %s19
        %p379 = scmp.lt.s32.totalorder %s378, 3
        %s380 = scalar_select %p379, %s378, 3
        %s381 = scalar_lea.vmem %s2, %s380
        %s382 = smul.u32 2, %s19
        %s383 = smul.u32 16, %s18
        %s384 = smul.u32 2, %s19
        %v385 = vld [vmem:[%s375] sm:$0xff]
        %v386 = vld [vmem:[%s375 + $0x8] sm:$0xff]
        %v387 = vld [vmem:[%s375 + $0x10] sm:$0xff]
        %v388 = vld [vmem:[%s375 + $0x18] sm:$0xff]
        %v389 = vld [vmem:[%s375 + $0x20] sm:$0xff]
        %v390 = vld [vmem:[%s375 + $0x28] sm:$0xff]
        %v391 = vld [vmem:[%s375 + $0x30] sm:$0xff]
        %v392 = vld [vmem:[%s375 + $0x38] sm:$0xff]
        %v393 = vld [vmem:[%s375 + $0x40] sm:$0xff]
        %v394 = vld [vmem:[%s375 + $0x48] sm:$0xff]
        %v395 = vld [vmem:[%s375 + $0x50] sm:$0xff]
        %v396 = vld [vmem:[%s375 + $0x58] sm:$0xff]
        %v397 = vld [vmem:[%s375 + $0x60] sm:$0xff]
        %v398 = vld [vmem:[%s375 + $0x68] sm:$0xff]
        %v399 = vld [vmem:[%s375 + $0x70] sm:$0xff]
        %v400 = vld [vmem:[%s375 + $0x78] sm:$0xff]
        %v401 = vld [vmem:[%s340] sm:$0xff]
        %v402 = vld [vmem:[%s340 + $0x8] sm:$0xff]
        %v403 = vld [vmem:[%s340 + $0x10] sm:$0xff]
        %v404 = vld [vmem:[%s340 + $0x18] sm:$0xff]
        %v405 = vld [vmem:[%s340 + $0x20] sm:$0xff]
        %v406 = vld [vmem:[%s340 + $0x28] sm:$0xff]
        %v407 = vld [vmem:[%s340 + $0x30] sm:$0xff]
        %v408 = vld [vmem:[%s340 + $0x38] sm:$0xff]
        %v409 = vld [vmem:[%s340 + $0x40] sm:$0xff]
        %v410 = vld [vmem:[%s340 + $0x48] sm:$0xff]
        %v411 = vld [vmem:[%s340 + $0x50] sm:$0xff]
        %v412 = vld [vmem:[%s340 + $0x58] sm:$0xff]
        %v413 = vld [vmem:[%s340 + $0x60] sm:$0xff]
        %v414 = vld [vmem:[%s340 + $0x68] sm:$0xff]
        %v415 = vld [vmem:[%s340 + $0x70] sm:$0xff]
        %v416 = vld [vmem:[%s340 + $0x78] sm:$0xff]
        %v417 = vld [vmem:[%s340 + $0x80] sm:$0xff]
        %v418 = vld [vmem:[%s340 + $0x88] sm:$0xff]
        %v419 = vld [vmem:[%s340 + $0x90] sm:$0xff]
        %v420 = vld [vmem:[%s340 + $0x98] sm:$0xff]
        %v421 = vld [vmem:[%s340 + $0xa0] sm:$0xff]
        %v422 = vld [vmem:[%s340 + $0xa8] sm:$0xff]
        %v423 = vld [vmem:[%s340 + $0xb0] sm:$0xff]
        %v424 = vld [vmem:[%s340 + $0xb8] sm:$0xff]
        %v425 = vld [vmem:[%s340 + $0xc0] sm:$0xff]
        %v426 = vld [vmem:[%s340 + $0xc8] sm:$0xff]
        %v427 = vld [vmem:[%s340 + $0xd0] sm:$0xff]
        %v428 = vld [vmem:[%s340 + $0xd8] sm:$0xff]
        %v429 = vld [vmem:[%s340 + $0xe0] sm:$0xff]
        %v430 = vld [vmem:[%s340 + $0xe8] sm:$0xff]
        %v431 = vld [vmem:[%s340 + $0xf0] sm:$0xff]
        %v432 = vld [vmem:[%s340 + $0xf8] sm:$0xff]
        %v433 = vld [vmem:[%s381] sm:$0x3]
        %v435 = vlaneseq
        %v436 = vshrl.u32 %v435, 7
        %v437 = vsub.s32 0, %v436
        %v438 = vrot.slane %v433, %v437
        %v439 = vlaneseq
        %v440 = vshrl.u32 %v439, 7
        %v441 = vsub.s32 1, %v440
        %v442 = vrot.slane %v433, %v441
        %v461 = vunpack.c.l.b16 %v385
        %v462 = vunpack.c.h.b16 %v385
        %v463 = vunpack.c.l.b16 %v386
        %v464 = vunpack.c.h.b16 %v386
        %v465 = vunpack.c.l.b16 %v387
        %v466 = vunpack.c.h.b16 %v387
        %v467 = vunpack.c.l.b16 %v388
        %v468 = vunpack.c.h.b16 %v388
        %v469 = vunpack.c.l.b16 %v389
        %v470 = vunpack.c.h.b16 %v389
        %v471 = vunpack.c.l.b16 %v390
        %v472 = vunpack.c.h.b16 %v390
        %v473 = vunpack.c.l.b16 %v391
        %v474 = vunpack.c.h.b16 %v391
        %v475 = vunpack.c.l.b16 %v392
        %v476 = vunpack.c.h.b16 %v392
        %v477 = vunpack.c.l.b16 %v393
        %v478 = vunpack.c.h.b16 %v393
        %v479 = vunpack.c.l.b16 %v394
        %v480 = vunpack.c.h.b16 %v394
        %v481 = vunpack.c.l.b16 %v395
        %v482 = vunpack.c.h.b16 %v395
        %v483 = vunpack.c.l.b16 %v396
        %v484 = vunpack.c.h.b16 %v396
        %v485 = vunpack.c.l.b16 %v397
        %v486 = vunpack.c.h.b16 %v397
        %v487 = vunpack.c.l.b16 %v398
        %v488 = vunpack.c.h.b16 %v398
        %v489 = vunpack.c.l.b16 %v399
        %v490 = vunpack.c.h.b16 %v399
        %v491 = vunpack.c.l.b16 %v400
        %v492 = vunpack.c.h.b16 %v400
        %v493 = vpack.c.b16 %v463, %v461
        %v494 = vpack.c.b16 %v464, %v462
        %v495 = vpack.c.b16 %v467, %v465
        %v496 = vpack.c.b16 %v468, %v466
        %v497 = vpack.c.b16 %v471, %v469
        %v498 = vpack.c.b16 %v472, %v470
        %v499 = vpack.c.b16 %v475, %v473
        %v500 = vpack.c.b16 %v476, %v474
        %v501 = vpack.c.b16 %v479, %v477
        %v502 = vpack.c.b16 %v480, %v478
        %v503 = vpack.c.b16 %v483, %v481
        %v504 = vpack.c.b16 %v484, %v482
        %v505 = vpack.c.b16 %v487, %v485
        %v506 = vpack.c.b16 %v488, %v486
        %v507 = vpack.c.b16 %v491, %v489
        %v508 = vpack.c.b16 %v492, %v490
        %v557 = vunpack.c.l.b16 %v401
        %v558 = vunpack.c.h.b16 %v401
        %v559 = vunpack.c.l.b16 %v402
        %v560 = vunpack.c.h.b16 %v402
        %v561 = vunpack.c.l.b16 %v403
        %v562 = vunpack.c.h.b16 %v403
        %v563 = vunpack.c.l.b16 %v404
        %v564 = vunpack.c.h.b16 %v404
        %v565 = vunpack.c.l.b16 %v405
        %v566 = vunpack.c.h.b16 %v405
        %v567 = vunpack.c.l.b16 %v406
        %v568 = vunpack.c.h.b16 %v406
        %v569 = vunpack.c.l.b16 %v407
        %v570 = vunpack.c.h.b16 %v407
        %v571 = vunpack.c.l.b16 %v408
        %v572 = vunpack.c.h.b16 %v408
        %v573 = vunpack.c.l.b16 %v409
        %v574 = vunpack.c.h.b16 %v409
        %v575 = vunpack.c.l.b16 %v410
        %v576 = vunpack.c.h.b16 %v410
        %v577 = vunpack.c.l.b16 %v411
        %v578 = vunpack.c.h.b16 %v411
        %v579 = vunpack.c.l.b16 %v412
        %v580 = vunpack.c.h.b16 %v412
        %v581 = vunpack.c.l.b16 %v413
        %v582 = vunpack.c.h.b16 %v413
        %v583 = vunpack.c.l.b16 %v414
        %v584 = vunpack.c.h.b16 %v414
        %v585 = vunpack.c.l.b16 %v415
        %v586 = vunpack.c.h.b16 %v415
        %v587 = vunpack.c.l.b16 %v416
        %v588 = vunpack.c.h.b16 %v416
        %v589 = vunpack.c.l.b16 %v417
        %v590 = vunpack.c.h.b16 %v417
        %v591 = vunpack.c.l.b16 %v418
        %v592 = vunpack.c.h.b16 %v418
        %v593 = vunpack.c.l.b16 %v419
        %v594 = vunpack.c.h.b16 %v419
        %v595 = vunpack.c.l.b16 %v420
        %v596 = vunpack.c.h.b16 %v420
        %v597 = vunpack.c.l.b16 %v421
        %v598 = vunpack.c.h.b16 %v421
        %v599 = vunpack.c.l.b16 %v422
        %v600 = vunpack.c.h.b16 %v422
        %v601 = vunpack.c.l.b16 %v423
        %v602 = vunpack.c.h.b16 %v423
        %v603 = vunpack.c.l.b16 %v424
        %v604 = vunpack.c.h.b16 %v424
        %v605 = vunpack.c.l.b16 %v425
        %v606 = vunpack.c.h.b16 %v425
        %v607 = vunpack.c.l.b16 %v426
        %v608 = vunpack.c.h.b16 %v426
        %v609 = vunpack.c.l.b16 %v427
        %v610 = vunpack.c.h.b16 %v427
        %v611 = vunpack.c.l.b16 %v428
        %v612 = vunpack.c.h.b16 %v428
        %v613 = vunpack.c.l.b16 %v429
        %v614 = vunpack.c.h.b16 %v429
        %v615 = vunpack.c.l.b16 %v430
        %v616 = vunpack.c.h.b16 %v430
        %v617 = vunpack.c.l.b16 %v431
        %v618 = vunpack.c.h.b16 %v431
        %v619 = vunpack.c.l.b16 %v432
        %v620 = vunpack.c.h.b16 %v432
        %v621 = vpack.c.b16 %v559, %v557
        %v622 = vpack.c.b16 %v560, %v558
        %v623 = vpack.c.b16 %v563, %v561
        %v624 = vpack.c.b16 %v564, %v562
        %v625 = vpack.c.b16 %v567, %v565
        %v626 = vpack.c.b16 %v568, %v566
        %v627 = vpack.c.b16 %v571, %v569
        %v628 = vpack.c.b16 %v572, %v570
        %v629 = vpack.c.b16 %v575, %v573
        %v630 = vpack.c.b16 %v576, %v574
        %v631 = vpack.c.b16 %v579, %v577
        %v632 = vpack.c.b16 %v580, %v578
        %v633 = vpack.c.b16 %v583, %v581
        %v634 = vpack.c.b16 %v584, %v582
        %v635 = vpack.c.b16 %v587, %v585
        %v636 = vpack.c.b16 %v588, %v586
        %v637 = vpack.c.b16 %v591, %v589
        %v638 = vpack.c.b16 %v592, %v590
        %v639 = vpack.c.b16 %v595, %v593
        %v640 = vpack.c.b16 %v596, %v594
        %v641 = vpack.c.b16 %v599, %v597
        %v642 = vpack.c.b16 %v600, %v598
        %v643 = vpack.c.b16 %v603, %v601
        %v644 = vpack.c.b16 %v604, %v602
        %v645 = vpack.c.b16 %v607, %v605
        %v646 = vpack.c.b16 %v608, %v606
        %v647 = vpack.c.b16 %v611, %v609
        %v648 = vpack.c.b16 %v612, %v610
        %v649 = vpack.c.b16 %v615, %v613
        %v650 = vpack.c.b16 %v616, %v614
        %v651 = vpack.c.b16 %v619, %v617
        %v652 = vpack.c.b16 %v620, %v618
        %685 = vmatprep.subr.bf16.mxu0 %v622
        %686 = vmatpush1.bf16.msra.mxu0 %v621
        %687 = vmatprep.subr.bf16.mxu0 %v624
        %688 = vmatpush1.bf16.msra.mxu0 %v623
        %689 = vmatprep.subr.bf16.mxu0 %v626
        %690 = vmatpush1.bf16.msra.mxu0 %v625
        %691 = vmatprep.subr.bf16.mxu0 %v628
        %692 = vmatpush1.bf16.msra.mxu0 %v627
        %693 = vmatprep.subr.bf16.mxu0 %v630
        %694 = vmatpush1.bf16.msra.mxu0 %v629
        %695 = vmatprep.subr.bf16.mxu0 %v632
        %696 = vmatpush1.bf16.msra.mxu0 %v631
        %697 = vmatprep.subr.bf16.mxu0 %v634
        %698 = vmatpush1.bf16.msra.mxu0 %v633
        %699 = vmatprep.subr.bf16.mxu0 %v636
        %700 = vmatpush1.bf16.msra.mxu0 %v635
        %701 = vmatprep.subr.bf16.mxu0 %v638
        %702 = vmatpush1.bf16.msra.mxu0 %v637
        %703 = vmatprep.subr.bf16.mxu0 %v640
        %704 = vmatpush1.bf16.msra.mxu0 %v639
        %705 = vmatprep.subr.bf16.mxu0 %v642
        %706 = vmatpush1.bf16.msra.mxu0 %v641
        %707 = vmatprep.subr.bf16.mxu0 %v644
        %708 = vmatpush1.bf16.msra.mxu0 %v643
        %709 = vmatprep.subr.bf16.mxu0 %v646
        %710 = vmatpush1.bf16.msra.mxu0 %v645
        %711 = vmatprep.subr.bf16.mxu0 %v648
        %712 = vmatpush1.bf16.msra.mxu0 %v647
        %713 = vmatprep.subr.bf16.mxu0 %v650
        %714 = vmatpush1.bf16.msra.mxu0 %v649
        %715 = vmatprep.subr.bf16.mxu0 %v652
        %716 = vmatpush1.bf16.msra.mxu0 %v651
        %717 = vmatprep.mubr.bf16.mxu0 %v494
        %718 = vmatmul.mubr.bf16.gmra.mrb[0].mxu0 %v493
        %v719 = vpop.f32.mrb[0].mxu0
        %v720 = vadd.f32 %v438, %v719
        %v721 = vpop.f32.mrb[0].mxu0
        %v722 = vadd.f32 %v442, %v721
        %v723 = vpop.f32.mrb[0].mxu0
        %v724 = vadd.f32 %v438, %v723
        %v725 = vpop.f32.mrb[0].mxu0
        %v726 = vadd.f32 %v442, %v725
        %727 = vmatprep.mubr.bf16.mxu0 %v496
        %728 = vmatmul.mubr.bf16.gmra.mrb[0].mxu0 %v495
        %v729 = vpop.f32.mrb[0].mxu0
        %v730 = vadd.f32 %v438, %v729
        %v731 = vpop.f32.mrb[0].mxu0
        %v732 = vadd.f32 %v442, %v731
        %v733 = vpop.f32.mrb[0].mxu0
        %v734 = vadd.f32 %v438, %v733
        %v735 = vpop.f32.mrb[0].mxu0
        %v736 = vadd.f32 %v442, %v735
        %737 = vmatprep.mubr.bf16.mxu0 %v498
        %738 = vmatmul.mubr.bf16.gmra.mrb[0].mxu0 %v497
        %v739 = vpop.f32.mrb[0].mxu0
        %v740 = vadd.f32 %v438, %v739
        %v741 = vpop.f32.mrb[0].mxu0
        %v742 = vadd.f32 %v442, %v741
        %v743 = vpop.f32.mrb[0].mxu0
        %v744 = vadd.f32 %v438, %v743
        %v745 = vpop.f32.mrb[0].mxu0
        %v746 = vadd.f32 %v442, %v745
        %747 = vmatprep.mubr.bf16.mxu0 %v500
        %748 = vmatmul.mubr.bf16.gmra.mrb[0].mxu0 %v499
        %v749 = vpop.f32.mrb[0].mxu0
        %v750 = vadd.f32 %v438, %v749
        %v751 = vpop.f32.mrb[0].mxu0
        %v752 = vadd.f32 %v442, %v751
        %v753 = vpop.f32.mrb[0].mxu0
        %v754 = vadd.f32 %v438, %v753
        %v755 = vpop.f32.mrb[0].mxu0
        %v756 = vadd.f32 %v442, %v755
        %757 = vmatprep.mubr.bf16.mxu0 %v502
        %758 = vmatmul.mubr.bf16.gmra.mrb[0].mxu0 %v501
        %v759 = vpop.f32.mrb[0].mxu0
        %v760 = vadd.f32 %v438, %v759
        %v761 = vpop.f32.mrb[0].mxu0
        %v762 = vadd.f32 %v442, %v761
        %v763 = vpop.f32.mrb[0].mxu0
        %v764 = vadd.f32 %v438, %v763
        %v765 = vpop.f32.mrb[0].mxu0
        %v766 = vadd.f32 %v442, %v765
        %767 = vmatprep.mubr.bf16.mxu0 %v504
        %768 = vmatmul.mubr.bf16.gmra.mrb[0].mxu0 %v503
        %v769 = vpop.f32.mrb[0].mxu0
        %v770 = vadd.f32 %v438, %v769
        %v771 = vpop.f32.mrb[0].mxu0
        %v772 = vadd.f32 %v442, %v771
        %v773 = vpop.f32.mrb[0].mxu0
        %v774 = vadd.f32 %v438, %v773
        %v775 = vpop.f32.mrb[0].mxu0
        %v776 = vadd.f32 %v442, %v775
        %777 = vmatprep.mubr.bf16.mxu0 %v506
        %778 = vmatmul.mubr.bf16.gmra.mrb[0].mxu0 %v505
        %v779 = vpop.f32.mrb[0].mxu0
        %v780 = vadd.f32 %v438, %v779
        %v781 = vpop.f32.mrb[0].mxu0
        %v782 = vadd.f32 %v442, %v781
        %v783 = vpop.f32.mrb[0].mxu0
        %v784 = vadd.f32 %v438, %v783
        %v785 = vpop.f32.mrb[0].mxu0
        %v786 = vadd.f32 %v442, %v785
        %787 = vmatprep.mubr.bf16.mxu0 %v508
        %788 = vmatmul.mubr.bf16.gmra.mrb[0].mxu0 %v507
        %v789 = vpop.f32.mrb[0].mxu0
        %v790 = vadd.f32 %v438, %v789
        %v791 = vpop.f32.mrb[0].mxu0
        %v792 = vadd.f32 %v442, %v791
        %v793 = vpop.f32.mrb[0].mxu0
        %v794 = vadd.f32 %v438, %v793
        %v795 = vpop.f32.mrb[0].mxu0
        %v796 = vadd.f32 %v442, %v795
        %797 = vdwg.mxu0
        %v798 = vpack.c.bf16 %v724, %v720
        %v799 = vpack.c.bf16 %v726, %v722
        %v800 = vpack.c.bf16 %v734, %v730
        %v801 = vpack.c.bf16 %v736, %v732
        %v802 = vpack.c.bf16 %v744, %v740
        %v803 = vpack.c.bf16 %v746, %v742
        %v804 = vpack.c.bf16 %v754, %v750
        %v805 = vpack.c.bf16 %v756, %v752
        %v806 = vpack.c.bf16 %v764, %v760
        %v807 = vpack.c.bf16 %v766, %v762
        %v808 = vpack.c.bf16 %v774, %v770
        %v809 = vpack.c.bf16 %v776, %v772
        %v810 = vpack.c.bf16 %v784, %v780
        %v811 = vpack.c.bf16 %v786, %v782
        %v812 = vpack.c.bf16 %v794, %v790
        %v813 = vpack.c.bf16 %v796, %v792
        %v830 = vunpack.c.l.b16 %v798
        %v831 = vunpack.c.l.b16 %v799
        %v832 = vunpack.c.h.b16 %v798
        %v833 = vunpack.c.h.b16 %v799
        %v834 = vunpack.c.l.b16 %v800
        %v835 = vunpack.c.l.b16 %v801
        %v836 = vunpack.c.h.b16 %v800
        %v837 = vunpack.c.h.b16 %v801
        %v838 = vunpack.c.l.b16 %v802
        %v839 = vunpack.c.l.b16 %v803
        %v840 = vunpack.c.h.b16 %v802
        %v841 = vunpack.c.h.b16 %v803
        %v842 = vunpack.c.l.b16 %v804
        %v843 = vunpack.c.l.b16 %v805
        %v844 = vunpack.c.h.b16 %v804
        %v845 = vunpack.c.h.b16 %v805
        %v846 = vunpack.c.l.b16 %v806
        %v847 = vunpack.c.l.b16 %v807
        %v848 = vunpack.c.h.b16 %v806
        %v849 = vunpack.c.h.b16 %v807
        %v850 = vunpack.c.l.b16 %v808
        %v851 = vunpack.c.l.b16 %v809
        %v852 = vunpack.c.h.b16 %v808
        %v853 = vunpack.c.h.b16 %v809
        %v854 = vunpack.c.l.b16 %v810
        %v855 = vunpack.c.l.b16 %v811
        %v856 = vunpack.c.h.b16 %v810
        %v857 = vunpack.c.h.b16 %v811
        %v858 = vunpack.c.l.b16 %v812
        %v859 = vunpack.c.l.b16 %v813
        %v860 = vunpack.c.h.b16 %v812
        %v861 = vunpack.c.h.b16 %v813
        %v862 = vpack.c.b16 %v831, %v830
        %v863 = vpack.c.b16 %v833, %v832
        %v864 = vpack.c.b16 %v835, %v834
        %v865 = vpack.c.b16 %v837, %v836
        %v866 = vpack.c.b16 %v839, %v838
        %v867 = vpack.c.b16 %v841, %v840
        %v868 = vpack.c.b16 %v843, %v842
        %v869 = vpack.c.b16 %v845, %v844
        %v870 = vpack.c.b16 %v847, %v846
        %v871 = vpack.c.b16 %v849, %v848
        %v872 = vpack.c.b16 %v851, %v850
        %v873 = vpack.c.b16 %v853, %v852
        %v874 = vpack.c.b16 %v855, %v854
        %v875 = vpack.c.b16 %v857, %v856
        %v876 = vpack.c.b16 %v859, %v858
        %v877 = vpack.c.b16 %v861, %v860
        %894 = vst [vmem:[%s369] sm:$0xff] %v862
        %895 = vst [vmem:[%s369 + $0x8] sm:$0xff] %v863
        %896 = vst [vmem:[%s369 + $0x10] sm:$0xff] %v864
        %897 = vst [vmem:[%s369 + $0x18] sm:$0xff] %v865
        %898 = vst [vmem:[%s369 + $0x20] sm:$0xff] %v866
        %899 = vst [vmem:[%s369 + $0x28] sm:$0xff] %v867
        %900 = vst [vmem:[%s369 + $0x30] sm:$0xff] %v868
        %901 = vst [vmem:[%s369 + $0x38] sm:$0xff] %v869
        %902 = vst [vmem:[%s369 + $0x40] sm:$0xff] %v870
        %903 = vst [vmem:[%s369 + $0x48] sm:$0xff] %v871
        %904 = vst [vmem:[%s369 + $0x50] sm:$0xff] %v872
        %905 = vst [vmem:[%s369 + $0x58] sm:$0xff] %v873
        %906 = vst [vmem:[%s369 + $0x60] sm:$0xff] %v874
        %907 = vst [vmem:[%s369 + $0x68] sm:$0xff] %v875
        %908 = vst [vmem:[%s369 + $0x70] sm:$0xff] %v876
        %909 = vst [vmem:[%s369 + $0x78] sm:$0xff] %v877
        %s910 = sand.u32 %s114, 1
        %s911 = sand.u32 %s114, 1
        %s912 = smul.addr %s911, 128
        %s913 = scalar_lea.vmem [#allocation3], %s912
        // Predicated region
        $region71: #{_lambda_.5} parent=65 // pred_check
          %p914 = pneg %p124
        $region72: #{_lambda_.5} parent=65 // pred_check_branch
          %916 = sbr.rel (%p914) target = $region74
        $region73: #{_lambda_.5} parent=65 // pred_region
          %s917 = smul.u32 16, %s18
          %s918 = smul.u32 2, %s19
          %s919 = smul.addr %s917, 4
          %s920 = sadd.s32 %s918, %s919
          %s921 = smul.addr %s920, 4
          %s922 = scalar_lea.vmem %s3, %s921
          // Predicated region
          $region75: #{_lambda_.5} parent=73 // pred_check
            _
          $region76: #{_lambda_.5} parent=73 // pred_check_branch
            %924 = sbr.rel (0) target = $region78
          $region77: #{_lambda_.5} parent=73 // pred_region
            // Predicated region
            $region79: #{_lambda_.5} parent=77 // pred_check
              _
            $region80: #{_lambda_.5} parent=77 // pred_check_branch
              %926 = sbr.rel (0) target = $region82
            $region81: #{_lambda_.5} parent=77 // pred_region
              // Predicated region
              $region94: #{_lambda_.5} parent=81 // pred_check
                _
              $region95: #{_lambda_.5} parent=81 // pred_check_branch
                %971 = sbr.rel (0) target = $region97
              $region96: #{_lambda_.5} parent=81 // pred_region
                loop: start=0, step=1, limit=1
                $region98: #{_lambda_.5} parent=96 // loop_pre_header
                  _
                $region99: #{_lambda_.5} parent=96 // loop_header
                  %s973 = sphi 0, %s977
                  %p974 = scmp.ge.s32.totalorder %s973, 1
                  %s978 = sphi %s913, %s913
                  %s979 = sphi %s922, %s922
                $region100: #{_lambda_.5} parent=96 // loop_header_branch
                  %976 = sbr.rel (%p974) target = $region104
                $region101: #{_lambda_.5} parent=96 // loop_body
                  %v980 = vld [vmem:[%s978] sm:$0xff]
                  %981 = vst [vmem:[%s979] sm:$0xff] %v980
                  %v982 = vld [vmem:[%s978 + $0x8] sm:$0xff]
                  %983 = vst [vmem:[%s979 + $0x10] sm:$0xff] %v982
                  %v984 = vld [vmem:[%s978 + $0x10] sm:$0xff]
                  %985 = vst [vmem:[%s979 + $0x20] sm:$0xff] %v984
                  %v986 = vld [vmem:[%s978 + $0x18] sm:$0xff]
                  %987 = vst [vmem:[%s979 + $0x30] sm:$0xff] %v986
                  %v988 = vld [vmem:[%s978 + $0x20] sm:$0xff]
                  %989 = vst [vmem:[%s979 + $0x40] sm:$0xff] %v988
                  %v990 = vld [vmem:[%s978 + $0x28] sm:$0xff]
                  %991 = vst [vmem:[%s979 + $0x50] sm:$0xff] %v990
                  %v992 = vld [vmem:[%s978 + $0x30] sm:$0xff]
                  %993 = vst [vmem:[%s979 + $0x60] sm:$0xff] %v992
                  %v994 = vld [vmem:[%s978 + $0x38] sm:$0xff]
                  %995 = vst [vmem:[%s979 + $0x70] sm:$0xff] %v994
                  %v996 = vld [vmem:[%s978 + $0x40] sm:$0xff]
                  %997 = vst [vmem:[%s979 + $0x80] sm:$0xff] %v996
                  %v998 = vld [vmem:[%s978 + $0x48] sm:$0xff]
                  %999 = vst [vmem:[%s979 + $0x90] sm:$0xff] %v998
                  %v1000 = vld [vmem:[%s978 + $0x50] sm:$0xff]
                  %1001 = vst [vmem:[%s979 + $0xa0] sm:$0xff] %v1000
                  %v1002 = vld [vmem:[%s978 + $0x58] sm:$0xff]
                  %1003 = vst [vmem:[%s979 + $0xb0] sm:$0xff] %v1002
                  %v1004 = vld [vmem:[%s978 + $0x60] sm:$0xff]
                  %1005 = vst [vmem:[%s979 + $0xc0] sm:$0xff] %v1004
                  %v1006 = vld [vmem:[%s978 + $0x68] sm:$0xff]
                  %1007 = vst [vmem:[%s979 + $0xd0] sm:$0xff] %v1006
                  %v1008 = vld [vmem:[%s978 + $0x70] sm:$0xff]
                  %1009 = vst [vmem:[%s979 + $0xe0] sm:$0xff] %v1008
                  %v1010 = vld [vmem:[%s978 + $0x78] sm:$0xff]
                  %1011 = vst [vmem:[%s979 + $0xf0] sm:$0xff] %v1010
                $region102: #{_lambda_.5} parent=96 // loop_footer
                  %s977 = sadd.s32 1, %s973
                $region103: #{_lambda_.5} parent=96 // loop_footer_branch
                  %972 = sbr.rel target = $region99
                $region104: #{_lambda_.5} parent=96 // loop_exit
                  _
              $region97: #{_lambda_.5} parent=81 // pred_fallthru
                _
              // Predicated region
              $region105: #{_lambda_.5} parent=81 // pred_check
                _
              $region106: #{_lambda_.5} parent=81 // pred_check_branch
                %1013 = sbr.rel target = $region108
              $region107: #{_lambda_.5} parent=81 // pred_region
                _
              $region108: #{_lambda_.5} parent=81 // pred_fallthru
                _
            $region82: #{_lambda_.5} parent=77 // pred_fallthru
              _
            // Predicated region
            $region83: #{_lambda_.5} parent=77 // pred_check
              _
            $region84: #{_lambda_.5} parent=77 // pred_check_branch
              %928 = sbr.rel target = $region86
            $region85: #{_lambda_.5} parent=77 // pred_region
              loop: start=0, step=1, limit=1
              $region87: #{_lambda_.5} parent=85 // loop_pre_header
                _
              $region88: #{_lambda_.5} parent=85 // loop_header
                %s931 = sphi 0, %s935
                %p932 = scmp.ge.s32.totalorder %s931, 1
                %s936 = sphi %s913, %s913
                %s937 = sphi %s922, %s922
              $region89: #{_lambda_.5} parent=85 // loop_header_branch
                %934 = sbr.rel (%p932) target = $region93
              $region90: #{_lambda_.5} parent=85 // loop_body
                %v938 = vld [vmem:[%s936] sm:$0xff]
                %939 = vst [vmem:[%s937] sm:$0xff] %v938
                %v940 = vld [vmem:[%s936 + $0x8] sm:$0xff]
                %941 = vst [vmem:[%s937 + $0x10] sm:$0xff] %v940
                %v942 = vld [vmem:[%s936 + $0x10] sm:$0xff]
                %943 = vst [vmem:[%s937 + $0x20] sm:$0xff] %v942
                %v944 = vld [vmem:[%s936 + $0x18] sm:$0xff]
                %945 = vst [vmem:[%s937 + $0x30] sm:$0xff] %v944
                %v946 = vld [vmem:[%s936 + $0x20] sm:$0xff]
                %947 = vst [vmem:[%s937 + $0x40] sm:$0xff] %v946
                %v948 = vld [vmem:[%s936 + $0x28] sm:$0xff]
                %949 = vst [vmem:[%s937 + $0x50] sm:$0xff] %v948
                %v950 = vld [vmem:[%s936 + $0x30] sm:$0xff]
                %951 = vst [vmem:[%s937 + $0x60] sm:$0xff] %v950
                %v952 = vld [vmem:[%s936 + $0x38] sm:$0xff]
                %953 = vst [vmem:[%s937 + $0x70] sm:$0xff] %v952
                %v954 = vld [vmem:[%s936 + $0x40] sm:$0xff]
                %955 = vst [vmem:[%s937 + $0x80] sm:$0xff] %v954
                %v956 = vld [vmem:[%s936 + $0x48] sm:$0xff]
                %957 = vst [vmem:[%s937 + $0x90] sm:$0xff] %v956
                %v958 = vld [vmem:[%s936 + $0x50] sm:$0xff]
                %959 = vst [vmem:[%s937 + $0xa0] sm:$0xff] %v958
                %v960 = vld [vmem:[%s936 + $0x58] sm:$0xff]
                %961 = vst [vmem:[%s937 + $0xb0] sm:$0xff] %v960
                %v962 = vld [vmem:[%s936 + $0x60] sm:$0xff]
                %963 = vst [vmem:[%s937 + $0xc0] sm:$0xff] %v962
                %v964 = vld [vmem:[%s936 + $0x68] sm:$0xff]
                %965 = vst [vmem:[%s937 + $0xd0] sm:$0xff] %v964
                %v966 = vld [vmem:[%s936 + $0x70] sm:$0xff]
                %967 = vst [vmem:[%s937 + $0xe0] sm:$0xff] %v966
                %v968 = vld [vmem:[%s936 + $0x78] sm:$0xff]
                %969 = vst [vmem:[%s937 + $0xf0] sm:$0xff] %v968
              $region91: #{_lambda_.5} parent=85 // loop_footer
                %s935 = sadd.s32 1, %s931
              $region92: #{_lambda_.5} parent=85 // loop_footer_branch
                %930 = sbr.rel target = $region88
              $region93: #{_lambda_.5} parent=85 // loop_exit
                _
            $region86: #{_lambda_.5} parent=77 // pred_fallthru
              _
          $region78: #{_lambda_.5} parent=73 // pred_fallthru
            _
          %1014 = vnop
        $region74: #{_lambda_.5} parent=65 // pred_fallthru
          _
      $region66: #{_lambda_.5} parent=5 // pred_fallthru
        _
      %p1015 = scmp.le.s32.totalorder 2, %s9
      // Predicated region
      $region109: #{_lambda_.5} parent=5 // pred_check
        %p1016 = pneg %p1015
      $region110: #{_lambda_.5} parent=5 // pred_check_branch
        %1018 = sbr.rel (%p1016) target = $region112
      $region111: #{_lambda_.5} parent=5 // pred_region
        %s1019 = ssub.s32 %s9, 2
        // Predicated region
        $region113: #{_lambda_.5} parent=111 // pred_check
          %p1020 = pneg %p130
        $region114: #{_lambda_.5} parent=111 // pred_check_branch
          %1022 = sbr.rel (%p1020) target = $region116
        $region115: #{_lambda_.5} parent=111 // pred_region
          %s1023 = sand.u32 %s115, 1
          %s1024 = sand.u32 %s115, 1
          %s1025 = smul.addr %s1024, 128
          %s1026 = scalar_lea.vmem [#allocation3], %s1025
        $region116: #{_lambda_.5} parent=111 // pred_fallthru
          _
      $region112: #{_lambda_.5} parent=5 // pred_fallthru
        _
    $region6: #{_lambda_.5} parent=1 // loop_footer
      %s13 = sadd.s32 1, %s9
    $region7: #{_lambda_.5} parent=1 // loop_footer_branch
      %8 = sbr.rel target = $region3
    $region8: #{_lambda_.5} parent=1 // loop_exit
      _

// kernel: _lambda_.7
$region0: #{_lambda_.7}
  #allocation0 [shape = 'u32[]', space=smem, size = 0x4, offset = 0x4, fixed_abs, tag = 'smem constant byte address 0x4 - core index']
  #allocation1 [shape = 'u32[144,128]{1,0:T(1,128)}', space=vmem, size = 0x12000, scoped, tag = 'internal scratch']
  %s0 = inlined_call_operand.vmem [shape: bf16[128,128], index: 0, kind: input, shape index: {}]
  %s1 = inlined_call_operand.vmem [shape: bf16[128,512], index: 1, kind: input, shape index: {}]
  %s2 = inlined_call_operand.vmem [shape: f32[1,512], index: 2, kind: input, shape index: {}]
  %s3 = inlined_call_operand.vmem [shape: bf16[128,512], index: 3, kind: output, shape index: {}]
  %s4 = sld [smem:[#allocation0]]
  $region117: #{_lambda_.7} parent=0
    _
  %s6 = ssub.s32 1, %s4
  %s7 = scalar_select 0, %s6, %s4
  $region1: #{_lambda_.7} parent=0
    #allocation2 [shape = 'u8[131072]{0}', space=vmem, size = 0x20000, scoped, tag = 'input window, operand 1']
    #allocation3 [shape = 'u8[131072]{0}', space=vmem, size = 0x20000, scoped, tag = 'output window, operand 0']
    loop: start=0, step=1, limit=4
    $region2: #{_lambda_.7} parent=1 // loop_pre_header
      _
    $region3: #{_lambda_.7} parent=1 // loop_header
      %s9 = sphi 0, %s13
      %p10 = scmp.ge.s32.totalorder %s9, 4
      %s16 = sphi 0, %s28
      %s17 = sphi 0, %s24
      %s18 = sphi 0, %s16
      %s19 = sphi 0, %s17
      %s20 = sphi 0, %s18
      %s21 = sphi 0, %s19
      %s31 = sphi 0, %s33
      %s34 = sphi 0, %s31
      %s35 = sphi 0, %s34
      %s51 = sphi 0, %s35
      %s57 = sphi 0, %s59
      %s60 = sphi 0, %s57
      %s61 = sphi 0, %s60
      %s77 = sphi 0, %s61
      %s83 = sphi 0, %s85
      %s86 = sphi 0, %s83
      %s87 = sphi 0, %s86
      %s103 = sphi 0, %s87
      %s111 = sphi 0, %s113
      %s114 = sphi 0, %s111
      %s115 = sphi 0, %s114
      %s131 = sphi 0, %s115
    $region4: #{_lambda_.7} parent=1 // loop_header_branch
      %12 = sbr.rel (%p10) target = $region8
    $region5: #{_lambda_.7} parent=1 // loop_body
      %s14 = ssub.s32 %s9, 1
      %s15 = ssub.s32 %s9, 2
      %s22 = sadd.s32 1, %s17
      %p23 = scmp.ge.s32.totalorder %s22, 2
      %s24 = scalar_select %p23, 0, %s22
      %s25 = sadd.s32 1, %s16
      %s26 = scalar_select %p23, %s25, %s16
      %p27 = scmp.ge.s32.totalorder %s26, 1
      %s28 = scalar_select %p27, 0, %s26
      %s29 = ssub.s32 %s16, %s28
      %p30 = scmp.eq.s32.totalorder %s29, 0
      %s32 = sadd.s32 %s31, 1
      %s33 = scalar_select %p30, %s31, %s32
      %p36 = pneg %p30
      %p37 = scmp.eq.s32.totalorder %s9, 1
      %p38 = por %p36, %p37
      %p39 = scmp.ne.s32.totalorder %s31, %s34
      %p40 = scmp.eq.s32.totalorder %s9, 0
      %p41 = por %p39, %p40
      %p42 = scmp.ne.s32.totalorder %s31, %s34
      %p43 = scmp.eq.s32.totalorder %s14, 1
      %p44 = por %p42, %p43
      %p45 = scmp.ne.s32.totalorder %s34, %s35
      %p46 = scmp.eq.s32.totalorder %s14, 0
      %p47 = por %p45, %p46
      %p48 = scmp.ne.s32.totalorder %s34, %s35
      %p49 = scmp.eq.s32.totalorder %s15, 1
      %p50 = por %p48, %p49
      %p52 = scmp.ne.s32.totalorder %s35, %s51
      %p53 = scmp.eq.s32.totalorder %s15, 0
      %p54 = por %p52, %p53
      %s55 = ssub.s32 %s17, %s24
      %p56 = scmp.eq.s32.totalorder %s55, 0
      %s58 = sadd.s32 %s57, 1
      %s59 = scalar_select %p56, %s57, %s58
      %p62 = pneg %p56
      %p63 = scmp.eq.s32.totalorder %s9, 1
      %p64 = por %p62, %p63
      %p65 = scmp.ne.s32.totalorder %s57, %s60
      %p66 = scmp.eq.s32.totalorder %s9, 0
      %p67 = por %p65, %p66
      %p68 = scmp.ne.s32.totalorder %s57, %s60
      %p69 = scmp.eq.s32.totalorder %s14, 1
      %p70 = por %p68, %p69
      %p71 = scmp.ne.s32.totalorder %s60, %s61
      %p72 = scmp.eq.s32.totalorder %s14, 0
      %p73 = por %p71, %p72
      %p74 = scmp.ne.s32.totalorder %s60, %s61
      %p75 = scmp.eq.s32.totalorder %s15, 1
      %p76 = por %p74, %p75
      %p78 = scmp.ne.s32.totalorder %s61, %s77
      %p79 = scmp.eq.s32.totalorder %s15, 0
      %p80 = por %p78, %p79
      %s81 = ssub.s32 %s17, %s24
      %p82 = scmp.eq.s32.totalorder %s81, 0
      %s84 = sadd.s32 %s83, 1
      %s85 = scalar_select %p82, %s83, %s84
      %p88 = pneg %p82
      %p89 = scmp.eq.s32.totalorder %s9, 1
      %p90 = por %p88, %p89
      %p91 = scmp.ne.s32.totalorder %s83, %s86
      %p92 = scmp.eq.s32.totalorder %s9, 0
      %p93 = por %p91, %p92
      %p94 = scmp.ne.s32.totalorder %s83, %s86
      %p95 = scmp.eq.s32.totalorder %s14, 1
      %p96 = por %p94, %p95
      %p97 = scmp.ne.s32.totalorder %s86, %s87
      %p98 = scmp.eq.s32.totalorder %s14, 0
      %p99 = por %p97, %p98
      %p100 = scmp.ne.s32.totalorder %s86, %s87
      %p101 = scmp.eq.s32.totalorder %s15, 1
      %p102 = por %p100, %p101
      %p104 = scmp.ne.s32.totalorder %s87, %s103
      %p105 = scmp.eq.s32.totalorder %s15, 0
      %p106 = por %p104, %p105
      %s107 = ssub.s32 %s16, %s28
      %s108 = ssub.s32 %s17, %s24
      %s109 = sor.u32 %s107, %s108
      %p110 = scmp.eq.s32.totalorder %s109, 0
      %s112 = sadd.s32 %s111, 1
      %s113 = scalar_select %p110, %s111, %s112
      %p116 = pneg %p110
      %p117 = scmp.eq.s32.totalorder %s9, 1
      %p118 = por %p116, %p117
      %p119 = scmp.ne.s32.totalorder %s111, %s114
      %p120 = scmp.eq.s32.totalorder %s9, 0
      %p121 = por %p119, %p120
      %p122 = scmp.ne.s32.totalorder %s111, %s114
      %p123 = scmp.eq.s32.totalorder %s14, 1
      %p124 = por %p122, %p123
      %p125 = scmp.ne.s32.totalorder %s114, %s115
      %p126 = scmp.eq.s32.totalorder %s14, 0
      %p127 = por %p125, %p126
      %p128 = scmp.ne.s32.totalorder %s114, %s115
      %p129 = scmp.eq.s32.totalorder %s15, 1
      %p130 = por %p128, %p129
      %p132 = scmp.ne.s32.totalorder %s115, %s131
      %p133 = scmp.eq.s32.totalorder %s15, 0
      %p134 = por %p132, %p133
      %p135 = scmp.le.s32.totalorder 1, %s9
      %p136 = scmp.lt.s32.totalorder %s9, 3
      %p137 = pnand %p135, %p136
      %p138 = pneg %p137
      // Predicated region
      $region9: #{_lambda_.7} parent=5 // pred_check
        _
      $region10: #{_lambda_.7} parent=5 // pred_check_branch
        %140 = sbr.rel (%p137) target = $region12
      $region11: #{_lambda_.7} parent=5 // pred_region
        %s141 = ssub.s32 %s9, 1
        // Predicated region
        $region13: #{_lambda_.7} parent=11 // pred_check
          %p142 = pneg %p47
        $region14: #{_lambda_.7} parent=11 // pred_check_branch
          %144 = sbr.rel (%p142) target = $region16
        $region15: #{_lambda_.7} parent=11 // pred_region
          %s145 = smul.u32 16, %s18
          %p146 = scmp.lt.s32.totalorder %s145, 15
          %s147 = scalar_select %p146, %s145, 15
          %s148 = smul.addr %s147, 4
          %s149 = scalar_lea.vmem %s0, %s148
          %s150 = smul.u32 16, %s18
        $region16: #{_lambda_.7} parent=11 // pred_fallthru
          _
      $region12: #{_lambda_.7} parent=5 // pred_fallthru
        _
      %p151 = scmp.lt.s32.totalorder %s9, 2
      // Predicated region
      $region17: #{_lambda_.7} parent=5 // pred_check
        %p152 = pneg %p151
      $region18: #{_lambda_.7} parent=5 // pred_check_branch
        %154 = sbr.rel (%p152) target = $region20
      $region19: #{_lambda_.7} parent=5 // pred_region
        // Predicated region
        $region21: #{_lambda_.7} parent=19 // pred_check
          %p155 = pneg %p67
        $region22: #{_lambda_.7} parent=19 // pred_check_branch
          %157 = sbr.rel (%p155) target = $region24
        $region23: #{_lambda_.7} parent=19 // pred_region
          %s158 = sand.u32 %s57, 1
          %s159 = sand.u32 %s57, 1
          %s160 = smul.addr %s159, 128
          %s161 = scalar_lea.vmem [#allocation2], %s160
          %s162 = smul.u32 2, %s17
          %s163 = smul.addr %s162, 4
          %s164 = scalar_lea.vmem %s1, %s163
          // Predicated region
          $region25: #{_lambda_.7} parent=23 // pred_check
            _
          $region26: #{_lambda_.7} parent=23 // pred_check_branch
            %166 = sbr.rel (0) target = $region28
          $region27: #{_lambda_.7} parent=23 // pred_region
            // Predicated region
            $region29: #{_lambda_.7} parent=27 // pred_check
              _
            $region30: #{_lambda_.7} parent=27 // pred_check_branch
              %168 = sbr.rel (0) target = $region32
            $region31: #{_lambda_.7} parent=27 // pred_region
              // Predicated region
              $region44: #{_lambda_.7} parent=31 // pred_check
                _
              $region45: #{_lambda_.7} parent=31 // pred_check_branch
                %213 = sbr.rel (0) target = $region47
              $region46: #{_lambda_.7} parent=31 // pred_region
                loop: start=0, step=1, limit=1
                $region48: #{_lambda_.7} parent=46 // loop_pre_header
                  _
                $region49: #{_lambda_.7} parent=46 // loop_header
                  %s215 = sphi 0, %s219
                  %p216 = scmp.ge.s32.totalorder %s215, 1
                  %s220 = sphi %s164, %s164
                  %s221 = sphi %s161, %s161
                $region50: #{_lambda_.7} parent=46 // loop_header_branch
                  %218 = sbr.rel (%p216) target = $region54
                $region51: #{_lambda_.7} parent=46 // loop_body
                  %v222 = vld [vmem:[%s220] sm:$0xff]
                  %223 = vst [vmem:[%s221] sm:$0xff] %v222
                  %v224 = vld [vmem:[%s220 + $0x10] sm:$0xff]
                  %225 = vst [vmem:[%s221 + $0x8] sm:$0xff] %v224
                  %v226 = vld [vmem:[%s220 + $0x20] sm:$0xff]
                  %227 = vst [vmem:[%s221 + $0x10] sm:$0xff] %v226
                  %v228 = vld [vmem:[%s220 + $0x30] sm:$0xff]
                  %229 = vst [vmem:[%s221 + $0x18] sm:$0xff] %v228
                  %v230 = vld [vmem:[%s220 + $0x40] sm:$0xff]
                  %231 = vst [vmem:[%s221 + $0x20] sm:$0xff] %v230
                  %v232 = vld [vmem:[%s220 + $0x50] sm:$0xff]
                  %233 = vst [vmem:[%s221 + $0x28] sm:$0xff] %v232
                  %v234 = vld [vmem:[%s220 + $0x60] sm:$0xff]
                  %235 = vst [vmem:[%s221 + $0x30] sm:$0xff] %v234
                  %v236 = vld [vmem:[%s220 + $0x70] sm:$0xff]
                  %237 = vst [vmem:[%s221 + $0x38] sm:$0xff] %v236
                  %v238 = vld [vmem:[%s220 + $0x80] sm:$0xff]
                  %239 = vst [vmem:[%s221 + $0x40] sm:$0xff] %v238
                  %v240 = vld [vmem:[%s220 + $0x90] sm:$0xff]
                  %241 = vst [vmem:[%s221 + $0x48] sm:$0xff] %v240
                  %v242 = vld [vmem:[%s220 + $0xa0] sm:$0xff]
                  %243 = vst [vmem:[%s221 + $0x50] sm:$0xff] %v242
                  %v244 = vld [vmem:[%s220 + $0xb0] sm:$0xff]
                  %245 = vst [vmem:[%s221 + $0x58] sm:$0xff] %v244
                  %v246 = vld [vmem:[%s220 + $0xc0] sm:$0xff]
                  %247 = vst [vmem:[%s221 + $0x60] sm:$0xff] %v246
                  %v248 = vld [vmem:[%s220 + $0xd0] sm:$0xff]
                  %249 = vst [vmem:[%s221 + $0x68] sm:$0xff] %v248
                  %v250 = vld [vmem:[%s220 + $0xe0] sm:$0xff]
                  %251 = vst [vmem:[%s221 + $0x70] sm:$0xff] %v250
                  %v252 = vld [vmem:[%s220 + $0xf0] sm:$0xff]
                  %253 = vst [vmem:[%s221 + $0x78] sm:$0xff] %v252
                $region52: #{_lambda_.7} parent=46 // loop_footer
                  %s219 = sadd.s32 1, %s215
                $region53: #{_lambda_.7} parent=46 // loop_footer_branch
                  %214 = sbr.rel target = $region49
                $region54: #{_lambda_.7} parent=46 // loop_exit
                  _
              $region47: #{_lambda_.7} parent=31 // pred_fallthru
                _
              // Predicated region
              $region55: #{_lambda_.7} parent=31 // pred_check
                _
              $region56: #{_lambda_.7} parent=31 // pred_check_branch
                %255 = sbr.rel target = $region58
              $region57: #{_lambda_.7} parent=31 // pred_region
                _
              $region58: #{_lambda_.7} parent=31 // pred_fallthru
                _
            $region32: #{_lambda_.7} parent=27 // pred_fallthru
              _
            // Predicated region
            $region33: #{_lambda_.7} parent=27 // pred_check
              _
            $region34: #{_lambda_.7} parent=27 // pred_check_branch
              %170 = sbr.rel target = $region36
            $region35: #{_lambda_.7} parent=27 // pred_region
              loop: start=0, step=1, limit=1
              $region37: #{_lambda_.7} parent=35 // loop_pre_header
                _
              $region38: #{_lambda_.7} parent=35 // loop_header
                %s173 = sphi 0, %s177
                %p174 = scmp.ge.s32.totalorder %s173, 1
                %s178 = sphi %s164, %s164
                %s179 = sphi %s161, %s161
              $region39: #{_lambda_.7} parent=35 // loop_header_branch
                %176 = sbr.rel (%p174) target = $region43
              $region40: #{_lambda_.7} parent=35 // loop_body
                %v180 = vld [vmem:[%s178] sm:$0xff]
                %181 = vst [vmem:[%s179] sm:$0xff] %v180
                %v182 = vld [vmem:[%s178 + $0x10] sm:$0xff]
                %183 = vst [vmem:[%s179 + $0x8] sm:$0xff] %v182
                %v184 = vld [vmem:[%s178 + $0x20] sm:$0xff]
                %185 = vst [vmem:[%s179 + $0x10] sm:$0xff] %v184
                %v186 = vld [vmem:[%s178 + $0x30] sm:$0xff]
                %187 = vst [vmem:[%s179 + $0x18] sm:$0xff] %v186
                %v188 = vld [vmem:[%s178 + $0x40] sm:$0xff]
                %189 = vst [vmem:[%s179 + $0x20] sm:$0xff] %v188
                %v190 = vld [vmem:[%s178 + $0x50] sm:$0xff]
                %191 = vst [vmem:[%s179 + $0x28] sm:$0xff] %v190
                %v192 = vld [vmem:[%s178 + $0x60] sm:$0xff]
                %193 = vst [vmem:[%s179 + $0x30] sm:$0xff] %v192
                %v194 = vld [vmem:[%s178 + $0x70] sm:$0xff]
                %195 = vst [vmem:[%s179 + $0x38] sm:$0xff] %v194
                %v196 = vld [vmem:[%s178 + $0x80] sm:$0xff]
                %197 = vst [vmem:[%s179 + $0x40] sm:$0xff] %v196
                %v198 = vld [vmem:[%s178 + $0x90] sm:$0xff]
                %199 = vst [vmem:[%s179 + $0x48] sm:$0xff] %v198
                %v200 = vld [vmem:[%s178 + $0xa0] sm:$0xff]
                %201 = vst [vmem:[%s179 + $0x50] sm:$0xff] %v200
                %v202 = vld [vmem:[%s178 + $0xb0] sm:$0xff]
                %203 = vst [vmem:[%s179 + $0x58] sm:$0xff] %v202
                %v204 = vld [vmem:[%s178 + $0xc0] sm:$0xff]
                %205 = vst [vmem:[%s179 + $0x60] sm:$0xff] %v204
                %v206 = vld [vmem:[%s178 + $0xd0] sm:$0xff]
                %207 = vst [vmem:[%s179 + $0x68] sm:$0xff] %v206
                %v208 = vld [vmem:[%s178 + $0xe0] sm:$0xff]
                %209 = vst [vmem:[%s179 + $0x70] sm:$0xff] %v208
                %v210 = vld [vmem:[%s178 + $0xf0] sm:$0xff]
                %211 = vst [vmem:[%s179 + $0x78] sm:$0xff] %v210
              $region41: #{_lambda_.7} parent=35 // loop_footer
                %s177 = sadd.s32 1, %s173
              $region42: #{_lambda_.7} parent=35 // loop_footer_branch
                %172 = sbr.rel target = $region38
              $region43: #{_lambda_.7} parent=35 // loop_exit
                _
            $region36: #{_lambda_.7} parent=27 // pred_fallthru
              _
          $region28: #{_lambda_.7} parent=23 // pred_fallthru
            _
          %256 = vnop
        $region24: #{_lambda_.7} parent=19 // pred_fallthru
          _
        // Predicated region
        $region59: #{_lambda_.7} parent=19 // pred_check
          %p257 = pneg %p93
        $region60: #{_lambda_.7} parent=19 // pred_check_branch
          %259 = sbr.rel (%p257) target = $region62
        $region61: #{_lambda_.7} parent=19 // pred_region
          %s260 = smul.u32 2, %s17
          %p261 = scmp.lt.s32.totalorder %s260, 3
          %s262 = scalar_select %p261, %s260, 3
          %s263 = scalar_lea.vmem %s2, %s262
          %s264 = smul.u32 2, %s17
        $region62: #{_lambda_.7} parent=19 // pred_fallthru
          _
      $region20: #{_lambda_.7} parent=5 // pred_fallthru
        _
      %p265 = scmp.le.s32.totalorder 1, %s9
      %p266 = scmp.lt.s32.totalorder %s9, 3
      %p267 = pnand %p265, %p266
      %p268 = pneg %p267
      // Predicated region
      $region63: #{_lambda_.7} parent=5 // pred_check
        _
      $region64: #{_lambda_.7} parent=5 // pred_check_branch
        %270 = sbr.rel (%p267) target = $region66
      $region65: #{_lambda_.7} parent=5 // pred_region
        %s271 = ssub.s32 %s9, 1
        %s272 = sand.u32 %s60, 1
        %s273 = sand.u32 %s60, 1
        %s274 = smul.addr %s273, 128
        %s275 = scalar_lea.vmem [#allocation2], %s274
        // Predicated region
        $region67: #{_lambda_.7} parent=65 // pred_check
          %p276 = pneg %p73
        $region68: #{_lambda_.7} parent=65 // pred_check_branch
          %278 = sbr.rel (%p276) target = $region70
        $region69: #{_lambda_.7} parent=65 // pred_region
          _
        $region70: #{_lambda_.7} parent=65 // pred_fallthru
          _
        %s279 = smul.u32 16, %s18
        %p280 = scmp.lt.s32.totalorder %s279, 15
        %s281 = scalar_select %p280, %s279, 15
        %s282 = smul.addr %s281, 4
        %s283 = scalar_lea.vmem %s0, %s282
        %p284 = pneg %p47
        %p285 = pneg %p44
        %s286 = sand.u32 %s60, 1
        %s287 = sand.u32 %s60, 1
        %s288 = smul.addr %s287, 128
        %s289 = scalar_lea.vmem [#allocation2], %s288
        %p290 = pneg %p73
        %p291 = pneg %p70
        %s292 = smul.u32 2, %s19
        %p293 = scmp.lt.s32.totalorder %s292, 3
        %s294 = scalar_select %p293, %s292, 3
        %s295 = scalar_lea.vmem %s2, %s294
        %p296 = pneg %p99
        %p297 = pneg %p96
        %p298 = pneg %p127
        %p299 = pneg %p124
        %s300 = sand.u32 %s114, 1
        %s301 = sand.u32 %s114, 1
        %s302 = smul.addr %s301, 128
        %s303 = scalar_lea.vmem [#allocation3], %s302
        %s304 = smul.u32 16, %s18
        %p305 = scmp.lt.s32.totalorder %s304, 15
        %s306 = scalar_select %p305, %s304, 15
        %s307 = smul.addr %s306, 4
        %s308 = scalar_lea.vmem %s0, %s307
        %s309 = smul.u32 16, %s18
        %s310 = smul.u32 2, %s19
        %s311 = smul.u32 2, %s19
        %p312 = scmp.lt.s32.totalorder %s311, 3
        %s313 = scalar_select %p312, %s311, 3
        %s314 = scalar_lea.vmem %s2, %s313
        %s315 = smul.u32 2, %s19
        %s316 = smul.u32 16, %s18
        %s317 = smul.u32 2, %s19
        %v319 = vld [vmem:[%s308] sm:$0xf]
        %v320 = vld [vmem:[%s308 + $0x4] sm:$0xf]
        %v321 = vld [vmem:[%s308 + $0x8] sm:$0xf]
        %v322 = vld [vmem:[%s308 + $0xc] sm:$0xf]
        %v323 = vld [vmem:[%s308 + $0x10] sm:$0xf]
        %v324 = vld [vmem:[%s308 + $0x14] sm:$0xf]
        %v325 = vld [vmem:[%s308 + $0x18] sm:$0xf]
        %v326 = vld [vmem:[%s308 + $0x1c] sm:$0xf]
        %v327 = vld [vmem:[%s308 + $0x20] sm:$0xf]
        %v328 = vld [vmem:[%s308 + $0x24] sm:$0xf]
        %v329 = vld [vmem:[%s308 + $0x28] sm:$0xf]
        %v330 = vld [vmem:[%s308 + $0x2c] sm:$0xf]
        %v331 = vld [vmem:[%s308 + $0x30] sm:$0xf]
        %v332 = vld [vmem:[%s308 + $0x34] sm:$0xf]
        %v333 = vld [vmem:[%s308 + $0x38] sm:$0xf]
        %v334 = vld [vmem:[%s308 + $0x3c] sm:$0xf]
        %v335 = vld [vmem:[%s275] sm:$0xff]
        %v336 = vld [vmem:[%s275 + $0x8] sm:$0xff]
        %v337 = vld [vmem:[%s275 + $0x10] sm:$0xff]
        %v338 = vld [vmem:[%s275 + $0x18] sm:$0xff]
        %v339 = vld [vmem:[%s275 + $0x20] sm:$0xff]
        %v340 = vld [vmem:[%s275 + $0x28] sm:$0xff]
        %v341 = vld [vmem:[%s275 + $0x30] sm:$0xff]
        %v342 = vld [vmem:[%s275 + $0x38] sm:$0xff]
        %v343 = vld [vmem:[%s275 + $0x40] sm:$0xff]
        %v344 = vld [vmem:[%s275 + $0x48] sm:$0xff]
        %v345 = vld [vmem:[%s275 + $0x50] sm:$0xff]
        %v346 = vld [vmem:[%s275 + $0x58] sm:$0xff]
        %v347 = vld [vmem:[%s275 + $0x60] sm:$0xff]
        %v348 = vld [vmem:[%s275 + $0x68] sm:$0xff]
        %v349 = vld [vmem:[%s275 + $0x70] sm:$0xff]
        %v350 = vld [vmem:[%s275 + $0x78] sm:$0xff]
        %v351 = vld [vmem:[%s314] sm:$0x3]
        %v353 = vlaneseq
        %v354 = vshrl.u32 %v353, 7
        %v355 = vsub.s32 0, %v354
        %v356 = vrot.slane %v351, %v355
        %v357 = vlaneseq
        %v358 = vshrl.u32 %v357, 7
        %v359 = vsub.s32 1, %v358
        %v360 = vrot.slane %v351, %v359
        %v379 = vunpack.c.l.b16 %v319
        %v380 = vunpack.c.l.b16 %v320
        %v381 = vunpack.c.l.b16 %v321
        %v382 = vunpack.c.l.b16 %v322
        %v383 = vunpack.c.l.b16 %v323
        %v384 = vunpack.c.l.b16 %v324
        %v385 = vunpack.c.l.b16 %v325
        %v386 = vunpack.c.l.b16 %v326
        %v387 = vunpack.c.l.b16 %v327
        %v388 = vunpack.c.l.b16 %v328
        %v389 = vunpack.c.l.b16 %v329
        %v390 = vunpack.c.l.b16 %v330
        %v391 = vunpack.c.l.b16 %v331
        %v392 = vunpack.c.l.b16 %v332
        %v393 = vunpack.c.l.b16 %v333
        %v394 = vunpack.c.l.b16 %v334
        %v395 = vpack.c.b16 %v380, %v379
        %v396 = vpack.c.b16 %v382, %v381
        %v397 = vpack.c.b16 %v384, %v383
        %v398 = vpack.c.b16 %v386, %v385
        %v399 = vpack.c.b16 %v388, %v387
        %v400 = vpack.c.b16 %v390, %v389
        %v401 = vpack.c.b16 %v392, %v391
        %v402 = vpack.c.b16 %v394, %v393
        %v427 = vunpack.c.l.b16 %v335
        %v428 = vunpack.c.h.b16 %v335
        %v429 = vunpack.c.l.b16 %v336
        %v430 = vunpack.c.h.b16 %v336
        %v431 = vunpack.c.l.b16 %v337
        %v432 = vunpack.c.h.b16 %v337
        %v433 = vunpack.c.l.b16 %v338
        %v434 = vunpack.c.h.b16 %v338
        %v435 = vunpack.c.l.b16 %v339
        %v436 = vunpack.c.h.b16 %v339
        %v437 = vunpack.c.l.b16 %v340
        %v438 = vunpack.c.h.b16 %v340
        %v439 = vunpack.c.l.b16 %v341
        %v440 = vunpack.c.h.b16 %v341
        %v441 = vunpack.c.l.b16 %v342
        %v442 = vunpack.c.h.b16 %v342
        %v443 = vunpack.c.l.b16 %v343
        %v444 = vunpack.c.h.b16 %v343
        %v445 = vunpack.c.l.b16 %v344
        %v446 = vunpack.c.h.b16 %v344
        %v447 = vunpack.c.l.b16 %v345
        %v448 = vunpack.c.h.b16 %v345
        %v449 = vunpack.c.l.b16 %v346
        %v450 = vunpack.c.h.b16 %v346
        %v451 = vunpack.c.l.b16 %v347
        %v452 = vunpack.c.h.b16 %v347
        %v453 = vunpack.c.l.b16 %v348
        %v454 = vunpack.c.h.b16 %v348
        %v455 = vunpack.c.l.b16 %v349
        %v456 = vunpack.c.h.b16 %v349
        %v457 = vunpack.c.l.b16 %v350
        %v458 = vunpack.c.h.b16 %v350
        %v459 = vpack.c.b16 %v429, %v427
        %v460 = vpack.c.b16 %v430, %v428
        %v461 = vpack.c.b16 %v433, %v431
        %v462 = vpack.c.b16 %v434, %v432
        %v463 = vpack.c.b16 %v437, %v435
        %v464 = vpack.c.b16 %v438, %v436
        %v465 = vpack.c.b16 %v441, %v439
        %v466 = vpack.c.b16 %v442, %v440
        %v467 = vpack.c.b16 %v445, %v443
        %v468 = vpack.c.b16 %v446, %v444
        %v469 = vpack.c.b16 %v449, %v447
        %v470 = vpack.c.b16 %v450, %v448
        %v471 = vpack.c.b16 %v453, %v451
        %v472 = vpack.c.b16 %v454, %v452
        %v473 = vpack.c.b16 %v457, %v455
        %v474 = vpack.c.b16 %v458, %v456
        %491 = vmatprep.subr.bf16.mxu0 %v460
        %492 = vmatpush1.bf16.msra.mxu0 %v459
        %493 = vmatprep.subr.bf16.mxu0 %v462
        %494 = vmatpush1.bf16.msra.mxu0 %v461
        %495 = vmatprep.subr.bf16.mxu0 %v464
        %496 = vmatpush1.bf16.msra.mxu0 %v463
        %497 = vmatprep.subr.bf16.mxu0 %v466
        %498 = vmatpush1.bf16.msra.mxu0 %v465
        %499 = vmatprep.subr.bf16.mxu0 %v468
        %500 = vmatpush1.bf16.msra.mxu0 %v467
        %501 = vmatprep.subr.bf16.mxu0 %v470
        %502 = vmatpush1.bf16.msra.mxu0 %v469
        %503 = vmatprep.subr.bf16.mxu0 %v472
        %504 = vmatpush1.bf16.msra.mxu0 %v471
        %505 = vmatprep.subr.bf16.mxu0 %v474
        %506 = vmatpush1.bf16.msra.mxu0 %v473
        %507 = vmatprep.subr.bf16.mxu0 0
        %508 = vmatpush1.bf16.msra.mxu0 0
        %509 = vmatprep.subr.bf16.mxu0 0
        %510 = vmatpush1.bf16.msra.mxu0 0
        %511 = vmatprep.subr.bf16.mxu0 0
        %512 = vmatpush1.bf16.msra.mxu0 0
        %513 = vmatprep.subr.bf16.mxu0 0
        %514 = vmatpush1.bf16.msra.mxu0 0
        %515 = vmatprep.subr.bf16.mxu0 0
        %516 = vmatpush1.bf16.msra.mxu0 0
        %517 = vmatprep.subr.bf16.mxu0 0
        %518 = vmatpush1.bf16.msra.mxu0 0
        %519 = vmatprep.subr.bf16.mxu0 0
        %520 = vmatpush1.bf16.msra.mxu0 0
        %521 = vmatprep.subr.bf16.mxu0 0
        %522 = vmatpush1.bf16.msra.mxu0 0
        %523 = vmatprep.mubr.bf16.mxu0 0
        %524 = vmatmul.mubr.bf16.gmra.mrb[0].mxu0 %v395
        %v525 = vpop.f32.mrb[0].mxu0
        %v526 = vadd.f32 %v356, %v525
        %v527 = vpop.f32.mrb[0].mxu0
        %v528 = vadd.f32 %v360, %v527
        %v529 = vpop.f32.mrb[0].mxu0
        %v530 = vadd.f32 %v356, %v529
        %v531 = vpop.f32.mrb[0].mxu0
        %v532 = vadd.f32 %v360, %v531
        %533 = vmatprep.mubr.bf16.mxu0 0
        %534 = vmatmul.mubr.bf16.gmra.mrb[0].mxu0 %v396
        %v535 = vpop.f32.mrb[0].mxu0
        %v536 = vadd.f32 %v356, %v535
        %v537 = vpop.f32.mrb[0].mxu0
        %v538 = vadd.f32 %v360, %v537
        %v539 = vpop.f32.mrb[0].mxu0
        %v540 = vadd.f32 %v356, %v539
        %v541 = vpop.f32.mrb[0].mxu0
        %v542 = vadd.f32 %v360, %v541
        %543 = vmatprep.mubr.bf16.mxu0 0
        %544 = vmatmul.mubr.bf16.gmra.mrb[0].mxu0 %v397
        %v545 = vpop.f32.mrb[0].mxu0
        %v546 = vadd.f32 %v356, %v545
        %v547 = vpop.f32.mrb[0].mxu0
        %v548 = vadd.f32 %v360, %v547
        %v549 = vpop.f32.mrb[0].mxu0
        %v550 = vadd.f32 %v356, %v549
        %v551 = vpop.f32.mrb[0].mxu0
        %v552 = vadd.f32 %v360, %v551
        %553 = vmatprep.mubr.bf16.mxu0 0
        %554 = vmatmul.mubr.bf16.gmra.mrb[0].mxu0 %v398
        %v555 = vpop.f32.mrb[0].mxu0
        %v556 = vadd.f32 %v356, %v555
        %v557 = vpop.f32.mrb[0].mxu0
        %v558 = vadd.f32 %v360, %v557
        %v559 = vpop.f32.mrb[0].mxu0
        %v560 = vadd.f32 %v356, %v559
        %v561 = vpop.f32.mrb[0].mxu0
        %v562 = vadd.f32 %v360, %v561
        %563 = vmatprep.mubr.bf16.mxu0 0
        %564 = vmatmul.mubr.bf16.gmra.mrb[0].mxu0 %v399
        %v565 = vpop.f32.mrb[0].mxu0
        %v566 = vadd.f32 %v356, %v565
        %v567 = vpop.f32.mrb[0].mxu0
        %v568 = vadd.f32 %v360, %v567
        %v569 = vpop.f32.mrb[0].mxu0
        %v570 = vadd.f32 %v356, %v569
        %v571 = vpop.f32.mrb[0].mxu0
        %v572 = vadd.f32 %v360, %v571
        %573 = vmatprep.mubr.bf16.mxu0 0
        %574 = vmatmul.mubr.bf16.gmra.mrb[0].mxu0 %v400
        %v575 = vpop.f32.mrb[0].mxu0
        %v576 = vadd.f32 %v356, %v575
        %v577 = vpop.f32.mrb[0].mxu0
        %v578 = vadd.f32 %v360, %v577
        %v579 = vpop.f32.mrb[0].mxu0
        %v580 = vadd.f32 %v356, %v579
        %v581 = vpop.f32.mrb[0].mxu0
        %v582 = vadd.f32 %v360, %v581
        %583 = vmatprep.mubr.bf16.mxu0 0
        %584 = vmatmul.mubr.bf16.gmra.mrb[0].mxu0 %v401
        %v585 = vpop.f32.mrb[0].mxu0
        %v586 = vadd.f32 %v356, %v585
        %v587 = vpop.f32.mrb[0].mxu0
        %v588 = vadd.f32 %v360, %v587
        %v589 = vpop.f32.mrb[0].mxu0
        %v590 = vadd.f32 %v356, %v589
        %v591 = vpop.f32.mrb[0].mxu0
        %v592 = vadd.f32 %v360, %v591
        %593 = vmatprep.mubr.bf16.mxu0 0
        %594 = vmatmul.mubr.bf16.gmra.mrb[0].mxu0 %v402
        %v595 = vpop.f32.mrb[0].mxu0
        %v596 = vadd.f32 %v356, %v595
        %v597 = vpop.f32.mrb[0].mxu0
        %v598 = vadd.f32 %v360, %v597
        %v599 = vpop.f32.mrb[0].mxu0
        %v600 = vadd.f32 %v356, %v599
        %v601 = vpop.f32.mrb[0].mxu0
        %v602 = vadd.f32 %v360, %v601
        %603 = vdwg.mxu0
        %v604 = vpack.c.bf16 %v530, %v526
        %v605 = vpack.c.bf16 %v532, %v528
        %v606 = vpack.c.bf16 %v540, %v536
        %v607 = vpack.c.bf16 %v542, %v538
        %v608 = vpack.c.bf16 %v550, %v546
        %v609 = vpack.c.bf16 %v552, %v548
        %v610 = vpack.c.bf16 %v560, %v556
        %v611 = vpack.c.bf16 %v562, %v558
        %v612 = vpack.c.bf16 %v570, %v566
        %v613 = vpack.c.bf16 %v572, %v568
        %v614 = vpack.c.bf16 %v580, %v576
        %v615 = vpack.c.bf16 %v582, %v578
        %v616 = vpack.c.bf16 %v590, %v586
        %v617 = vpack.c.bf16 %v592, %v588
        %v618 = vpack.c.bf16 %v600, %v596
        %v619 = vpack.c.bf16 %v602, %v598
        %v636 = vunpack.c.l.b16 %v604
        %v637 = vunpack.c.l.b16 %v605
        %v638 = vunpack.c.h.b16 %v604
        %v639 = vunpack.c.h.b16 %v605
        %v640 = vunpack.c.l.b16 %v606
        %v641 = vunpack.c.l.b16 %v607
        %v642 = vunpack.c.h.b16 %v606
        %v643 = vunpack.c.h.b16 %v607
        %v644 = vunpack.c.l.b16 %v608
        %v645 = vunpack.c.l.b16 %v609
        %v646 = vunpack.c.h.b16 %v608
        %v647 = vunpack.c.h.b16 %v609
        %v648 = vunpack.c.l.b16 %v610
        %v649 = vunpack.c.l.b16 %v611
        %v650 = vunpack.c.h.b16 %v610
        %v651 = vunpack.c.h.b16 %v611
        %v652 = vunpack.c.l.b16 %v612
        %v653 = vunpack.c.l.b16 %v613
        %v654 = vunpack.c.h.b16 %v612
        %v655 = vunpack.c.h.b16 %v613
        %v656 = vunpack.c.l.b16 %v614
        %v657 = vunpack.c.l.b16 %v615
        %v658 = vunpack.c.h.b16 %v614
        %v659 = vunpack.c.h.b16 %v615
        %v660 = vunpack.c.l.b16 %v616
        %v661 = vunpack.c.l.b16 %v617
        %v662 = vunpack.c.h.b16 %v616
        %v663 = vunpack.c.h.b16 %v617
        %v664 = vunpack.c.l.b16 %v618
        %v665 = vunpack.c.l.b16 %v619
        %v666 = vunpack.c.h.b16 %v618
        %v667 = vunpack.c.h.b16 %v619
        %v668 = vpack.c.b16 %v637, %v636
        %v669 = vpack.c.b16 %v639, %v638
        %v670 = vpack.c.b16 %v641, %v640
        %v671 = vpack.c.b16 %v643, %v642
        %v672 = vpack.c.b16 %v645, %v644
        %v673 = vpack.c.b16 %v647, %v646
        %v674 = vpack.c.b16 %v649, %v648
        %v675 = vpack.c.b16 %v651, %v650
        %v676 = vpack.c.b16 %v653, %v652
        %v677 = vpack.c.b16 %v655, %v654
        %v678 = vpack.c.b16 %v657, %v656
        %v679 = vpack.c.b16 %v659, %v658
        %v680 = vpack.c.b16 %v661, %v660
        %v681 = vpack.c.b16 %v663, %v662
        %v682 = vpack.c.b16 %v665, %v664
        %v683 = vpack.c.b16 %v667, %v666
        %700 = vst [vmem:[%s303] sm:$0xff] %v668
        %701 = vst [vmem:[%s303 + $0x8] sm:$0xff] %v669
        %702 = vst [vmem:[%s303 + $0x10] sm:$0xff] %v670
        %703 = vst [vmem:[%s303 + $0x18] sm:$0xff] %v671
        %704 = vst [vmem:[%s303 + $0x20] sm:$0xff] %v672
        %705 = vst [vmem:[%s303 + $0x28] sm:$0xff] %v673
        %706 = vst [vmem:[%s303 + $0x30] sm:$0xff] %v674
        %707 = vst [vmem:[%s303 + $0x38] sm:$0xff] %v675
        %708 = vst [vmem:[%s303 + $0x40] sm:$0xff] %v676
        %709 = vst [vmem:[%s303 + $0x48] sm:$0xff] %v677
        %710 = vst [vmem:[%s303 + $0x50] sm:$0xff] %v678
        %711 = vst [vmem:[%s303 + $0x58] sm:$0xff] %v679
        %712 = vst [vmem:[%s303 + $0x60] sm:$0xff] %v680
        %713 = vst [vmem:[%s303 + $0x68] sm:$0xff] %v681
        %714 = vst [vmem:[%s303 + $0x70] sm:$0xff] %v682
        %715 = vst [vmem:[%s303 + $0x78] sm:$0xff] %v683
        %s716 = sand.u32 %s114, 1
        %s717 = sand.u32 %s114, 1
        %s718 = smul.addr %s717, 128
        %s719 = scalar_lea.vmem [#allocation3], %s718
        // Predicated region
        $region71: #{_lambda_.7} parent=65 // pred_check
          %p720 = pneg %p124
        $region72: #{_lambda_.7} parent=65 // pred_check_branch
          %722 = sbr.rel (%p720) target = $region74
        $region73: #{_lambda_.7} parent=65 // pred_region
          %s723 = smul.u32 16, %s18
          %s724 = smul.u32 2, %s19
          %s725 = smul.addr %s723, 4
          %s726 = sadd.s32 %s724, %s725
          %s727 = smul.addr %s726, 4
          %s728 = scalar_lea.vmem %s3, %s727
          // Predicated region
          $region75: #{_lambda_.7} parent=73 // pred_check
            _
          $region76: #{_lambda_.7} parent=73 // pred_check_branch
            %730 = sbr.rel (0) target = $region78
          $region77: #{_lambda_.7} parent=73 // pred_region
            // Predicated region
            $region79: #{_lambda_.7} parent=77 // pred_check
              _
            $region80: #{_lambda_.7} parent=77 // pred_check_branch
              %732 = sbr.rel (0) target = $region82
            $region81: #{_lambda_.7} parent=77 // pred_region
              // Predicated region
              $region94: #{_lambda_.7} parent=81 // pred_check
                _
              $region95: #{_lambda_.7} parent=81 // pred_check_branch
                %777 = sbr.rel (0) target = $region97
              $region96: #{_lambda_.7} parent=81 // pred_region
                loop: start=0, step=1, limit=1
                $region98: #{_lambda_.7} parent=96 // loop_pre_header
                  _
                $region99: #{_lambda_.7} parent=96 // loop_header
                  %s779 = sphi 0, %s783
                  %p780 = scmp.ge.s32.totalorder %s779, 1
                  %s784 = sphi %s719, %s719
                  %s785 = sphi %s728, %s728
                $region100: #{_lambda_.7} parent=96 // loop_header_branch
                  %782 = sbr.rel (%p780) target = $region104
                $region101: #{_lambda_.7} parent=96 // loop_body
                  %v786 = vld [vmem:[%s784] sm:$0xff]
                  %787 = vst [vmem:[%s785] sm:$0xff] %v786
                  %v788 = vld [vmem:[%s784 + $0x8] sm:$0xff]
                  %789 = vst [vmem:[%s785 + $0x10] sm:$0xff] %v788
                  %v790 = vld [vmem:[%s784 + $0x10] sm:$0xff]
                  %791 = vst [vmem:[%s785 + $0x20] sm:$0xff] %v790
                  %v792 = vld [vmem:[%s784 + $0x18] sm:$0xff]
                  %793 = vst [vmem:[%s785 + $0x30] sm:$0xff] %v792
                  %v794 = vld [vmem:[%s784 + $0x20] sm:$0xff]
                  %795 = vst [vmem:[%s785 + $0x40] sm:$0xff] %v794
                  %v796 = vld [vmem:[%s784 + $0x28] sm:$0xff]
                  %797 = vst [vmem:[%s785 + $0x50] sm:$0xff] %v796
                  %v798 = vld [vmem:[%s784 + $0x30] sm:$0xff]
                  %799 = vst [vmem:[%s785 + $0x60] sm:$0xff] %v798
                  %v800 = vld [vmem:[%s784 + $0x38] sm:$0xff]
                  %801 = vst [vmem:[%s785 + $0x70] sm:$0xff] %v800
                  %v802 = vld [vmem:[%s784 + $0x40] sm:$0xff]
                  %803 = vst [vmem:[%s785 + $0x80] sm:$0xff] %v802
                  %v804 = vld [vmem:[%s784 + $0x48] sm:$0xff]
                  %805 = vst [vmem:[%s785 + $0x90] sm:$0xff] %v804
                  %v806 = vld [vmem:[%s784 + $0x50] sm:$0xff]
                  %807 = vst [vmem:[%s785 + $0xa0] sm:$0xff] %v806
                  %v808 = vld [vmem:[%s784 + $0x58] sm:$0xff]
                  %809 = vst [vmem:[%s785 + $0xb0] sm:$0xff] %v808
                  %v810 = vld [vmem:[%s784 + $0x60] sm:$0xff]
                  %811 = vst [vmem:[%s785 + $0xc0] sm:$0xff] %v810
                  %v812 = vld [vmem:[%s784 + $0x68] sm:$0xff]
                  %813 = vst [vmem:[%s785 + $0xd0] sm:$0xff] %v812
                  %v814 = vld [vmem:[%s784 + $0x70] sm:$0xff]
                  %815 = vst [vmem:[%s785 + $0xe0] sm:$0xff] %v814
                  %v816 = vld [vmem:[%s784 + $0x78] sm:$0xff]
                  %817 = vst [vmem:[%s785 + $0xf0] sm:$0xff] %v816
                $region102: #{_lambda_.7} parent=96 // loop_footer
                  %s783 = sadd.s32 1, %s779
                $region103: #{_lambda_.7} parent=96 // loop_footer_branch
                  %778 = sbr.rel target = $region99
                $region104: #{_lambda_.7} parent=96 // loop_exit
                  _
              $region97: #{_lambda_.7} parent=81 // pred_fallthru
                _
              // Predicated region
              $region105: #{_lambda_.7} parent=81 // pred_check
                _
              $region106: #{_lambda_.7} parent=81 // pred_check_branch
                %819 = sbr.rel target = $region108
              $region107: #{_lambda_.7} parent=81 // pred_region
                _
              $region108: #{_lambda_.7} parent=81 // pred_fallthru
                _
            $region82: #{_lambda_.7} parent=77 // pred_fallthru
              _
            // Predicated region
            $region83: #{_lambda_.7} parent=77 // pred_check
              _
            $region84: #{_lambda_.7} parent=77 // pred_check_branch
              %734 = sbr.rel target = $region86
            $region85: #{_lambda_.7} parent=77 // pred_region
              loop: start=0, step=1, limit=1
              $region87: #{_lambda_.7} parent=85 // loop_pre_header
                _
              $region88: #{_lambda_.7} parent=85 // loop_header
                %s737 = sphi 0, %s741
                %p738 = scmp.ge.s32.totalorder %s737, 1
                %s742 = sphi %s719, %s719
                %s743 = sphi %s728, %s728
              $region89: #{_lambda_.7} parent=85 // loop_header_branch
                %740 = sbr.rel (%p738) target = $region93
              $region90: #{_lambda_.7} parent=85 // loop_body
                %v744 = vld [vmem:[%s742] sm:$0xff]
                %745 = vst [vmem:[%s743] sm:$0xff] %v744
                %v746 = vld [vmem:[%s742 + $0x8] sm:$0xff]
                %747 = vst [vmem:[%s743 + $0x10] sm:$0xff] %v746
                %v748 = vld [vmem:[%s742 + $0x10] sm:$0xff]
                %749 = vst [vmem:[%s743 + $0x20] sm:$0xff] %v748
                %v750 = vld [vmem:[%s742 + $0x18] sm:$0xff]
                %751 = vst [vmem:[%s743 + $0x30] sm:$0xff] %v750
                %v752 = vld [vmem:[%s742 + $0x20] sm:$0xff]
                %753 = vst [vmem:[%s743 + $0x40] sm:$0xff] %v752
                %v754 = vld [vmem:[%s742 + $0x28] sm:$0xff]
                %755 = vst [vmem:[%s743 + $0x50] sm:$0xff] %v754
                %v756 = vld [vmem:[%s742 + $0x30] sm:$0xff]
                %757 = vst [vmem:[%s743 + $0x60] sm:$0xff] %v756
                %v758 = vld [vmem:[%s742 + $0x38] sm:$0xff]
                %759 = vst [vmem:[%s743 + $0x70] sm:$0xff] %v758
                %v760 = vld [vmem:[%s742 + $0x40] sm:$0xff]
                %761 = vst [vmem:[%s743 + $0x80] sm:$0xff] %v760
                %v762 = vld [vmem:[%s742 + $0x48] sm:$0xff]
                %763 = vst [vmem:[%s743 + $0x90] sm:$0xff] %v762
                %v764 = vld [vmem:[%s742 + $0x50] sm:$0xff]
                %765 = vst [vmem:[%s743 + $0xa0] sm:$0xff] %v764
                %v766 = vld [vmem:[%s742 + $0x58] sm:$0xff]
                %767 = vst [vmem:[%s743 + $0xb0] sm:$0xff] %v766
                %v768 = vld [vmem:[%s742 + $0x60] sm:$0xff]
                %769 = vst [vmem:[%s743 + $0xc0] sm:$0xff] %v768
                %v770 = vld [vmem:[%s742 + $0x68] sm:$0xff]
                %771 = vst [vmem:[%s743 + $0xd0] sm:$0xff] %v770
                %v772 = vld [vmem:[%s742 + $0x70] sm:$0xff]
                %773 = vst [vmem:[%s743 + $0xe0] sm:$0xff] %v772
                %v774 = vld [vmem:[%s742 + $0x78] sm:$0xff]
                %775 = vst [vmem:[%s743 + $0xf0] sm:$0xff] %v774
              $region91: #{_lambda_.7} parent=85 // loop_footer
                %s741 = sadd.s32 1, %s737
              $region92: #{_lambda_.7} parent=85 // loop_footer_branch
                %736 = sbr.rel target = $region88
              $region93: #{_lambda_.7} parent=85 // loop_exit
                _
            $region86: #{_lambda_.7} parent=77 // pred_fallthru
              _
          $region78: #{_lambda_.7} parent=73 // pred_fallthru
            _
          %820 = vnop
        $region74: #{_lambda_.7} parent=65 // pred_fallthru
          _
      $region66: #{_lambda_.7} parent=5 // pred_fallthru
        _
      %p821 = scmp.le.s32.totalorder 2, %s9
      // Predicated region
      $region109: #{_lambda_.7} parent=5 // pred_check
        %p822 = pneg %p821
      $region110: #{_lambda_.7} parent=5 // pred_check_branch
        %824 = sbr.rel (%p822) target = $region112
      $region111: #{_lambda_.7} parent=5 // pred_region
        %s825 = ssub.s32 %s9, 2
        // Predicated region
        $region113: #{_lambda_.7} parent=111 // pred_check
          %p826 = pneg %p130
        $region114: #{_lambda_.7} parent=111 // pred_check_branch
          %828 = sbr.rel (%p826) target = $region116
        $region115: #{_lambda_.7} parent=111 // pred_region
          %s829 = sand.u32 %s115, 1
          %s830 = sand.u32 %s115, 1
          %s831 = smul.addr %s830, 128
          %s832 = scalar_lea.vmem [#allocation3], %s831
        $region116: #{_lambda_.7} parent=111 // pred_fallthru
          _
      $region112: #{_lambda_.7} parent=5 // pred_fallthru
        _
    $region6: #{_lambda_.7} parent=1 // loop_footer
      %s13 = sadd.s32 1, %s9
    $region7: #{_lambda_.7} parent=1 // loop_footer_branch
      %8 = sbr.rel target = $region3
    $region8: #{_lambda_.7} parent=1 // loop_exit
      _

// kernel: _lambda_.9
$region0: #{_lambda_.9}
  #allocation0 [shape = 'u32[]', space=smem, size = 0x4, offset = 0x4, fixed_abs, tag = 'smem constant byte address 0x4 - core index']
  #allocation1 [shape = 'u32[144,128]{1,0:T(1,128)}', space=vmem, size = 0x12000, scoped, tag = 'internal scratch']
  %s0 = inlined_call_operand.vmem [shape: bf16[128,128], index: 0, kind: input, shape index: {}]
  %s1 = inlined_call_operand.vmem [shape: bf16[128,128], index: 1, kind: input, shape index: {}]
  %s2 = inlined_call_operand.vmem [shape: f32[1,128], index: 2, kind: input, shape index: {}]
  %s3 = inlined_call_operand.vmem [shape: bf16[128,128], index: 3, kind: input, shape index: {}]
  %s4 = inlined_call_operand.vmem [shape: f32[1,128], index: 4, kind: input, shape index: {}]
  %s5 = inlined_call_operand.vmem [shape: f32[128,128], index: 5, kind: output, shape index: {}]
  %s6 = sld [smem:[#allocation0]]
  $region30: #{_lambda_.9} parent=0
    _
  %s8 = ssub.s32 1, %s6
  %s9 = scalar_select 0, %s8, %s6
  // Predicated region
  $region2: #{_lambda_.9} parent=0 // pred_check
    _
  $region3: #{_lambda_.9} parent=0 // pred_check_branch
    %11 = sbr.rel (0) target = $region5
  $region4: #{_lambda_.9} parent=0 // pred_region
    _
  $region5: #{_lambda_.9} parent=0 // pred_fallthru
    _
  // Predicated region
  $region6: #{_lambda_.9} parent=0 // pred_check
    _
  $region7: #{_lambda_.9} parent=0 // pred_check_branch
    %13 = sbr.rel (0) target = $region9
  $region8: #{_lambda_.9} parent=0 // pred_region
    _
  $region9: #{_lambda_.9} parent=0 // pred_fallthru
    _
  // Predicated region
  $region10: #{_lambda_.9} parent=0 // pred_check
    _
  $region11: #{_lambda_.9} parent=0 // pred_check_branch
    %15 = sbr.rel (0) target = $region13
  $region12: #{_lambda_.9} parent=0 // pred_region
    _
  $region13: #{_lambda_.9} parent=0 // pred_fallthru
    _
  // Predicated region
  $region14: #{_lambda_.9} parent=0 // pred_check
    _
  $region15: #{_lambda_.9} parent=0 // pred_check_branch
    %17 = sbr.rel (0) target = $region17
  $region16: #{_lambda_.9} parent=0 // pred_region
    _
  $region17: #{_lambda_.9} parent=0 // pred_fallthru
    _
  // Predicated region
  $region18: #{_lambda_.9} parent=0 // pred_check
    _
  $region19: #{_lambda_.9} parent=0 // pred_check_branch
    %19 = sbr.rel (0) target = $region21
  $region20: #{_lambda_.9} parent=0 // pred_region
    _
  $region21: #{_lambda_.9} parent=0 // pred_fallthru
    _
  %v21 = vld [vmem:[%s0] sm:$0xf]
  %v22 = vld [vmem:[%s0 + $0x4] sm:$0xf]
  %v23 = vld [vmem:[%s0 + $0x8] sm:$0xf]
  %v24 = vld [vmem:[%s0 + $0xc] sm:$0xf]
  %v25 = vld [vmem:[%s0 + $0x10] sm:$0xf]
  %v26 = vld [vmem:[%s0 + $0x14] sm:$0xf]
  %v27 = vld [vmem:[%s0 + $0x18] sm:$0xf]
  %v28 = vld [vmem:[%s0 + $0x1c] sm:$0xf]
  %v29 = vld [vmem:[%s0 + $0x20] sm:$0xf]
  %v30 = vld [vmem:[%s0 + $0x24] sm:$0xf]
  %v31 = vld [vmem:[%s0 + $0x28] sm:$0xf]
  %v32 = vld [vmem:[%s0 + $0x2c] sm:$0xf]
  %v33 = vld [vmem:[%s0 + $0x30] sm:$0xf]
  %v34 = vld [vmem:[%s0 + $0x34] sm:$0xf]
  %v35 = vld [vmem:[%s0 + $0x38] sm:$0xf]
  %v36 = vld [vmem:[%s0 + $0x3c] sm:$0xf]
  %v37 = vld [vmem:[%s1] sm:$0xf]
  %v38 = vld [vmem:[%s1 + $0x4] sm:$0xf]
  %v39 = vld [vmem:[%s1 + $0x8] sm:$0xf]
  %v40 = vld [vmem:[%s1 + $0xc] sm:$0xf]
  %v41 = vld [vmem:[%s1 + $0x10] sm:$0xf]
  %v42 = vld [vmem:[%s1 + $0x14] sm:$0xf]
  %v43 = vld [vmem:[%s1 + $0x18] sm:$0xf]
  %v44 = vld [vmem:[%s1 + $0x1c] sm:$0xf]
  %v45 = vld [vmem:[%s1 + $0x20] sm:$0xf]
  %v46 = vld [vmem:[%s1 + $0x24] sm:$0xf]
  %v47 = vld [vmem:[%s1 + $0x28] sm:$0xf]
  %v48 = vld [vmem:[%s1 + $0x2c] sm:$0xf]
  %v49 = vld [vmem:[%s1 + $0x30] sm:$0xf]
  %v50 = vld [vmem:[%s1 + $0x34] sm:$0xf]
  %v51 = vld [vmem:[%s1 + $0x38] sm:$0xf]
  %v52 = vld [vmem:[%s1 + $0x3c] sm:$0xf]
  %v53 = vld [vmem:[%s2] sm:$0x1]
  %v55 = vlaneseq
  %v56 = vshrl.u32 %v55, 7
  %v57 = vsub.s32 0, %v56
  %v58 = vrot.slane %v53, %v57
  %v76 = vunpack.c.l.b16 %v21
  %v77 = vunpack.c.l.b16 %v22
  %v78 = vunpack.c.l.b16 %v23
  %v79 = vunpack.c.l.b16 %v24
  %v80 = vunpack.c.l.b16 %v25
  %v81 = vunpack.c.l.b16 %v26
  %v82 = vunpack.c.l.b16 %v27
  %v83 = vunpack.c.l.b16 %v28
  %v84 = vunpack.c.l.b16 %v29
  %v85 = vunpack.c.l.b16 %v30
  %v86 = vunpack.c.l.b16 %v31
  %v87 = vunpack.c.l.b16 %v32
  %v88 = vunpack.c.l.b16 %v33
  %v89 = vunpack.c.l.b16 %v34
  %v90 = vunpack.c.l.b16 %v35
  %v91 = vunpack.c.l.b16 %v36
  %v92 = vpack.c.b16 %v77, %v76
  %v93 = vpack.c.b16 %v79, %v78
  %v94 = vpack.c.b16 %v81, %v80
  %v95 = vpack.c.b16 %v83, %v82
  %v96 = vpack.c.b16 %v85, %v84
  %v97 = vpack.c.b16 %v87, %v86
  %v98 = vpack.c.b16 %v89, %v88
  %v99 = vpack.c.b16 %v91, %v90
  %v124 = vunpack.c.l.b16 %v37
  %v125 = vunpack.c.l.b16 %v38
  %v126 = vunpack.c.l.b16 %v39
  %v127 = vunpack.c.l.b16 %v40
  %v128 = vunpack.c.l.b16 %v41
  %v129 = vunpack.c.l.b16 %v42
  %v130 = vunpack.c.l.b16 %v43
  %v131 = vunpack.c.l.b16 %v44
  %v132 = vunpack.c.l.b16 %v45
  %v133 = vunpack.c.l.b16 %v46
  %v134 = vunpack.c.l.b16 %v47
  %v135 = vunpack.c.l.b16 %v48
  %v136 = vunpack.c.l.b16 %v49
  %v137 = vunpack.c.l.b16 %v50
  %v138 = vunpack.c.l.b16 %v51
  %v139 = vunpack.c.l.b16 %v52
  %v140 = vpack.c.b16 %v125, %v124
  %v141 = vpack.c.b16 %v127, %v126
  %v142 = vpack.c.b16 %v129, %v128
  %v143 = vpack.c.b16 %v131, %v130
  %v144 = vpack.c.b16 %v133, %v132
  %v145 = vpack.c.b16 %v135, %v134
  %v146 = vpack.c.b16 %v137, %v136
  %v147 = vpack.c.b16 %v139, %v138
  %156 = vmatprep.subr.bf16.mxu0 0
  %157 = vmatpush1.bf16.msra.mxu0 %v140
  %158 = vmatprep.subr.bf16.mxu0 0
  %159 = vmatpush1.bf16.msra.mxu0 %v141
  %160 = vmatprep.subr.bf16.mxu0 0
  %161 = vmatpush1.bf16.msra.mxu0 %v142
  %162 = vmatprep.subr.bf16.mxu0 0
  %163 = vmatpush1.bf16.msra.mxu0 %v143
  %164 = vmatprep.subr.bf16.mxu0 0
  %165 = vmatpush1.bf16.msra.mxu0 %v144
  %166 = vmatprep.subr.bf16.mxu0 0
  %167 = vmatpush1.bf16.msra.mxu0 %v145
  %168 = vmatprep.subr.bf16.mxu0 0
  %169 = vmatpush1.bf16.msra.mxu0 %v146
  %170 = vmatprep.subr.bf16.mxu0 0
  %171 = vmatpush1.bf16.msra.mxu0 %v147
  %172 = vmatprep.subr.bf16.mxu0 0
  %173 = vmatpush1.bf16.msra.mxu0 0
  %174 = vmatprep.subr.bf16.mxu0 0
  %175 = vmatpush1.bf16.msra.mxu0 0
  %176 = vmatprep.subr.bf16.mxu0 0
  %177 = vmatpush1.bf16.msra.mxu0 0
  %178 = vmatprep.subr.bf16.mxu0 0
  %179 = vmatpush1.bf16.msra.mxu0 0
  %180 = vmatprep.subr.bf16.mxu0 0
  %181 = vmatpush1.bf16.msra.mxu0 0
  %182 = vmatprep.subr.bf16.mxu0 0
  %183 = vmatpush1.bf16.msra.mxu0 0
  %184 = vmatprep.subr.bf16.mxu0 0
  %185 = vmatpush1.bf16.msra.mxu0 0
  %186 = vmatprep.subr.bf16.mxu0 0
  %187 = vmatpush1.bf16.msra.mxu0 0
  %188 = vmatprep.mubr.bf16.mxu0 0
  %189 = vmatmul.mubr.bf16.gmra.mrb[0].mxu0 %v92
  %v190 = vpop.f32.mrb[0].mxu0
  %v191 = vadd.f32 %v58, %v190
  %v192 = vpop.f32.mrb[0].mxu0
  %v193 = vpop.f32.mrb[0].mxu0
  %v194 = vadd.f32 %v58, %v193
  %v195 = vpop.f32.mrb[0].mxu0
  %196 = vmatprep.mubr.bf16.mxu0 0
  %197 = vmatmul.mubr.bf16.gmra.mrb[0].mxu0 %v93
  %v198 = vpop.f32.mrb[0].mxu0
  %v199 = vadd.f32 %v58, %v198
  %v200 = vpop.f32.mrb[0].mxu0
  %v201 = vpop.f32.mrb[0].mxu0
  %v202 = vadd.f32 %v58, %v201
  %v203 = vpop.f32.mrb[0].mxu0
  %204 = vmatprep.mubr.bf16.mxu0 0
  %205 = vmatmul.mubr.bf16.gmra.mrb[0].mxu0 %v94
  %v206 = vpop.f32.mrb[0].mxu0
  %v207 = vadd.f32 %v58, %v206
  %v208 = vpop.f32.mrb[0].mxu0
  %v209 = vpop.f32.mrb[0].mxu0
  %v210 = vadd.f32 %v58, %v209
  %v211 = vpop.f32.mrb[0].mxu0
  %212 = vmatprep.mubr.bf16.mxu0 0
  %213 = vmatmul.mubr.bf16.gmra.mrb[0].mxu0 %v95
  %v214 = vpop.f32.mrb[0].mxu0
  %v215 = vadd.f32 %v58, %v214
  %v216 = vpop.f32.mrb[0].mxu0
  %v217 = vpop.f32.mrb[0].mxu0
  %v218 = vadd.f32 %v58, %v217
  %v219 = vpop.f32.mrb[0].mxu0
  %220 = vmatprep.mubr.bf16.mxu0 0
  %221 = vmatmul.mubr.bf16.gmra.mrb[0].mxu0 %v96
  %v222 = vpop.f32.mrb[0].mxu0
  %v223 = vadd.f32 %v58, %v222
  %v224 = vpop.f32.mrb[0].mxu0
  %v225 = vpop.f32.mrb[0].mxu0
  %v226 = vadd.f32 %v58, %v225
  %v227 = vpop.f32.mrb[0].mxu0
  %228 = vmatprep.mubr.bf16.mxu0 0
  %229 = vmatmul.mubr.bf16.gmra.mrb[0].mxu0 %v97
  %v230 = vpop.f32.mrb[0].mxu0
  %v231 = vadd.f32 %v58, %v230
  %v232 = vpop.f32.mrb[0].mxu0
  %v233 = vpop.f32.mrb[0].mxu0
  %v234 = vadd.f32 %v58, %v233
  %v235 = vpop.f32.mrb[0].mxu0
  %236 = vmatprep.mubr.bf16.mxu0 0
  %237 = vmatmul.mubr.bf16.gmra.mrb[0].mxu0 %v98
  %v238 = vpop.f32.mrb[0].mxu0
  %v239 = vadd.f32 %v58, %v238
  %v240 = vpop.f32.mrb[0].mxu0
  %v241 = vpop.f32.mrb[0].mxu0
  %v242 = vadd.f32 %v58, %v241
  %v243 = vpop.f32.mrb[0].mxu0
  %244 = vmatprep.mubr.bf16.mxu0 0
  %245 = vmatmul.mubr.bf16.gmra.mrb[0].mxu0 %v99
  %v246 = vpop.f32.mrb[0].mxu0
  %v247 = vadd.f32 %v58, %v246
  %v248 = vpop.f32.mrb[0].mxu0
  %v249 = vpop.f32.mrb[0].mxu0
  %v250 = vadd.f32 %v58, %v249
  %v251 = vpop.f32.mrb[0].mxu0
  %252 = vdwg.mxu0
  %vm253 = vcmp.ge.f32.partialorder %v191, 0.0
  %vm254 = vcmp.ge.f32.partialorder %v194, 0.0
  %vm255 = vcmp.ge.f32.partialorder %v199, 0.0
  %vm256 = vcmp.ge.f32.partialorder %v202, 0.0
  %vm257 = vcmp.ge.f32.partialorder %v207, 0.0
  %vm258 = vcmp.ge.f32.partialorder %v210, 0.0
  %vm259 = vcmp.ge.f32.partialorder %v215, 0.0
  %vm260 = vcmp.ge.f32.partialorder %v218, 0.0
  %vm261 = vcmp.ge.f32.partialorder %v223, 0.0
  %vm262 = vcmp.ge.f32.partialorder %v226, 0.0
  %vm263 = vcmp.ge.f32.partialorder %v231, 0.0
  %vm264 = vcmp.ge.f32.partialorder %v234, 0.0
  %vm265 = vcmp.ge.f32.partialorder %v239, 0.0
  %vm266 = vcmp.ge.f32.partialorder %v242, 0.0
  %vm267 = vcmp.ge.f32.partialorder %v247, 0.0
  %vm268 = vcmp.ge.f32.partialorder %v250, 0.0
  %v269 = vmul.f32 %v191, 0.1
  %v270 = vmul.f32 %v194, 0.1
  %v271 = vmul.f32 %v199, 0.1
  %v272 = vmul.f32 %v202, 0.1
  %v273 = vmul.f32 %v207, 0.1
  %v274 = vmul.f32 %v210, 0.1
  %v275 = vmul.f32 %v215, 0.1
  %v276 = vmul.f32 %v218, 0.1
  %v277 = vmul.f32 %v223, 0.1
  %v278 = vmul.f32 %v226, 0.1
  %v279 = vmul.f32 %v231, 0.1
  %v280 = vmul.f32 %v234, 0.1
  %v281 = vmul.f32 %v239, 0.1
  %v282 = vmul.f32 %v242, 0.1
  %v283 = vmul.f32 %v247, 0.1
  %v284 = vmul.f32 %v250, 0.1
  %v285 = vsel %vm253, %v191, %v269
  %v286 = vsel %vm254, %v194, %v270
  %v287 = vsel %vm255, %v199, %v271
  %v288 = vsel %vm256, %v202, %v272
  %v289 = vsel %vm257, %v207, %v273
  %v290 = vsel %vm258, %v210, %v274
  %v291 = vsel %vm259, %v215, %v275
  %v292 = vsel %vm260, %v218, %v276
  %v293 = vsel %vm261, %v223, %v277
  %v294 = vsel %vm262, %v226, %v278
  %v295 = vsel %vm263, %v231, %v279
  %v296 = vsel %vm264, %v234, %v280
  %v297 = vsel %vm265, %v239, %v281
  %v298 = vsel %vm266, %v242, %v282
  %v299 = vsel %vm267, %v247, %v283
  %v300 = vsel %vm268, %v250, %v284
  %v301 = vpack.c.bf16 %v286, %v285
  %v302 = vpack.c.bf16 %v288, %v287
  %v303 = vpack.c.bf16 %v290, %v289
  %v304 = vpack.c.bf16 %v292, %v291
  %v305 = vpack.c.bf16 %v294, %v293
  %v306 = vpack.c.bf16 %v296, %v295
  %v307 = vpack.c.bf16 %v298, %v297
  %v308 = vpack.c.bf16 %v300, %v299
  %v309 = vld [vmem:[%s3] sm:$0xf]
  %v310 = vld [vmem:[%s3 + $0x4] sm:$0xf]
  %v311 = vld [vmem:[%s3 + $0x8] sm:$0xf]
  %v312 = vld [vmem:[%s3 + $0xc] sm:$0xf]
  %v313 = vld [vmem:[%s3 + $0x10] sm:$0xf]
  %v314 = vld [vmem:[%s3 + $0x14] sm:$0xf]
  %v315 = vld [vmem:[%s3 + $0x18] sm:$0xf]
  %v316 = vld [vmem:[%s3 + $0x1c] sm:$0xf]
  %v317 = vld [vmem:[%s3 + $0x20] sm:$0xf]
  %v318 = vld [vmem:[%s3 + $0x24] sm:$0xf]
  %v319 = vld [vmem:[%s3 + $0x28] sm:$0xf]
  %v320 = vld [vmem:[%s3 + $0x2c] sm:$0xf]
  %v321 = vld [vmem:[%s3 + $0x30] sm:$0xf]
  %v322 = vld [vmem:[%s3 + $0x34] sm:$0xf]
  %v323 = vld [vmem:[%s3 + $0x38] sm:$0xf]
  %v324 = vld [vmem:[%s3 + $0x3c] sm:$0xf]
  %v325 = vld [vmem:[%s4] sm:$0x1]
  %v327 = vlaneseq
  %v328 = vshrl.u32 %v327, 7
  %v329 = vsub.s32 0, %v328
  %v330 = vrot.slane %v325, %v329
  %v348 = vunpack.c.l.b16 %v309
  %v349 = vunpack.c.l.b16 %v310
  %v350 = vunpack.c.l.b16 %v311
  %v351 = vunpack.c.l.b16 %v312
  %v352 = vunpack.c.l.b16 %v313
  %v353 = vunpack.c.l.b16 %v314
  %v354 = vunpack.c.l.b16 %v315
  %v355 = vunpack.c.l.b16 %v316
  %v356 = vunpack.c.l.b16 %v317
  %v357 = vunpack.c.l.b16 %v318
  %v358 = vunpack.c.l.b16 %v319
  %v359 = vunpack.c.l.b16 %v320
  %v360 = vunpack.c.l.b16 %v321
  %v361 = vunpack.c.l.b16 %v322
  %v362 = vunpack.c.l.b16 %v323
  %v363 = vunpack.c.l.b16 %v324
  %v364 = vpack.c.b16 %v349, %v348
  %v365 = vpack.c.b16 %v351, %v350
  %v366 = vpack.c.b16 %v353, %v352
  %v367 = vpack.c.b16 %v355, %v354
  %v368 = vpack.c.b16 %v357, %v356
  %v369 = vpack.c.b16 %v359, %v358
  %v370 = vpack.c.b16 %v361, %v360
  %v371 = vpack.c.b16 %v363, %v362
  %380 = vmatprep.subr.bf16.mxu0 0
  %381 = vmatpush1.bf16.msra.mxu0 %v364
  %382 = vmatprep.subr.bf16.mxu0 0
  %383 = vmatpush1.bf16.msra.mxu0 %v365
  %384 = vmatprep.subr.bf16.mxu0 0
  %385 = vmatpush1.bf16.msra.mxu0 %v366
  %386 = vmatprep.subr.bf16.mxu0 0
  %387 = vmatpush1.bf16.msra.mxu0 %v367
  %388 = vmatprep.subr.bf16.mxu0 0
  %389 = vmatpush1.bf16.msra.mxu0 %v368
  %390 = vmatprep.subr.bf16.mxu0 0
  %391 = vmatpush1.bf16.msra.mxu0 %v369
  %392 = vmatprep.subr.bf16.mxu0 0
  %393 = vmatpush1.bf16.msra.mxu0 %v370
  %394 = vmatprep.subr.bf16.mxu0 0
  %395 = vmatpush1.bf16.msra.mxu0 %v371
  %396 = vmatprep.subr.bf16.mxu0 0
  %397 = vmatpush1.bf16.msra.mxu0 0
  %398 = vmatprep.subr.bf16.mxu0 0
  %399 = vmatpush1.bf16.msra.mxu0 0
  %400 = vmatprep.subr.bf16.mxu0 0
  %401 = vmatpush1.bf16.msra.mxu0 0
  %402 = vmatprep.subr.bf16.mxu0 0
  %403 = vmatpush1.bf16.msra.mxu0 0
  %404 = vmatprep.subr.bf16.mxu0 0
  %405 = vmatpush1.bf16.msra.mxu0 0
  %406 = vmatprep.subr.bf16.mxu0 0
  %407 = vmatpush1.bf16.msra.mxu0 0
  %408 = vmatprep.subr.bf16.mxu0 0
  %409 = vmatpush1.bf16.msra.mxu0 0
  %410 = vmatprep.subr.bf16.mxu0 0
  %411 = vmatpush1.bf16.msra.mxu0 0
  %412 = vmatprep.mubr.bf16.mxu0 0
  %413 = vmatmul.mubr.bf16.gmra.mrb[0].mxu0 %v301
  %v414 = vpop.f32.mrb[0].mxu0
  %v415 = vadd.f32 %v330, %v414
  %v416 = vpop.f32.mrb[0].mxu0
  %v417 = vpop.f32.mrb[0].mxu0
  %v418 = vadd.f32 %v330, %v417
  %v419 = vpop.f32.mrb[0].mxu0
  %420 = vmatprep.mubr.bf16.mxu0 0
  %421 = vmatmul.mubr.bf16.gmra.mrb[0].mxu0 %v302
  %v422 = vpop.f32.mrb[0].mxu0
  %v423 = vadd.f32 %v330, %v422
  %v424 = vpop.f32.mrb[0].mxu0
  %v425 = vpop.f32.mrb[0].mxu0
  %v426 = vadd.f32 %v330, %v425
  %v427 = vpop.f32.mrb[0].mxu0
  %428 = vmatprep.mubr.bf16.mxu0 0
  %429 = vmatmul.mubr.bf16.gmra.mrb[0].mxu0 %v303
  %v430 = vpop.f32.mrb[0].mxu0
  %v431 = vadd.f32 %v330, %v430
  %v432 = vpop.f32.mrb[0].mxu0
  %v433 = vpop.f32.mrb[0].mxu0
  %v434 = vadd.f32 %v330, %v433
  %v435 = vpop.f32.mrb[0].mxu0
  %436 = vmatprep.mubr.bf16.mxu0 0
  %437 = vmatmul.mubr.bf16.gmra.mrb[0].mxu0 %v304
  %v438 = vpop.f32.mrb[0].mxu0
  %v439 = vadd.f32 %v330, %v438
  %v440 = vpop.f32.mrb[0].mxu0
  %v441 = vpop.f32.mrb[0].mxu0
  %v442 = vadd.f32 %v330, %v441
  %v443 = vpop.f32.mrb[0].mxu0
  %444 = vmatprep.mubr.bf16.mxu0 0
  %445 = vmatmul.mubr.bf16.gmra.mrb[0].mxu0 %v305
  %v446 = vpop.f32.mrb[0].mxu0
  %v447 = vadd.f32 %v330, %v446
  %v448 = vpop.f32.mrb[0].mxu0
  %v449 = vpop.f32.mrb[0].mxu0
  %v450 = vadd.f32 %v330, %v449
  %v451 = vpop.f32.mrb[0].mxu0
  %452 = vmatprep.mubr.bf16.mxu0 0
  %453 = vmatmul.mubr.bf16.gmra.mrb[0].mxu0 %v306
  %v454 = vpop.f32.mrb[0].mxu0
  %v455 = vadd.f32 %v330, %v454
  %v456 = vpop.f32.mrb[0].mxu0
  %v457 = vpop.f32.mrb[0].mxu0
  %v458 = vadd.f32 %v330, %v457
  %v459 = vpop.f32.mrb[0].mxu0
  %460 = vmatprep.mubr.bf16.mxu0 0
  %461 = vmatmul.mubr.bf16.gmra.mrb[0].mxu0 %v307
  %v462 = vpop.f32.mrb[0].mxu0
  %v463 = vadd.f32 %v330, %v462
  %v464 = vpop.f32.mrb[0].mxu0
  %v465 = vpop.f32.mrb[0].mxu0
  %v466 = vadd.f32 %v330, %v465
  %v467 = vpop.f32.mrb[0].mxu0
  %468 = vmatprep.mubr.bf16.mxu0 0
  %469 = vmatmul.mubr.bf16.gmra.mrb[0].mxu0 %v308
  %v470 = vpop.f32.mrb[0].mxu0
  %v471 = vadd.f32 %v330, %v470
  %v472 = vpop.f32.mrb[0].mxu0
  %v473 = vpop.f32.mrb[0].mxu0
  %v474 = vadd.f32 %v330, %v473
  %v475 = vpop.f32.mrb[0].mxu0
  %476 = vdwg.mxu0
  %477 = vst [vmem:[%s5] sm:$0xff] %v415
  %478 = vst [vmem:[%s5 + $0x8] sm:$0xff] %v418
  %479 = vst [vmem:[%s5 + $0x10] sm:$0xff] %v423
  %480 = vst [vmem:[%s5 + $0x18] sm:$0xff] %v426
  %481 = vst [vmem:[%s5 + $0x20] sm:$0xff] %v431
  %482 = vst [vmem:[%s5 + $0x28] sm:$0xff] %v434
  %483 = vst [vmem:[%s5 + $0x30] sm:$0xff] %v439
  %484 = vst [vmem:[%s5 + $0x38] sm:$0xff] %v442
  %485 = vst [vmem:[%s5 + $0x40] sm:$0xff] %v447
  %486 = vst [vmem:[%s5 + $0x48] sm:$0xff] %v450
  %487 = vst [vmem:[%s5 + $0x50] sm:$0xff] %v455
  %488 = vst [vmem:[%s5 + $0x58] sm:$0xff] %v458
  %489 = vst [vmem:[%s5 + $0x60] sm:$0xff] %v463
  %490 = vst [vmem:[%s5 + $0x68] sm:$0xff] %v466
  %491 = vst [vmem:[%s5 + $0x70] sm:$0xff] %v471
  %492 = vst [vmem:[%s5 + $0x78] sm:$0xff] %v474
  // Predicated region
  $region22: #{_lambda_.9} parent=0 // pred_check
    _
  $region23: #{_lambda_.9} parent=0 // pred_check_branch
    %494 = sbr.rel (0) target = $region25
  $region24: #{_lambda_.9} parent=0 // pred_region
    _
  $region25: #{_lambda_.9} parent=0 // pred_fallthru
    _
  // Predicated region
  $region26: #{_lambda_.9} parent=0 // pred_check
    _
  $region27: #{_lambda_.9} parent=0 // pred_check_branch
    %496 = sbr.rel (0) target = $region29
  $region28: #{_lambda_.9} parent=0 // pred_region
    _
  $region29: #{_lambda_.9} parent=0 // pred_fallthru
    _

// kernel: _lambda_.6
$region0: #{_lambda_.6}
  #allocation0 [shape = 'u32[]', space=smem, size = 0x4, offset = 0x4, fixed_abs, tag = 'smem constant byte address 0x4 - core index']
  #allocation1 [shape = 'u32[144,128]{1,0:T(1,128)}', space=vmem, size = 0x12000, scoped, tag = 'internal scratch']
  %s0 = inlined_call_operand.vmem [shape: bf16[8,16,512], index: 0, kind: input, shape index: {}]
  %s1 = inlined_call_operand.vmem [shape: bf16[128,512], index: 1, kind: input, shape index: {}]
  %s2 = inlined_call_operand.vmem [shape: f32[16,128], index: 2, kind: input, shape index: {}, may-alias: {2,3}]
  %s3 = inlined_call_operand.vmem [shape: f32[16,128], index: 3, kind: input, shape index: {}, may-alias: {2,3}]
  %s4 = inlined_call_operand.vmem [shape: f32[8,16,128], index: 4, kind: output, shape index: {0}]
  %s5 = inlined_call_operand.vmem [shape: f32[16,128], index: 5, kind: output, shape index: {1}]
  %s6 = inlined_call_operand.vmem [shape: f32[16,128], index: 6, kind: output, shape index: {2}]
  %7 = xla_tuple %s4, %s5, %s6
  %s8 = sld [smem:[#allocation0]]
  $region42: #{_lambda_.6} parent=0
    _
  %s10 = ssub.s32 1, %s8
  %s11 = scalar_select 0, %s10, %s8
  // Predicated region
  $region2: #{_lambda_.6} parent=0 // pred_check
    _
  $region3: #{_lambda_.6} parent=0 // pred_check_branch
    %13 = sbr.rel (0) target = $region5
  $region4: #{_lambda_.6} parent=0 // pred_region
    _
  $region5: #{_lambda_.6} parent=0 // pred_fallthru
    _
  // Predicated region
  $region6: #{_lambda_.6} parent=0 // pred_check
    _
  $region7: #{_lambda_.6} parent=0 // pred_check_branch
    %15 = sbr.rel (0) target = $region9
  $region8: #{_lambda_.6} parent=0 // pred_region
    _
  $region9: #{_lambda_.6} parent=0 // pred_fallthru
    _
  // Predicated region
  $region10: #{_lambda_.6} parent=0 // pred_check
    _
  $region11: #{_lambda_.6} parent=0 // pred_check_branch
    %17 = sbr.rel (0) target = $region13
  $region12: #{_lambda_.6} parent=0 // pred_region
    _
  $region13: #{_lambda_.6} parent=0 // pred_fallthru
    _
  // Predicated region
  $region14: #{_lambda_.6} parent=0 // pred_check
    _
  $region15: #{_lambda_.6} parent=0 // pred_check_branch
    %19 = sbr.rel (0) target = $region17
  $region16: #{_lambda_.6} parent=0 // pred_region
    _
  $region17: #{_lambda_.6} parent=0 // pred_fallthru
    _
  %v21 = vld [vmem:[%s1] sm:$0xff]
  %v22 = vld [vmem:[%s1 + $0x8] sm:$0xff]
  %v23 = vld [vmem:[%s1 + $0x10] sm:$0xff]
  %v24 = vld [vmem:[%s1 + $0x18] sm:$0xff]
  %v25 = vld [vmem:[%s1 + $0x20] sm:$0xff]
  %v26 = vld [vmem:[%s1 + $0x28] sm:$0xff]
  %v27 = vld [vmem:[%s1 + $0x30] sm:$0xff]
  %v28 = vld [vmem:[%s1 + $0x38] sm:$0xff]
  %v29 = vld [vmem:[%s1 + $0x40] sm:$0xff]
  %v30 = vld [vmem:[%s1 + $0x48] sm:$0xff]
  %v31 = vld [vmem:[%s1 + $0x50] sm:$0xff]
  %v32 = vld [vmem:[%s1 + $0x58] sm:$0xff]
  %v33 = vld [vmem:[%s1 + $0x60] sm:$0xff]
  %v34 = vld [vmem:[%s1 + $0x68] sm:$0xff]
  %v35 = vld [vmem:[%s1 + $0x70] sm:$0xff]
  %v36 = vld [vmem:[%s1 + $0x78] sm:$0xff]
  %v37 = vld [vmem:[%s1 + $0x80] sm:$0xff]
  %v38 = vld [vmem:[%s1 + $0x88] sm:$0xff]
  %v39 = vld [vmem:[%s1 + $0x90] sm:$0xff]
  %v40 = vld [vmem:[%s1 + $0x98] sm:$0xff]
  %v41 = vld [vmem:[%s1 + $0xa0] sm:$0xff]
  %v42 = vld [vmem:[%s1 + $0xa8] sm:$0xff]
  %v43 = vld [vmem:[%s1 + $0xb0] sm:$0xff]
  %v44 = vld [vmem:[%s1 + $0xb8] sm:$0xff]
  %v45 = vld [vmem:[%s1 + $0xc0] sm:$0xff]
  %v46 = vld [vmem:[%s1 + $0xc8] sm:$0xff]
  %v47 = vld [vmem:[%s1 + $0xd0] sm:$0xff]
  %v48 = vld [vmem:[%s1 + $0xd8] sm:$0xff]
  %v49 = vld [vmem:[%s1 + $0xe0] sm:$0xff]
  %v50 = vld [vmem:[%s1 + $0xe8] sm:$0xff]
  %v51 = vld [vmem:[%s1 + $0xf0] sm:$0xff]
  %v52 = vld [vmem:[%s1 + $0xf8] sm:$0xff]
  %v53 = vld [vmem:[%s2] sm:$0xff]
  %v54 = vld [vmem:[%s2 + $0x8] sm:$0xff]
  %v55 = vld [vmem:[%s3] sm:$0xff]
  %v56 = vld [vmem:[%s3 + $0x8] sm:$0xff]
  %v57 = vld [vmem:[%s0] sm:$0xff]
  %v58 = vld [vmem:[%s0 + $0x8] sm:$0xff]
  %v59 = vld [vmem:[%s0 + $0x10] sm:$0xff]
  %v60 = vld [vmem:[%s0 + $0x18] sm:$0xff]
  %v61 = vunpack.c.l.bf16 %v57
  %v62 = vunpack.c.h.bf16 %v57
  %v63 = vunpack.c.l.bf16 %v58
  %v64 = vunpack.c.h.bf16 %v58
  %v65 = vunpack.c.l.bf16 %v59
  %v66 = vunpack.c.h.bf16 %v59
  %v67 = vunpack.c.l.bf16 %v60
  %v68 = vunpack.c.h.bf16 %v60
  %v69 = vpack.c.bf16 %v54, %v53
  %v102 = vunpack.c.l.b16 %v21
  %v103 = vunpack.c.h.b16 %v21
  %v104 = vunpack.c.l.b16 %v22
  %v105 = vunpack.c.h.b16 %v22
  %v106 = vunpack.c.l.b16 %v23
  %v107 = vunpack.c.h.b16 %v23
  %v108 = vunpack.c.l.b16 %v24
  %v109 = vunpack.c.h.b16 %v24
  %v110 = vunpack.c.l.b16 %v25
  %v111 = vunpack.c.h.b16 %v25
  %v112 = vunpack.c.l.b16 %v26
  %v113 = vunpack.c.h.b16 %v26
  %v114 = vunpack.c.l.b16 %v27
  %v115 = vunpack.c.h.b16 %v27
  %v116 = vunpack.c.l.b16 %v28
  %v117 = vunpack.c.h.b16 %v28
  %v118 = vunpack.c.l.b16 %v29
  %v119 = vunpack.c.h.b16 %v29
  %v120 = vunpack.c.l.b16 %v30
  %v121 = vunpack.c.h.b16 %v30
  %v122 = vunpack.c.l.b16 %v31
  %v123 = vunpack.c.h.b16 %v31
  %v124 = vunpack.c.l.b16 %v32
  %v125 = vunpack.c.h.b16 %v32
  %v126 = vunpack.c.l.b16 %v33
  %v127 = vunpack.c.h.b16 %v33
  %v128 = vunpack.c.l.b16 %v34
  %v129 = vunpack.c.h.b16 %v34
  %v130 = vunpack.c.l.b16 %v35
  %v131 = vunpack.c.h.b16 %v35
  %v132 = vunpack.c.l.b16 %v36
  %v133 = vunpack.c.h.b16 %v36
  %v134 = vunpack.c.l.b16 %v37
  %v135 = vunpack.c.h.b16 %v37
  %v136 = vunpack.c.l.b16 %v38
  %v137 = vunpack.c.h.b16 %v38
  %v138 = vunpack.c.l.b16 %v39
  %v139 = vunpack.c.h.b16 %v39
  %v140 = vunpack.c.l.b16 %v40
  %v141 = vunpack.c.h.b16 %v40
  %v142 = vunpack.c.l.b16 %v41
  %v143 = vunpack.c.h.b16 %v41
  %v144 = vunpack.c.l.b16 %v42
  %v145 = vunpack.c.h.b16 %v42
  %v146 = vunpack.c.l.b16 %v43
  %v147 = vunpack.c.h.b16 %v43
  %v148 = vunpack.c.l.b16 %v44
  %v149 = vunpack.c.h.b16 %v44
  %v150 = vunpack.c.l.b16 %v45
  %v151 = vunpack.c.h.b16 %v45
  %v152 = vunpack.c.l.b16 %v46
  %v153 = vunpack.c.h.b16 %v46
  %v154 = vunpack.c.l.b16 %v47
  %v155 = vunpack.c.h.b16 %v47
  %v156 = vunpack.c.l.b16 %v48
  %v157 = vunpack.c.h.b16 %v48
  %v158 = vunpack.c.l.b16 %v49
  %v159 = vunpack.c.h.b16 %v49
  %v160 = vunpack.c.l.b16 %v50
  %v161 = vunpack.c.h.b16 %v50
  %v162 = vunpack.c.l.b16 %v51
  %v163 = vunpack.c.h.b16 %v51
  %v164 = vunpack.c.l.b16 %v52
  %v165 = vunpack.c.h.b16 %v52
  %v166 = vpack.c.b16 %v106, %v102
  %v167 = vpack.c.b16 %v107, %v103
  %v168 = vpack.c.b16 %v108, %v104
  %v169 = vpack.c.b16 %v109, %v105
  %v170 = vpack.c.b16 %v114, %v110
  %v171 = vpack.c.b16 %v115, %v111
  %v172 = vpack.c.b16 %v116, %v112
  %v173 = vpack.c.b16 %v117, %v113
  %v174 = vpack.c.b16 %v122, %v118
  %v175 = vpack.c.b16 %v123, %v119
  %v176 = vpack.c.b16 %v124, %v120
  %v177 = vpack.c.b16 %v125, %v121
  %v178 = vpack.c.b16 %v130, %v126
  %v179 = vpack.c.b16 %v131, %v127
  %v180 = vpack.c.b16 %v132, %v128
  %v181 = vpack.c.b16 %v133, %v129
  %v182 = vpack.c.b16 %v138, %v134
  %v183 = vpack.c.b16 %v139, %v135
  %v184 = vpack.c.b16 %v140, %v136
  %v185 = vpack.c.b16 %v141, %v137
  %v186 = vpack.c.b16 %v146, %v142
  %v187 = vpack.c.b16 %v147, %v143
  %v188 = vpack.c.b16 %v148, %v144
  %v189 = vpack.c.b16 %v149, %v145
  %v190 = vpack.c.b16 %v154, %v150
  %v191 = vpack.c.b16 %v155, %v151
  %v192 = vpack.c.b16 %v156, %v152
  %v193 = vpack.c.b16 %v157, %v153
  %v194 = vpack.c.b16 %v162, %v158
  %v195 = vpack.c.b16 %v163, %v159
  %v196 = vpack.c.b16 %v164, %v160
  %v197 = vpack.c.b16 %v165, %v161
  %230 = vmatprep.subr.bf16.mxu0 %v167
  %231 = vmatpush1.bf16.msra.mxu0 %v166
  %232 = vmatprep.subr.bf16.mxu0 %v171
  %233 = vmatpush1.bf16.msra.mxu0 %v170
  %234 = vmatprep.subr.bf16.mxu0 %v175
  %235 = vmatpush1.bf16.msra.mxu0 %v174
  %236 = vmatprep.subr.bf16.mxu0 %v179
  %237 = vmatpush1.bf16.msra.mxu0 %v178
  %238 = vmatprep.subr.bf16.mxu0 %v183
  %239 = vmatpush1.bf16.msra.mxu0 %v182
  %240 = vmatprep.subr.bf16.mxu0 %v187
  %241 = vmatpush1.bf16.msra.mxu0 %v186
  %242 = vmatprep.subr.bf16.mxu0 %v191
  %243 = vmatpush1.bf16.msra.mxu0 %v190
  %244 = vmatprep.subr.bf16.mxu0 %v195
  %245 = vmatpush1.bf16.msra.mxu0 %v194
  %246 = vmatprep.subr.bf16.mxu0 0
  %247 = vmatpush1.bf16.msra.mxu0 0
  %248 = vmatprep.subr.bf16.mxu0 0
  %249 = vmatpush1.bf16.msra.mxu0 0
  %250 = vmatprep.subr.bf16.mxu0 0
  %251 = vmatpush1.bf16.msra.mxu0 0
  %252 = vmatprep.subr.bf16.mxu0 0
  %253 = vmatpush1.bf16.msra.mxu0 0
  %254 = vmatprep.subr.bf16.mxu0 0
  %255 = vmatpush1.bf16.msra.mxu0 0
  %256 = vmatprep.subr.bf16.mxu0 0
  %257 = vmatpush1.bf16.msra.mxu0 0
  %258 = vmatprep.subr.bf16.mxu0 0
  %259 = vmatpush1.bf16.msra.mxu0 0
  %260 = vmatprep.subr.bf16.mxu0 0
  %261 = vmatpush1.bf16.msra.mxu0 0
  %262 = vmatprep.mubr.bf16.mxu0 0
  %263 = vmatmul.mubr.bf16.gmra.mrb[0].mxu0 %v69
  %v264 = vpop.f32.mrb[0].mxu0
  %v265 = vadd.f32 0.0, %v264
  %v266 = vpop.f32.mrb[0].mxu0
  %v267 = vadd.f32 0.0, %v266
  %v268 = vpop.f32.mrb[0].mxu0
  %v269 = vadd.f32 0.0, %v268
  %v270 = vpop.f32.mrb[0].mxu0
  %v271 = vadd.f32 0.0, %v270
  %272 = vdwg.mxu0
  %273 = vmatprep.subr.bf16.mxu0 %v169
  %274 = vmatpush1.bf16.msra.mxu0 %v168
  %275 = vmatprep.subr.bf16.mxu0 %v173
  %276 = vmatpush1.bf16.msra.mxu0 %v172
  %277 = vmatprep.subr.bf16.mxu0 %v177
  %278 = vmatpush1.bf16.msra.mxu0 %v176
  %279 = vmatprep.subr.bf16.mxu0 %v181
  %280 = vmatpush1.bf16.msra.mxu0 %v180
  %281 = vmatprep.subr.bf16.mxu0 %v185
  %282 = vmatpush1.bf16.msra.mxu0 %v184
  %283 = vmatprep.subr.bf16.mxu0 %v189
  %284 = vmatpush1.bf16.msra.mxu0 %v188
  %285 = vmatprep.subr.bf16.mxu0 %v193
  %286 = vmatpush1.bf16.msra.mxu0 %v192
  %287 = vmatprep.subr.bf16.mxu0 %v197
  %288 = vmatpush1.bf16.msra.mxu0 %v196
  %289 = vmatprep.subr.bf16.mxu0 0
  %290 = vmatpush1.bf16.msra.mxu0 0
  %291 = vmatprep.subr.bf16.mxu0 0
  %292 = vmatpush1.bf16.msra.mxu0 0
  %293 = vmatprep.subr.bf16.mxu0 0
  %294 = vmatpush1.bf16.msra.mxu0 0
  %295 = vmatprep.subr.bf16.mxu0 0
  %296 = vmatpush1.bf16.msra.mxu0 0
  %297 = vmatprep.subr.bf16.mxu0 0
  %298 = vmatpush1.bf16.msra.mxu0 0
  %299 = vmatprep.subr.bf16.mxu0 0
  %300 = vmatpush1.bf16.msra.mxu0 0
  %301 = vmatprep.subr.bf16.mxu0 0
  %302 = vmatpush1.bf16.msra.mxu0 0
  %303 = vmatprep.subr.bf16.mxu0 0
  %304 = vmatpush1.bf16.msra.mxu0 0
  %305 = vmatprep.mubr.bf16.mxu0 0
  %306 = vmatmul.mubr.bf16.gmra.mrb[0].mxu0 %v69
  %v307 = vpop.f32.mrb[0].mxu0
  %v308 = vadd.f32 0.0, %v307
  %v309 = vpop.f32.mrb[0].mxu0
  %v310 = vadd.f32 0.0, %v309
  %v311 = vpop.f32.mrb[0].mxu0
  %v312 = vadd.f32 0.0, %v311
  %v313 = vpop.f32.mrb[0].mxu0
  %v314 = vadd.f32 0.0, %v313
  %315 = vdwg.mxu0
  %v316 = vadd.f32 %v61, %v265
  %v317 = vadd.f32 %v62, %v267
  %v318 = vadd.f32 %v63, %v308
  %v319 = vadd.f32 %v64, %v310
  %v320 = vadd.f32 %v65, %v269
  %v321 = vadd.f32 %v66, %v271
  %v322 = vadd.f32 %v67, %v312
  %v323 = vadd.f32 %v68, %v314
  %v324 = vxor.u32 %v316, 2147483648
  %v325 = vxor.u32 %v320, 2147483648
  %v326 = vmul.f32 %v324, 1.442695
  %v327 = vpow.pop %v326
  %v328 = vmul.f32 %v325, 1.442695
  %v329 = vpow.pop %v328
  %v330 = vadd.f32 %v327, 1.0
  %v331 = vadd.f32 %v329, 1.0
  %v332 = vrcp.pop %v330
  %v333 = vmul.f32 1.0, %v332
  %v334 = vrcp.pop %v331
  %v335 = vmul.f32 1.0, %v334
  %v336 = vxor.u32 %v317, 2147483648
  %v337 = vxor.u32 %v321, 2147483648
  %v338 = vmul.f32 %v336, 1.442695
  %v339 = vpow.pop %v338
  %v340 = vmul.f32 %v337, 1.442695
  %v341 = vpow.pop %v340
  %v342 = vadd.f32 %v339, 1.0
  %v343 = vadd.f32 %v341, 1.0
  %v344 = vrcp.pop %v342
  %v345 = vmul.f32 1.0, %v344
  %v346 = vrcp.pop %v343
  %v347 = vmul.f32 1.0, %v346
  %v348 = vtanh.pop %v318
  %v349 = vtanh.pop %v322
  %v350 = vxor.u32 %v319, 2147483648
  %v351 = vxor.u32 %v323, 2147483648
  %v352 = vmul.f32 %v350, 1.442695
  %v353 = vpow.pop %v352
  %v354 = vmul.f32 %v351, 1.442695
  %v355 = vpow.pop %v354
  %v356 = vadd.f32 %v353, 1.0
  %v357 = vadd.f32 %v355, 1.0
  %v358 = vrcp.pop %v356
  %v359 = vmul.f32 1.0, %v358
  %v360 = vrcp.pop %v357
  %v361 = vmul.f32 1.0, %v360
  %v362 = vmul.f32 %v345, %v55
  %v363 = vmul.f32 %v347, %v56
  %v364 = vmul.f32 %v333, %v348
  %v365 = vmul.f32 %v335, %v349
  %v366 = vadd.f32 %v362, %v364
  %v367 = vadd.f32 %v363, %v365
  %v368 = vtanh.pop %v366
  %v369 = vtanh.pop %v367
  %v370 = vmul.f32 %v359, %v368
  %v371 = vmul.f32 %v361, %v369
  %372 = vst [vmem:[%s4] sm:$0xff] %v370
  %373 = vst [vmem:[%s4 + $0x8] sm:$0xff] %v371
  %s374 = scalar_lea.vmem %s0, 32
  %v375 = vld [vmem:[%s374] sm:$0xff]
  %v376 = vld [vmem:[%s374 + $0x8] sm:$0xff]
  %v377 = vld [vmem:[%s374 + $0x10] sm:$0xff]
  %v378 = vld [vmem:[%s374 + $0x18] sm:$0xff]
  %v379 = vunpack.c.l.bf16 %v375
  %v380 = vunpack.c.h.bf16 %v375
  %v381 = vunpack.c.l.bf16 %v376
  %v382 = vunpack.c.h.bf16 %v376
  %v383 = vunpack.c.l.bf16 %v377
  %v384 = vunpack.c.h.bf16 %v377
  %v385 = vunpack.c.l.bf16 %v378
  %v386 = vunpack.c.h.bf16 %v378
  %v387 = vpack.c.bf16 %v371, %v370
  %388 = vmatprep.subr.bf16.mxu0 %v167
  %389 = vmatpush1.bf16.msra.mxu0 %v166
  %390 = vmatprep.subr.bf16.mxu0 %v171
  %391 = vmatpush1.bf16.msra.mxu0 %v170
  %392 = vmatprep.subr.bf16.mxu0 %v175
  %393 = vmatpush1.bf16.msra.mxu0 %v174
  %394 = vmatprep.subr.bf16.mxu0 %v179
  %395 = vmatpush1.bf16.msra.mxu0 %v178
  %396 = vmatprep.subr.bf16.mxu0 %v183
  %397 = vmatpush1.bf16.msra.mxu0 %v182
  %398 = vmatprep.subr.bf16.mxu0 %v187
  %399 = vmatpush1.bf16.msra.mxu0 %v186
  %400 = vmatprep.subr.bf16.mxu0 %v191
  %401 = vmatpush1.bf16.msra.mxu0 %v190
  %402 = vmatprep.subr.bf16.mxu0 %v195
  %403 = vmatpush1.bf16.msra.mxu0 %v194
  %404 = vmatprep.subr.bf16.mxu0 0
  %405 = vmatpush1.bf16.msra.mxu0 0
  %406 = vmatprep.subr.bf16.mxu0 0
  %407 = vmatpush1.bf16.msra.mxu0 0
  %408 = vmatprep.subr.bf16.mxu0 0
  %409 = vmatpush1.bf16.msra.mxu0 0
  %410 = vmatprep.subr.bf16.mxu0 0
  %411 = vmatpush1.bf16.msra.mxu0 0
  %412 = vmatprep.subr.bf16.mxu0 0
  %413 = vmatpush1.bf16.msra.mxu0 0
  %414 = vmatprep.subr.bf16.mxu0 0
  %415 = vmatpush1.bf16.msra.mxu0 0
  %416 = vmatprep.subr.bf16.mxu0 0
  %417 = vmatpush1.bf16.msra.mxu0 0
  %418 = vmatprep.subr.bf16.mxu0 0
  %419 = vmatpush1.bf16.msra.mxu0 0
  %420 = vmatprep.mubr.bf16.mxu0 0
  %421 = vmatmul.mubr.bf16.gmra.mrb[0].mxu0 %v387
  %v422 = vpop.f32.mrb[0].mxu0
  %v423 = vadd.f32 0.0, %v422
  %v424 = vpop.f32.mrb[0].mxu0
  %v425 = vadd.f32 0.0, %v424
  %v426 = vpop.f32.mrb[0].mxu0
  %v427 = vadd.f32 0.0, %v426
  %v428 = vpop.f32.mrb[0].mxu0
  %v429 = vadd.f32 0.0, %v428
  %430 = vdwg.mxu0
  %431 = vmatprep.subr.bf16.mxu0 %v169
  %432 = vmatpush1.bf16.msra.mxu0 %v168
  %433 = vmatprep.subr.bf16.mxu0 %v173
  %434 = vmatpush1.bf16.msra.mxu0 %v172
  %435 = vmatprep.subr.bf16.mxu0 %v177
  %436 = vmatpush1.bf16.msra.mxu0 %v176
  %437 = vmatprep.subr.bf16.mxu0 %v181
  %438 = vmatpush1.bf16.msra.mxu0 %v180
  %439 = vmatprep.subr.bf16.mxu0 %v185
  %440 = vmatpush1.bf16.msra.mxu0 %v184
  %441 = vmatprep.subr.bf16.mxu0 %v189
  %442 = vmatpush1.bf16.msra.mxu0 %v188
  %443 = vmatprep.subr.bf16.mxu0 %v193
  %444 = vmatpush1.bf16.msra.mxu0 %v192
  %445 = vmatprep.subr.bf16.mxu0 %v197
  %446 = vmatpush1.bf16.msra.mxu0 %v196
  %447 = vmatprep.subr.bf16.mxu0 0
  %448 = vmatpush1.bf16.msra.mxu0 0
  %449 = vmatprep.subr.bf16.mxu0 0
  %450 = vmatpush1.bf16.msra.mxu0 0
  %451 = vmatprep.subr.bf16.mxu0 0
  %452 = vmatpush1.bf16.msra.mxu0 0
  %453 = vmatprep.subr.bf16.mxu0 0
  %454 = vmatpush1.bf16.msra.mxu0 0
  %455 = vmatprep.subr.bf16.mxu0 0
  %456 = vmatpush1.bf16.msra.mxu0 0
  %457 = vmatprep.subr.bf16.mxu0 0
  %458 = vmatpush1.bf16.msra.mxu0 0
  %459 = vmatprep.subr.bf16.mxu0 0
  %460 = vmatpush1.bf16.msra.mxu0 0
  %461 = vmatprep.subr.bf16.mxu0 0
  %462 = vmatpush1.bf16.msra.mxu0 0
  %463 = vmatprep.mubr.bf16.mxu0 0
  %464 = vmatmul.mubr.bf16.gmra.mrb[0].mxu0 %v387
  %v465 = vpop.f32.mrb[0].mxu0
  %v466 = vadd.f32 0.0, %v465
  %v467 = vpop.f32.mrb[0].mxu0
  %v468 = vadd.f32 0.0, %v467
  %v469 = vpop.f32.mrb[0].mxu0
  %v470 = vadd.f32 0.0, %v469
  %v471 = vpop.f32.mrb[0].mxu0
  %v472 = vadd.f32 0.0, %v471
  %473 = vdwg.mxu0
  %v474 = vadd.f32 %v379, %v423
  %v475 = vadd.f32 %v380, %v425
  %v476 = vadd.f32 %v381, %v466
  %v477 = vadd.f32 %v382, %v468
  %v478 = vadd.f32 %v383, %v427
  %v479 = vadd.f32 %v384, %v429
  %v480 = vadd.f32 %v385, %v470
  %v481 = vadd.f32 %v386, %v472
  %v482 = vxor.u32 %v474, 2147483648
  %v483 = vxor.u32 %v478, 2147483648
  %v484 = vmul.f32 %v482, 1.442695
  %v485 = vpow.pop %v484
  %v486 = vmul.f32 %v483, 1.442695
  %v487 = vpow.pop %v486
  %v488 = vadd.f32 %v485, 1.0
  %v489 = vadd.f32 %v487, 1.0
  %v490 = vrcp.pop %v488
  %v491 = vmul.f32 1.0, %v490
  %v492 = vrcp.pop %v489
  %v493 = vmul.f32 1.0, %v492
  %v494 = vxor.u32 %v475, 2147483648
  %v495 = vxor.u32 %v479, 2147483648
  %v496 = vmul.f32 %v494, 1.442695
  %v497 = vpow.pop %v496
  %v498 = vmul.f32 %v495, 1.442695
  %v499 = vpow.pop %v498
  %v500 = vadd.f32 %v497, 1.0
  %v501 = vadd.f32 %v499, 1.0
  %v502 = vrcp.pop %v500
  %v503 = vmul.f32 1.0, %v502
  %v504 = vrcp.pop %v501
  %v505 = vmul.f32 1.0, %v504
  %v506 = vtanh.pop %v476
  %v507 = vtanh.pop %v480
  %v508 = vxor.u32 %v477, 2147483648
  %v509 = vxor.u32 %v481, 2147483648
  %v510 = vmul.f32 %v508, 1.442695
  %v511 = vpow.pop %v510
  %v512 = vmul.f32 %v509, 1.442695
  %v513 = vpow.pop %v512
  %v514 = vadd.f32 %v511, 1.0
  %v515 = vadd.f32 %v513, 1.0
  %v516 = vrcp.pop %v514
  %v517 = vmul.f32 1.0, %v516
  %v518 = vrcp.pop %v515
  %v519 = vmul.f32 1.0, %v518
  %v520 = vmul.f32 %v503, %v366
  %v521 = vmul.f32 %v505, %v367
  %v522 = vmul.f32 %v491, %v506
  %v523 = vmul.f32 %v493, %v507
  %v524 = vadd.f32 %v520, %v522
  %v525 = vadd.f32 %v521, %v523
  %v526 = vtanh.pop %v524
  %v527 = vtanh.pop %v525
  %v528 = vmul.f32 %v517, %v526
  %v529 = vmul.f32 %v519, %v527
  %s530 = scalar_lea.vmem %s4, 16
  %531 = vst [vmem:[%s530] sm:$0xff] %v528
  %532 = vst [vmem:[%s530 + $0x8] sm:$0xff] %v529
  %s533 = scalar_lea.vmem %s0, 64
  %v534 = vld [vmem:[%s533] sm:$0xff]
  %v535 = vld [vmem:[%s533 + $0x8] sm:$0xff]
  %v536 = vld [vmem:[%s533 + $0x10] sm:$0xff]
  %v537 = vld [vmem:[%s533 + $0x18] sm:$0xff]
  %v538 = vunpack.c.l.bf16 %v534
  %v539 = vunpack.c.h.bf16 %v534
  %v540 = vunpack.c.l.bf16 %v535
  %v541 = vunpack.c.h.bf16 %v535
  %v542 = vunpack.c.l.bf16 %v536
  %v543 = vunpack.c.h.bf16 %v536
  %v544 = vunpack.c.l.bf16 %v537
  %v545 = vunpack.c.h.bf16 %v537
  %v546 = vpack.c.bf16 %v529, %v528
  %547 = vmatprep.subr.bf16.mxu0 %v167
  %548 = vmatpush1.bf16.msra.mxu0 %v166
  %549 = vmatprep.subr.bf16.mxu0 %v171
  %550 = vmatpush1.bf16.msra.mxu0 %v170
  %551 = vmatprep.subr.bf16.mxu0 %v175
  %552 = vmatpush1.bf16.msra.mxu0 %v174
  %553 = vmatprep.subr.bf16.mxu0 %v179
  %554 = vmatpush1.bf16.msra.mxu0 %v178
  %555 = vmatprep.subr.bf16.mxu0 %v183
  %556 = vmatpush1.bf16.msra.mxu0 %v182
  %557 = vmatprep.subr.bf16.mxu0 %v187
  %558 = vmatpush1.bf16.msra.mxu0 %v186
  %559 = vmatprep.subr.bf16.mxu0 %v191
  %560 = vmatpush1.bf16.msra.mxu0 %v190
  %561 = vmatprep.subr.bf16.mxu0 %v195
  %562 = vmatpush1.bf16.msra.mxu0 %v194
  %563 = vmatprep.subr.bf16.mxu0 0
  %564 = vmatpush1.bf16.msra.mxu0 0
  %565 = vmatprep.subr.bf16.mxu0 0
  %566 = vmatpush1.bf16.msra.mxu0 0
  %567 = vmatprep.subr.bf16.mxu0 0
  %568 = vmatpush1.bf16.msra.mxu0 0
  %569 = vmatprep.subr.bf16.mxu0 0
  %570 = vmatpush1.bf16.msra.mxu0 0
  %571 = vmatprep.subr.bf16.mxu0 0
  %572 = vmatpush1.bf16.msra.mxu0 0
  %573 = vmatprep.subr.bf16.mxu0 0
  %574 = vmatpush1.bf16.msra.mxu0 0
  %575 = vmatprep.subr.bf16.mxu0 0
  %576 = vmatpush1.bf16.msra.mxu0 0
  %577 = vmatprep.subr.bf16.mxu0 0
  %578 = vmatpush1.bf16.msra.mxu0 0
  %579 = vmatprep.mubr.bf16.mxu0 0
  %580 = vmatmul.mubr.bf16.gmra.mrb[0].mxu0 %v546
  %v581 = vpop.f32.mrb[0].mxu0
  %v582 = vadd.f32 0.0, %v581
  %v583 = vpop.f32.mrb[0].mxu0
  %v584 = vadd.f32 0.0, %v583
  %v585 = vpop.f32.mrb[0].mxu0
  %v586 = vadd.f32 0.0, %v585
  %v587 = vpop.f32.mrb[0].mxu0
  %v588 = vadd.f32 0.0, %v587
  %589 = vdwg.mxu0
  %590 = vmatprep.subr.bf16.mxu0 %v169
  %591 = vmatpush1.bf16.msra.mxu0 %v168
  %592 = vmatprep.subr.bf16.mxu0 %v173
  %593 = vmatpush1.bf16.msra.mxu0 %v172
  %594 = vmatprep.subr.bf16.mxu0 %v177
  %595 = vmatpush1.bf16.msra.mxu0 %v176
  %596 = vmatprep.subr.bf16.mxu0 %v181
  %597 = vmatpush1.bf16.msra.mxu0 %v180
  %598 = vmatprep.subr.bf16.mxu0 %v185
  %599 = vmatpush1.bf16.msra.mxu0 %v184
  %600 = vmatprep.subr.bf16.mxu0 %v189
  %601 = vmatpush1.bf16.msra.mxu0 %v188
  %602 = vmatprep.subr.bf16.mxu0 %v193
  %603 = vmatpush1.bf16.msra.mxu0 %v192
  %604 = vmatprep.subr.bf16.mxu0 %v197
  %605 = vmatpush1.bf16.msra.mxu0 %v196
  %606 = vmatprep.subr.bf16.mxu0 0
  %607 = vmatpush1.bf16.msra.mxu0 0
  %608 = vmatprep.subr.bf16.mxu0 0
  %609 = vmatpush1.bf16.msra.mxu0 0
  %610 = vmatprep.subr.bf16.mxu0 0
  %611 = vmatpush1.bf16.msra.mxu0 0
  %612 = vmatprep.subr.bf16.mxu0 0
  %613 = vmatpush1.bf16.msra.mxu0 0
  %614 = vmatprep.subr.bf16.mxu0 0
  %615 = vmatpush1.bf16.msra.mxu0 0
  %616 = vmatprep.subr.bf16.mxu0 0
  %617 = vmatpush1.bf16.msra.mxu0 0
  %618 = vmatprep.subr.bf16.mxu0 0
  %619 = vmatpush1.bf16.msra.mxu0 0
  %620 = vmatprep.subr.bf16.mxu0 0
  %621 = vmatpush1.bf16.msra.mxu0 0
  %622 = vmatprep.mubr.bf16.mxu0 0
  %623 = vmatmul.mubr.bf16.gmra.mrb[0].mxu0 %v546
  %v624 = vpop.f32.mrb[0].mxu0
  %v625 = vadd.f32 0.0, %v624
  %v626 = vpop.f32.mrb[0].mxu0
  %v627 = vadd.f32 0.0, %v626
  %v628 = vpop.f32.mrb[0].mxu0
  %v629 = vadd.f32 0.0, %v628
  %v630 = vpop.f32.mrb[0].mxu0
  %v631 = vadd.f32 0.0, %v630
  %632 = vdwg.mxu0
  %v633 = vadd.f32 %v538, %v582
  %v634 = vadd.f32 %v539, %v584
  %v635 = vadd.f32 %v540, %v625
  %v636 = vadd.f32 %v541, %v627
  %v637 = vadd.f32 %v542, %v586
  %v638 = vadd.f32 %v543, %v588
  %v639 = vadd.f32 %v544, %v629
  %v640 = vadd.f32 %v545, %v631
  %v641 = vxor.u32 %v633, 2147483648
  %v642 = vxor.u32 %v637, 2147483648
  %v643 = vmul.f32 %v641, 1.442695
  %v644 = vpow.pop %v643
  %v645 = vmul.f32 %v642, 1.442695
  %v646 = vpow.pop %v645
  %v647 = vadd.f32 %v644, 1.0
  %v648 = vadd.f32 %v646, 1.0
  %v649 = vrcp.pop %v647
  %v650 = vmul.f32 1.0, %v649
  %v651 = vrcp.pop %v648
  %v652 = vmul.f32 1.0, %v651
  %v653 = vxor.u32 %v634, 2147483648
  %v654 = vxor.u32 %v638, 2147483648
  %v655 = vmul.f32 %v653, 1.442695
  %v656 = vpow.pop %v655
  %v657 = vmul.f32 %v654, 1.442695
  %v658 = vpow.pop %v657
  %v659 = vadd.f32 %v656, 1.0
  %v660 = vadd.f32 %v658, 1.0
  %v661 = vrcp.pop %v659
  %v662 = vmul.f32 1.0, %v661
  %v663 = vrcp.pop %v660
  %v664 = vmul.f32 1.0, %v663
  %v665 = vtanh.pop %v635
  %v666 = vtanh.pop %v639
  %v667 = vxor.u32 %v636, 2147483648
  %v668 = vxor.u32 %v640, 2147483648
  %v669 = vmul.f32 %v667, 1.442695
  %v670 = vpow.pop %v669
  %v671 = vmul.f32 %v668, 1.442695
  %v672 = vpow.pop %v671
  %v673 = vadd.f32 %v670, 1.0
  %v674 = vadd.f32 %v672, 1.0
  %v675 = vrcp.pop %v673
  %v676 = vmul.f32 1.0, %v675
  %v677 = vrcp.pop %v674
  %v678 = vmul.f32 1.0, %v677
  %v679 = vmul.f32 %v662, %v524
  %v680 = vmul.f32 %v664, %v525
  %v681 = vmul.f32 %v650, %v665
  %v682 = vmul.f32 %v652, %v666
  %v683 = vadd.f32 %v679, %v681
  %v684 = vadd.f32 %v680, %v682
  %v685 = vtanh.pop %v683
  %v686 = vtanh.pop %v684
  %v687 = vmul.f32 %v676, %v685
  %v688 = vmul.f32 %v678, %v686
  %s689 = scalar_lea.vmem %s4, 32
  %690 = vst [vmem:[%s689] sm:$0xff] %v687
  %691 = vst [vmem:[%s689 + $0x8] sm:$0xff] %v688
  %s692 = scalar_lea.vmem %s0, 96
  %v693 = vld [vmem:[%s692] sm:$0xff]
  %v694 = vld [vmem:[%s692 + $0x8] sm:$0xff]
  %v695 = vld [vmem:[%s692 + $0x10] sm:$0xff]
  %v696 = vld [vmem:[%s692 + $0x18] sm:$0xff]
  %v697 = vunpack.c.l.bf16 %v693
  %v698 = vunpack.c.h.bf16 %v693
  %v699 = vunpack.c.l.bf16 %v694
  %v700 = vunpack.c.h.bf16 %v694
  %v701 = vunpack.c.l.bf16 %v695
  %v702 = vunpack.c.h.bf16 %v695
  %v703 = vunpack.c.l.bf16 %v696
  %v704 = vunpack.c.h.bf16 %v696
  %v705 = vpack.c.bf16 %v688, %v687
  %706 = vmatprep.subr.bf16.mxu0 %v167
  %707 = vmatpush1.bf16.msra.mxu0 %v166
  %708 = vmatprep.subr.bf16.mxu0 %v171
  %709 = vmatpush1.bf16.msra.mxu0 %v170
  %710 = vmatprep.subr.bf16.mxu0 %v175
  %711 = vmatpush1.bf16.msra.mxu0 %v174
  %712 = vmatprep.subr.bf16.mxu0 %v179
  %713 = vmatpush1.bf16.msra.mxu0 %v178
  %714 = vmatprep.subr.bf16.mxu0 %v183
  %715 = vmatpush1.bf16.msra.mxu0 %v182
  %716 = vmatprep.subr.bf16.mxu0 %v187
  %717 = vmatpush1.bf16.msra.mxu0 %v186
  %718 = vmatprep.subr.bf16.mxu0 %v191
  %719 = vmatpush1.bf16.msra.mxu0 %v190
  %720 = vmatprep.subr.bf16.mxu0 %v195
  %721 = vmatpush1.bf16.msra.mxu0 %v194
  %722 = vmatprep.subr.bf16.mxu0 0
  %723 = vmatpush1.bf16.msra.mxu0 0
  %724 = vmatprep.subr.bf16.mxu0 0
  %725 = vmatpush1.bf16.msra.mxu0 0
  %726 = vmatprep.subr.bf16.mxu0 0
  %727 = vmatpush1.bf16.msra.mxu0 0
  %728 = vmatprep.subr.bf16.mxu0 0
  %729 = vmatpush1.bf16.msra.mxu0 0
  %730 = vmatprep.subr.bf16.mxu0 0
  %731 = vmatpush1.bf16.msra.mxu0 0
  %732 = vmatprep.subr.bf16.mxu0 0
  %733 = vmatpush1.bf16.msra.mxu0 0
  %734 = vmatprep.subr.bf16.mxu0 0
  %735 = vmatpush1.bf16.msra.mxu0 0
  %736 = vmatprep.subr.bf16.mxu0 0
  %737 = vmatpush1.bf16.msra.mxu0 0
  %738 = vmatprep.mubr.bf16.mxu0 0
  %739 = vmatmul.mubr.bf16.gmra.mrb[0].mxu0 %v705
  %v740 = vpop.f32.mrb[0].mxu0
  %v741 = vadd.f32 0.0, %v740
  %v742 = vpop.f32.mrb[0].mxu0
  %v743 = vadd.f32 0.0, %v742
  %v744 = vpop.f32.mrb[0].mxu0
  %v745 = vadd.f32 0.0, %v744
  %v746 = vpop.f32.mrb[0].mxu0
  %v747 = vadd.f32 0.0, %v746
  %748 = vdwg.mxu0
  %749 = vmatprep.subr.bf16.mxu0 %v169
  %750 = vmatpush1.bf16.msra.mxu0 %v168
  %751 = vmatprep.subr.bf16.mxu0 %v173
  %752 = vmatpush1.bf16.msra.mxu0 %v172
  %753 = vmatprep.subr.bf16.mxu0 %v177
  %754 = vmatpush1.bf16.msra.mxu0 %v176
  %755 = vmatprep.subr.bf16.mxu0 %v181
  %756 = vmatpush1.bf16.msra.mxu0 %v180
  %757 = vmatprep.subr.bf16.mxu0 %v185
  %758 = vmatpush1.bf16.msra.mxu0 %v184
  %759 = vmatprep.subr.bf16.mxu0 %v189
  %760 = vmatpush1.bf16.msra.mxu0 %v188
  %761 = vmatprep.subr.bf16.mxu0 %v193
  %762 = vmatpush1.bf16.msra.mxu0 %v192
  %763 = vmatprep.subr.bf16.mxu0 %v197
  %764 = vmatpush1.bf16.msra.mxu0 %v196
  %765 = vmatprep.subr.bf16.mxu0 0
  %766 = vmatpush1.bf16.msra.mxu0 0
  %767 = vmatprep.subr.bf16.mxu0 0
  %768 = vmatpush1.bf16.msra.mxu0 0
  %769 = vmatprep.subr.bf16.mxu0 0
  %770 = vmatpush1.bf16.msra.mxu0 0
  %771 = vmatprep.subr.bf16.mxu0 0
  %772 = vmatpush1.bf16.msra.mxu0 0
  %773 = vmatprep.subr.bf16.mxu0 0
  %774 = vmatpush1.bf16.msra.mxu0 0
  %775 = vmatprep.subr.bf16.mxu0 0
  %776 = vmatpush1.bf16.msra.mxu0 0
  %777 = vmatprep.subr.bf16.mxu0 0
  %778 = vmatpush1.bf16.msra.mxu0 0
  %779 = vmatprep.subr.bf16.mxu0 0
  %780 = vmatpush1.bf16.msra.mxu0 0
  %781 = vmatprep.mubr.bf16.mxu0 0
  %782 = vmatmul.mubr.bf16.gmra.mrb[0].mxu0 %v705
  %v783 = vpop.f32.mrb[0].mxu0
  %v784 = vadd.f32 0.0, %v783
  %v785 = vpop.f32.mrb[0].mxu0
  %v786 = vadd.f32 0.0, %v785
  %v787 = vpop.f32.mrb[0].mxu0
  %v788 = vadd.f32 0.0, %v787
  %v789 = vpop.f32.mrb[0].mxu0
  %v790 = vadd.f32 0.0, %v789
  %791 = vdwg.mxu0
  %v792 = vadd.f32 %v697, %v741
  %v793 = vadd.f32 %v698, %v743
  %v794 = vadd.f32 %v699, %v784
  %v795 = vadd.f32 %v700, %v786
  %v796 = vadd.f32 %v701, %v745
  %v797 = vadd.f32 %v702, %v747
  %v798 = vadd.f32 %v703, %v788
  %v799 = vadd.f32 %v704, %v790
  %v800 = vxor.u32 %v792, 2147483648
  %v801 = vxor.u32 %v796, 2147483648
  %v802 = vmul.f32 %v800, 1.442695
  %v803 = vpow.pop %v802
  %v804 = vmul.f32 %v801, 1.442695
  %v805 = vpow.pop %v804
  %v806 = vadd.f32 %v803, 1.0
  %v807 = vadd.f32 %v805, 1.0
  %v808 = vrcp.pop %v806
  %v809 = vmul.f32 1.0, %v808
  %v810 = vrcp.pop %v807
  %v811 = vmul.f32 1.0, %v810
  %v812 = vxor.u32 %v793, 2147483648
  %v813 = vxor.u32 %v797, 2147483648
  %v814 = vmul.f32 %v812, 1.442695
  %v815 = vpow.pop %v814
  %v816 = vmul.f32 %v813, 1.442695
  %v817 = vpow.pop %v816
  %v818 = vadd.f32 %v815, 1.0
  %v819 = vadd.f32 %v817, 1.0
  %v820 = vrcp.pop %v818
  %v821 = vmul.f32 1.0, %v820
  %v822 = vrcp.pop %v819
  %v823 = vmul.f32 1.0, %v822
  %v824 = vtanh.pop %v794
  %v825 = vtanh.pop %v798
  %v826 = vxor.u32 %v795, 2147483648
  %v827 = vxor.u32 %v799, 2147483648
  %v828 = vmul.f32 %v826, 1.442695
  %v829 = vpow.pop %v828
  %v830 = vmul.f32 %v827, 1.442695
  %v831 = vpow.pop %v830
  %v832 = vadd.f32 %v829, 1.0
  %v833 = vadd.f32 %v831, 1.0
  %v834 = vrcp.pop %v832
  %v835 = vmul.f32 1.0, %v834
  %v836 = vrcp.pop %v833
  %v837 = vmul.f32 1.0, %v836
  %v838 = vmul.f32 %v821, %v683
  %v839 = vmul.f32 %v823, %v684
  %v840 = vmul.f32 %v809, %v824
  %v841 = vmul.f32 %v811, %v825
  %v842 = vadd.f32 %v838, %v840
  %v843 = vadd.f32 %v839, %v841
  %v844 = vtanh.pop %v842
  %v845 = vtanh.pop %v843
  %v846 = vmul.f32 %v835, %v844
  %v847 = vmul.f32 %v837, %v845
  %s848 = scalar_lea.vmem %s4, 48
  %849 = vst [vmem:[%s848] sm:$0xff] %v846
  %850 = vst [vmem:[%s848 + $0x8] sm:$0xff] %v847
  %s851 = scalar_lea.vmem %s0, 128
  %v852 = vld [vmem:[%s851] sm:$0xff]
  %v853 = vld [vmem:[%s851 + $0x8] sm:$0xff]
  %v854 = vld [vmem:[%s851 + $0x10] sm:$0xff]
  %v855 = vld [vmem:[%s851 + $0x18] sm:$0xff]
  %v856 = vunpack.c.l.bf16 %v852
  %v857 = vunpack.c.h.bf16 %v852
  %v858 = vunpack.c.l.bf16 %v853
  %v859 = vunpack.c.h.bf16 %v853
  %v860 = vunpack.c.l.bf16 %v854
  %v861 = vunpack.c.h.bf16 %v854
  %v862 = vunpack.c.l.bf16 %v855
  %v863 = vunpack.c.h.bf16 %v855
  %v864 = vpack.c.bf16 %v847, %v846
  %865 = vmatprep.subr.bf16.mxu0 %v167
  %866 = vmatpush1.bf16.msra.mxu0 %v166
  %867 = vmatprep.subr.bf16.mxu0 %v171
  %868 = vmatpush1.bf16.msra.mxu0 %v170
  %869 = vmatprep.subr.bf16.mxu0 %v175
  %870 = vmatpush1.bf16.msra.mxu0 %v174
  %871 = vmatprep.subr.bf16.mxu0 %v179
  %872 = vmatpush1.bf16.msra.mxu0 %v178
  %873 = vmatprep.subr.bf16.mxu0 %v183
  %874 = vmatpush1.bf16.msra.mxu0 %v182
  %875 = vmatprep.subr.bf16.mxu0 %v187
  %876 = vmatpush1.bf16.msra.mxu0 %v186
  %877 = vmatprep.subr.bf16.mxu0 %v191
  %878 = vmatpush1.bf16.msra.mxu0 %v190
  %879 = vmatprep.subr.bf16.mxu0 %v195
  %880 = vmatpush1.bf16.msra.mxu0 %v194
  %881 = vmatprep.subr.bf16.mxu0 0
  %882 = vmatpush1.bf16.msra.mxu0 0
  %883 = vmatprep.subr.bf16.mxu0 0
  %884 = vmatpush1.bf16.msra.mxu0 0
  %885 = vmatprep.subr.bf16.mxu0 0
  %886 = vmatpush1.bf16.msra.mxu0 0
  %887 = vmatprep.subr.bf16.mxu0 0
  %888 = vmatpush1.bf16.msra.mxu0 0
  %889 = vmatprep.subr.bf16.mxu0 0
  %890 = vmatpush1.bf16.msra.mxu0 0
  %891 = vmatprep.subr.bf16.mxu0 0
  %892 = vmatpush1.bf16.msra.mxu0 0
  %893 = vmatprep.subr.bf16.mxu0 0
  %894 = vmatpush1.bf16.msra.mxu0 0
  %895 = vmatprep.subr.bf16.mxu0 0
  %896 = vmatpush1.bf16.msra.mxu0 0
  %897 = vmatprep.mubr.bf16.mxu0 0
  %898 = vmatmul.mubr.bf16.gmra.mrb[0].mxu0 %v864
  %v899 = vpop.f32.mrb[0].mxu0
  %v900 = vadd.f32 0.0, %v899
  %v901 = vpop.f32.mrb[0].mxu0
  %v902 = vadd.f32 0.0, %v901
  %v903 = vpop.f32.mrb[0].mxu0
  %v904 = vadd.f32 0.0, %v903
  %v905 = vpop.f32.mrb[0].mxu0
  %v906 = vadd.f32 0.0, %v905
  %907 = vdwg.mxu0
  %908 = vmatprep.subr.bf16.mxu0 %v169
  %909 = vmatpush1.bf16.msra.mxu0 %v168
  %910 = vmatprep.subr.bf16.mxu0 %v173
  %911 = vmatpush1.bf16.msra.mxu0 %v172
  %912 = vmatprep.subr.bf16.mxu0 %v177
  %913 = vmatpush1.bf16.msra.mxu0 %v176
  %914 = vmatprep.subr.bf16.mxu0 %v181
  %915 = vmatpush1.bf16.msra.mxu0 %v180
  %916 = vmatprep.subr.bf16.mxu0 %v185
  %917 = vmatpush1.bf16.msra.mxu0 %v184
  %918 = vmatprep.subr.bf16.mxu0 %v189
  %919 = vmatpush1.bf16.msra.mxu0 %v188
  %920 = vmatprep.subr.bf16.mxu0 %v193
  %921 = vmatpush1.bf16.msra.mxu0 %v192
  %922 = vmatprep.subr.bf16.mxu0 %v197
  %923 = vmatpush1.bf16.msra.mxu0 %v196
  %924 = vmatprep.subr.bf16.mxu0 0
  %925 = vmatpush1.bf16.msra.mxu0 0
  %926 = vmatprep.subr.bf16.mxu0 0
  %927 = vmatpush1.bf16.msra.mxu0 0
  %928 = vmatprep.subr.bf16.mxu0 0
  %929 = vmatpush1.bf16.msra.mxu0 0
  %930 = vmatprep.subr.bf16.mxu0 0
  %931 = vmatpush1.bf16.msra.mxu0 0
  %932 = vmatprep.subr.bf16.mxu0 0
  %933 = vmatpush1.bf16.msra.mxu0 0
  %934 = vmatprep.subr.bf16.mxu0 0
  %935 = vmatpush1.bf16.msra.mxu0 0
  %936 = vmatprep.subr.bf16.mxu0 0
  %937 = vmatpush1.bf16.msra.mxu0 0
  %938 = vmatprep.subr.bf16.mxu0 0
  %939 = vmatpush1.bf16.msra.mxu0 0
  %940 = vmatprep.mubr.bf16.mxu0 0
  %941 = vmatmul.mubr.bf16.gmra.mrb[0].mxu0 %v864
  %v942 = vpop.f32.mrb[0].mxu0
  %v943 = vadd.f32 0.0, %v942
  %v944 = vpop.f32.mrb[0].mxu0
  %v945 = vadd.f32 0.0, %v944
  %v946 = vpop.f32.mrb[0].mxu0
  %v947 = vadd.f32 0.0, %v946
  %v948 = vpop.f32.mrb[0].mxu0
  %v949 = vadd.f32 0.0, %v948
  %950 = vdwg.mxu0
  %v951 = vadd.f32 %v856, %v900
  %v952 = vadd.f32 %v857, %v902
  %v953 = vadd.f32 %v858, %v943
  %v954 = vadd.f32 %v859, %v945
  %v955 = vadd.f32 %v860, %v904
  %v956 = vadd.f32 %v861, %v906
  %v957 = vadd.f32 %v862, %v947
  %v958 = vadd.f32 %v863, %v949
  %v959 = vxor.u32 %v951, 2147483648
  %v960 = vxor.u32 %v955, 2147483648
  %v961 = vmul.f32 %v959, 1.442695
  %v962 = vpow.pop %v961
  %v963 = vmul.f32 %v960, 1.442695
  %v964 = vpow.pop %v963
  %v965 = vadd.f32 %v962, 1.0
  %v966 = vadd.f32 %v964, 1.0
  %v967 = vrcp.pop %v965
  %v968 = vmul.f32 1.0, %v967
  %v969 = vrcp.pop %v966
  %v970 = vmul.f32 1.0, %v969
  %v971 = vxor.u32 %v952, 2147483648
  %v972 = vxor.u32 %v956, 2147483648
  %v973 = vmul.f32 %v971, 1.442695
  %v974 = vpow.pop %v973
  %v975 = vmul.f32 %v972, 1.442695
  %v976 = vpow.pop %v975
  %v977 = vadd.f32 %v974, 1.0
  %v978 = vadd.f32 %v976, 1.0
  %v979 = vrcp.pop %v977
  %v980 = vmul.f32 1.0, %v979
  %v981 = vrcp.pop %v978
  %v982 = vmul.f32 1.0, %v981
  %v983 = vtanh.pop %v953
  %v984 = vtanh.pop %v957
  %v985 = vxor.u32 %v954, 2147483648
  %v986 = vxor.u32 %v958, 2147483648
  %v987 = vmul.f32 %v985, 1.442695
  %v988 = vpow.pop %v987
  %v989 = vmul.f32 %v986, 1.442695
  %v990 = vpow.pop %v989
  %v991 = vadd.f32 %v988, 1.0
  %v992 = vadd.f32 %v990, 1.0
  %v993 = vrcp.pop %v991
  %v994 = vmul.f32 1.0, %v993
  %v995 = vrcp.pop %v992
  %v996 = vmul.f32 1.0, %v995
  %v997 = vmul.f32 %v980, %v842
  %v998 = vmul.f32 %v982, %v843
  %v999 = vmul.f32 %v968, %v983
  %v1000 = vmul.f32 %v970, %v984
  %v1001 = vadd.f32 %v997, %v999
  %v1002 = vadd.f32 %v998, %v1000
  %v1003 = vtanh.pop %v1001
  %v1004 = vtanh.pop %v1002
  %v1005 = vmul.f32 %v994, %v1003
  %v1006 = vmul.f32 %v996, %v1004
  %s1007 = scalar_lea.vmem %s4, 64
  %1008 = vst [vmem:[%s1007] sm:$0xff] %v1005
  %1009 = vst [vmem:[%s1007 + $0x8] sm:$0xff] %v1006
  %s1010 = scalar_lea.vmem %s0, 160
  %v1011 = vld [vmem:[%s1010] sm:$0xff]
  %v1012 = vld [vmem:[%s1010 + $0x8] sm:$0xff]
  %v1013 = vld [vmem:[%s1010 + $0x10] sm:$0xff]
  %v1014 = vld [vmem:[%s1010 + $0x18] sm:$0xff]
  %v1015 = vunpack.c.l.bf16 %v1011
  %v1016 = vunpack.c.h.bf16 %v1011
  %v1017 = vunpack.c.l.bf16 %v1012
  %v1018 = vunpack.c.h.bf16 %v1012
  %v1019 = vunpack.c.l.bf16 %v1013
  %v1020 = vunpack.c.h.bf16 %v1013
  %v1021 = vunpack.c.l.bf16 %v1014
  %v1022 = vunpack.c.h.bf16 %v1014
  %v1023 = vpack.c.bf16 %v1006, %v1005
  %1024 = vmatprep.subr.bf16.mxu0 %v167
  %1025 = vmatpush1.bf16.msra.mxu0 %v166
  %1026 = vmatprep.subr.bf16.mxu0 %v171
  %1027 = vmatpush1.bf16.msra.mxu0 %v170
  %1028 = vmatprep.subr.bf16.mxu0 %v175
  %1029 = vmatpush1.bf16.msra.mxu0 %v174
  %1030 = vmatprep.subr.bf16.mxu0 %v179
  %1031 = vmatpush1.bf16.msra.mxu0 %v178
  %1032 = vmatprep.subr.bf16.mxu0 %v183
  %1033 = vmatpush1.bf16.msra.mxu0 %v182
  %1034 = vmatprep.subr.bf16.mxu0 %v187
  %1035 = vmatpush1.bf16.msra.mxu0 %v186
  %1036 = vmatprep.subr.bf16.mxu0 %v191
  %1037 = vmatpush1.bf16.msra.mxu0 %v190
  %1038 = vmatprep.subr.bf16.mxu0 %v195
  %1039 = vmatpush1.bf16.msra.mxu0 %v194
  %1040 = vmatprep.subr.bf16.mxu0 0
  %1041 = vmatpush1.bf16.msra.mxu0 0
  %1042 = vmatprep.subr.bf16.mxu0 0
  %1043 = vmatpush1.bf16.msra.mxu0 0
  %1044 = vmatprep.subr.bf16.mxu0 0
  %1045 = vmatpush1.bf16.msra.mxu0 0
  %1046 = vmatprep.subr.bf16.mxu0 0
  %1047 = vmatpush1.bf16.msra.mxu0 0
  %1048 = vmatprep.subr.bf16.mxu0 0
  %1049 = vmatpush1.bf16.msra.mxu0 0
  %1050 = vmatprep.subr.bf16.mxu0 0
  %1051 = vmatpush1.bf16.msra.mxu0 0
  %1052 = vmatprep.subr.bf16.mxu0 0
  %1053 = vmatpush1.bf16.msra.mxu0 0
  %1054 = vmatprep.subr.bf16.mxu0 0
  %1055 = vmatpush1.bf16.msra.mxu0 0
  %1056 = vmatprep.mubr.bf16.mxu0 0
  %1057 = vmatmul.mubr.bf16.gmra.mrb[0].mxu0 %v1023
  %v1058 = vpop.f32.mrb[0].mxu0
  %v1059 = vadd.f32 0.0, %v1058
  %v1060 = vpop.f32.mrb[0].mxu0
  %v1061 = vadd.f32 0.0, %v1060
  %v1062 = vpop.f32.mrb[0].mxu0
  %v1063 = vadd.f32 0.0, %v1062
  %v1064 = vpop.f32.mrb[0].mxu0
  %v1065 = vadd.f32 0.0, %v1064
  %1066 = vdwg.mxu0
  %1067 = vmatprep.subr.bf16.mxu0 %v169
  %1068 = vmatpush1.bf16.msra.mxu0 %v168
  %1069 = vmatprep.subr.bf16.mxu0 %v173
  %1070 = vmatpush1.bf16.msra.mxu0 %v172
  %1071 = vmatprep.subr.bf16.mxu0 %v177
  %1072 = vmatpush1.bf16.msra.mxu0 %v176
  %1073 = vmatprep.subr.bf16.mxu0 %v181
  %1074 = vmatpush1.bf16.msra.mxu0 %v180
  %1075 = vmatprep.subr.bf16.mxu0 %v185
  %1076 = vmatpush1.bf16.msra.mxu0 %v184
  %1077 = vmatprep.subr.bf16.mxu0 %v189
  %1078 = vmatpush1.bf16.msra.mxu0 %v188
  %1079 = vmatprep.subr.bf16.mxu0 %v193
  %1080 = vmatpush1.bf16.msra.mxu0 %v192
  %1081 = vmatprep.subr.bf16.mxu0 %v197
  %1082 = vmatpush1.bf16.msra.mxu0 %v196
  %1083 = vmatprep.subr.bf16.mxu0 0
  %1084 = vmatpush1.bf16.msra.mxu0 0
  %1085 = vmatprep.subr.bf16.mxu0 0
  %1086 = vmatpush1.bf16.msra.mxu0 0
  %1087 = vmatprep.subr.bf16.mxu0 0
  %1088 = vmatpush1.bf16.msra.mxu0 0
  %1089 = vmatprep.subr.bf16.mxu0 0
  %1090 = vmatpush1.bf16.msra.mxu0 0
  %1091 = vmatprep.subr.bf16.mxu0 0
  %1092 = vmatpush1.bf16.msra.mxu0 0
  %1093 = vmatprep.subr.bf16.mxu0 0
  %1094 = vmatpush1.bf16.msra.mxu0 0
  %1095 = vmatprep.subr.bf16.mxu0 0
  %1096 = vmatpush1.bf16.msra.mxu0 0
  %1097 = vmatprep.subr.bf16.mxu0 0
  %1098 = vmatpush1.bf16.msra.mxu0 0
  %1099 = vmatprep.mubr.bf16.mxu0 0
  %1100 = vmatmul.mubr.bf16.gmra.mrb[0].mxu0 %v1023
  %v1101 = vpop.f32.mrb[0].mxu0
  %v1102 = vadd.f32 0.0, %v1101
  %v1103 = vpop.f32.mrb[0].mxu0
  %v1104 = vadd.f32 0.0, %v1103
  %v1105 = vpop.f32.mrb[0].mxu0
  %v1106 = vadd.f32 0.0, %v1105
  %v1107 = vpop.f32.mrb[0].mxu0
  %v1108 = vadd.f32 0.0, %v1107
  %1109 = vdwg.mxu0
  %v1110 = vadd.f32 %v1015, %v1059
  %v1111 = vadd.f32 %v1016, %v1061
  %v1112 = vadd.f32 %v1017, %v1102
  %v1113 = vadd.f32 %v1018, %v1104
  %v1114 = vadd.f32 %v1019, %v1063
  %v1115 = vadd.f32 %v1020, %v1065
  %v1116 = vadd.f32 %v1021, %v1106
  %v1117 = vadd.f32 %v1022, %v1108
  %v1118 = vxor.u32 %v1110, 2147483648
  %v1119 = vxor.u32 %v1114, 2147483648
  %v1120 = vmul.f32 %v1118, 1.442695
  %v1121 = vpow.pop %v1120
  %v1122 = vmul.f32 %v1119, 1.442695
  %v1123 = vpow.pop %v1122
  %v1124 = vadd.f32 %v1121, 1.0
  %v1125 = vadd.f32 %v1123, 1.0
  %v1126 = vrcp.pop %v1124
  %v1127 = vmul.f32 1.0, %v1126
  %v1128 = vrcp.pop %v1125
  %v1129 = vmul.f32 1.0, %v1128
  %v1130 = vxor.u32 %v1111, 2147483648
  %v1131 = vxor.u32 %v1115, 2147483648
  %v1132 = vmul.f32 %v1130, 1.442695
  %v1133 = vpow.pop %v1132
  %v1134 = vmul.f32 %v1131, 1.442695
  %v1135 = vpow.pop %v1134
  %v1136 = vadd.f32 %v1133, 1.0
  %v1137 = vadd.f32 %v1135, 1.0
  %v1138 = vrcp.pop %v1136
  %v1139 = vmul.f32 1.0, %v1138
  %v1140 = vrcp.pop %v1137
  %v1141 = vmul.f32 1.0, %v1140
  %v1142 = vtanh.pop %v1112
  %v1143 = vtanh.pop %v1116
  %v1144 = vxor.u32 %v1113, 2147483648
  %v1145 = vxor.u32 %v1117, 2147483648
  %v1146 = vmul.f32 %v1144, 1.442695
  %v1147 = vpow.pop %v1146
  %v1148 = vmul.f32 %v1145, 1.442695
  %v1149 = vpow.pop %v1148
  %v1150 = vadd.f32 %v1147, 1.0
  %v1151 = vadd.f32 %v1149, 1.0
  %v1152 = vrcp.pop %v1150
  %v1153 = vmul.f32 1.0, %v1152
  %v1154 = vrcp.pop %v1151
  %v1155 = vmul.f32 1.0, %v1154
  %v1156 = vmul.f32 %v1139, %v1001
  %v1157 = vmul.f32 %v1141, %v1002
  %v1158 = vmul.f32 %v1127, %v1142
  %v1159 = vmul.f32 %v1129, %v1143
  %v1160 = vadd.f32 %v1156, %v1158
  %v1161 = vadd.f32 %v1157, %v1159
  %v1162 = vtanh.pop %v1160
  %v1163 = vtanh.pop %v1161
  %v1164 = vmul.f32 %v1153, %v1162
  %v1165 = vmul.f32 %v1155, %v1163
  %s1166 = scalar_lea.vmem %s4, 80
  %1167 = vst [vmem:[%s1166] sm:$0xff] %v1164
  %1168 = vst [vmem:[%s1166 + $0x8] sm:$0xff] %v1165
  %s1169 = scalar_lea.vmem %s0, 192
  %v1170 = vld [vmem:[%s1169] sm:$0xff]
  %v1171 = vld [vmem:[%s1169 + $0x8] sm:$0xff]
  %v1172 = vld [vmem:[%s1169 + $0x10] sm:$0xff]
  %v1173 = vld [vmem:[%s1169 + $0x18] sm:$0xff]
  %v1174 = vunpack.c.l.bf16 %v1170
  %v1175 = vunpack.c.h.bf16 %v1170
  %v1176 = vunpack.c.l.bf16 %v1171
  %v1177 = vunpack.c.h.bf16 %v1171
  %v1178 = vunpack.c.l.bf16 %v1172
  %v1179 = vunpack.c.h.bf16 %v1172
  %v1180 = vunpack.c.l.bf16 %v1173
  %v1181 = vunpack.c.h.bf16 %v1173
  %v1182 = vpack.c.bf16 %v1165, %v1164
  %1183 = vmatprep.subr.bf16.mxu0 %v167
  %1184 = vmatpush1.bf16.msra.mxu0 %v166
  %1185 = vmatprep.subr.bf16.mxu0 %v171
  %1186 = vmatpush1.bf16.msra.mxu0 %v170
  %1187 = vmatprep.subr.bf16.mxu0 %v175
  %1188 = vmatpush1.bf16.msra.mxu0 %v174
  %1189 = vmatprep.subr.bf16.mxu0 %v179
  %1190 = vmatpush1.bf16.msra.mxu0 %v178
  %1191 = vmatprep.subr.bf16.mxu0 %v183
  %1192 = vmatpush1.bf16.msra.mxu0 %v182
  %1193 = vmatprep.subr.bf16.mxu0 %v187
  %1194 = vmatpush1.bf16.msra.mxu0 %v186
  %1195 = vmatprep.subr.bf16.mxu0 %v191
  %1196 = vmatpush1.bf16.msra.mxu0 %v190
  %1197 = vmatprep.subr.bf16.mxu0 %v195
  %1198 = vmatpush1.bf16.msra.mxu0 %v194
  %1199 = vmatprep.subr.bf16.mxu0 0
  %1200 = vmatpush1.bf16.msra.mxu0 0
  %1201 = vmatprep.subr.bf16.mxu0 0
  %1202 = vmatpush1.bf16.msra.mxu0 0
  %1203 = vmatprep.subr.bf16.mxu0 0
  %1204 = vmatpush1.bf16.msra.mxu0 0
  %1205 = vmatprep.subr.bf16.mxu0 0
  %1206 = vmatpush1.bf16.msra.mxu0 0
  %1207 = vmatprep.subr.bf16.mxu0 0
  %1208 = vmatpush1.bf16.msra.mxu0 0
  %1209 = vmatprep.subr.bf16.mxu0 0
  %1210 = vmatpush1.bf16.msra.mxu0 0
  %1211 = vmatprep.subr.bf16.mxu0 0
  %1212 = vmatpush1.bf16.msra.mxu0 0
  %1213 = vmatprep.subr.bf16.mxu0 0
  %1214 = vmatpush1.bf16.msra.mxu0 0
  %1215 = vmatprep.mubr.bf16.mxu0 0
  %1216 = vmatmul.mubr.bf16.gmra.mrb[0].mxu0 %v1182
  %v1217 = vpop.f32.mrb[0].mxu0
  %v1218 = vadd.f32 0.0, %v1217
  %v1219 = vpop.f32.mrb[0].mxu0
  %v1220 = vadd.f32 0.0, %v1219
  %v1221 = vpop.f32.mrb[0].mxu0
  %v1222 = vadd.f32 0.0, %v1221
  %v1223 = vpop.f32.mrb[0].mxu0
  %v1224 = vadd.f32 0.0, %v1223
  %1225 = vdwg.mxu0
  %1226 = vmatprep.subr.bf16.mxu0 %v169
  %1227 = vmatpush1.bf16.msra.mxu0 %v168
  %1228 = vmatprep.subr.bf16.mxu0 %v173
  %1229 = vmatpush1.bf16.msra.mxu0 %v172
  %1230 = vmatprep.subr.bf16.mxu0 %v177
  %1231 = vmatpush1.bf16.msra.mxu0 %v176
  %1232 = vmatprep.subr.bf16.mxu0 %v181
  %1233 = vmatpush1.bf16.msra.mxu0 %v180
  %1234 = vmatprep.subr.bf16.mxu0 %v185
  %1235 = vmatpush1.bf16.msra.mxu0 %v184
  %1236 = vmatprep.subr.bf16.mxu0 %v189
  %1237 = vmatpush1.bf16.msra.mxu0 %v188
  %1238 = vmatprep.subr.bf16.mxu0 %v193
  %1239 = vmatpush1.bf16.msra.mxu0 %v192
  %1240 = vmatprep.subr.bf16.mxu0 %v197
  %1241 = vmatpush1.bf16.msra.mxu0 %v196
  %1242 = vmatprep.subr.bf16.mxu0 0
  %1243 = vmatpush1.bf16.msra.mxu0 0
  %1244 = vmatprep.subr.bf16.mxu0 0
  %1245 = vmatpush1.bf16.msra.mxu0 0
  %1246 = vmatprep.subr.bf16.mxu0 0
  %1247 = vmatpush1.bf16.msra.mxu0 0
  %1248 = vmatprep.subr.bf16.mxu0 0
  %1249 = vmatpush1.bf16.msra.mxu0 0
  %1250 = vmatprep.subr.bf16.mxu0 0
  %1251 = vmatpush1.bf16.msra.mxu0 0
  %1252 = vmatprep.subr.bf16.mxu0 0
  %1253 = vmatpush1.bf16.msra.mxu0 0
  %1254 = vmatprep.subr.bf16.mxu0 0
  %1255 = vmatpush1.bf16.msra.mxu0 0
  %1256 = vmatprep.subr.bf16.mxu0 0
  %1257 = vmatpush1.bf16.msra.mxu0 0
  %1258 = vmatprep.mubr.bf16.mxu0 0
  %1259 = vmatmul.mubr.bf16.gmra.mrb[0].mxu0 %v1182
  %v1260 = vpop.f32.mrb[0].mxu0
  %v1261 = vadd.f32 0.0, %v1260
  %v1262 = vpop.f32.mrb[0].mxu0
  %v1263 = vadd.f32 0.0, %v1262
  %v1264 = vpop.f32.mrb[0].mxu0
  %v1265 = vadd.f32 0.0, %v1264
  %v1266 = vpop.f32.mrb[0].mxu0
  %v1267 = vadd.f32 0.0, %v1266
  %1268 = vdwg.mxu0
  %v1269 = vadd.f32 %v1174, %v1218
  %v1270 = vadd.f32 %v1175, %v1220
  %v1271 = vadd.f32 %v1176, %v1261
  %v1272 = vadd.f32 %v1177, %v1263
  %v1273 = vadd.f32 %v1178, %v1222
  %v1274 = vadd.f32 %v1179, %v1224
  %v1275 = vadd.f32 %v1180, %v1265
  %v1276 = vadd.f32 %v1181, %v1267
  %v1277 = vxor.u32 %v1269, 2147483648
  %v1278 = vxor.u32 %v1273, 2147483648
  %v1279 = vmul.f32 %v1277, 1.442695
  %v1280 = vpow.pop %v1279
  %v1281 = vmul.f32 %v1278, 1.442695
  %v1282 = vpow.pop %v1281
  %v1283 = vadd.f32 %v1280, 1.0
  %v1284 = vadd.f32 %v1282, 1.0
  %v1285 = vrcp.pop %v1283
  %v1286 = vmul.f32 1.0, %v1285
  %v1287 = vrcp.pop %v1284
  %v1288 = vmul.f32 1.0, %v1287
  %v1289 = vxor.u32 %v1270, 2147483648
  %v1290 = vxor.u32 %v1274, 2147483648
  %v1291 = vmul.f32 %v1289, 1.442695
  %v1292 = vpow.pop %v1291
  %v1293 = vmul.f32 %v1290, 1.442695
  %v1294 = vpow.pop %v1293
  %v1295 = vadd.f32 %v1292, 1.0
  %v1296 = vadd.f32 %v1294, 1.0
  %v1297 = vrcp.pop %v1295
  %v1298 = vmul.f32 1.0, %v1297
  %v1299 = vrcp.pop %v1296
  %v1300 = vmul.f32 1.0, %v1299
  %v1301 = vtanh.pop %v1271
  %v1302 = vtanh.pop %v1275
  %v1303 = vxor.u32 %v1272, 2147483648
  %v1304 = vxor.u32 %v1276, 2147483648
  %v1305 = vmul.f32 %v1303, 1.442695
  %v1306 = vpow.pop %v1305
  %v1307 = vmul.f32 %v1304, 1.442695
  %v1308 = vpow.pop %v1307
  %v1309 = vadd.f32 %v1306, 1.0
  %v1310 = vadd.f32 %v1308, 1.0
  %v1311 = vrcp.pop %v1309
  %v1312 = vmul.f32 1.0, %v1311
  %v1313 = vrcp.pop %v1310
  %v1314 = vmul.f32 1.0, %v1313
  %v1315 = vmul.f32 %v1298, %v1160
  %v1316 = vmul.f32 %v1300, %v1161
  %v1317 = vmul.f32 %v1286, %v1301
  %v1318 = vmul.f32 %v1288, %v1302
  %v1319 = vadd.f32 %v1315, %v1317
  %v1320 = vadd.f32 %v1316, %v1318
  %v1321 = vtanh.pop %v1319
  %v1322 = vtanh.pop %v1320
  %v1323 = vmul.f32 %v1312, %v1321
  %v1324 = vmul.f32 %v1314, %v1322
  %s1325 = scalar_lea.vmem %s4, 96
  %1326 = vst [vmem:[%s1325] sm:$0xff] %v1323
  %1327 = vst [vmem:[%s1325 + $0x8] sm:$0xff] %v1324
  %s1328 = scalar_lea.vmem %s0, 224
  %v1329 = vld [vmem:[%s1328] sm:$0xff]
  %v1330 = vld [vmem:[%s1328 + $0x8] sm:$0xff]
  %v1331 = vld [vmem:[%s1328 + $0x10] sm:$0xff]
  %v1332 = vld [vmem:[%s1328 + $0x18] sm:$0xff]
  %v1333 = vunpack.c.l.bf16 %v1329
  %v1334 = vunpack.c.h.bf16 %v1329
  %v1335 = vunpack.c.l.bf16 %v1330
  %v1336 = vunpack.c.h.bf16 %v1330
  %v1337 = vunpack.c.l.bf16 %v1331
  %v1338 = vunpack.c.h.bf16 %v1331
  %v1339 = vunpack.c.l.bf16 %v1332
  %v1340 = vunpack.c.h.bf16 %v1332
  %v1341 = vpack.c.bf16 %v1324, %v1323
  %1342 = vmatprep.subr.bf16.mxu0 %v167
  %1343 = vmatpush1.bf16.msra.mxu0 %v166
  %1344 = vmatprep.subr.bf16.mxu0 %v171
  %1345 = vmatpush1.bf16.msra.mxu0 %v170
  %1346 = vmatprep.subr.bf16.mxu0 %v175
  %1347 = vmatpush1.bf16.msra.mxu0 %v174
  %1348 = vmatprep.subr.bf16.mxu0 %v179
  %1349 = vmatpush1.bf16.msra.mxu0 %v178
  %1350 = vmatprep.subr.bf16.mxu0 %v183
  %1351 = vmatpush1.bf16.msra.mxu0 %v182
  %1352 = vmatprep.subr.bf16.mxu0 %v187
  %1353 = vmatpush1.bf16.msra.mxu0 %v186
  %1354 = vmatprep.subr.bf16.mxu0 %v191
  %1355 = vmatpush1.bf16.msra.mxu0 %v190
  %1356 = vmatprep.subr.bf16.mxu0 %v195
  %1357 = vmatpush1.bf16.msra.mxu0 %v194
  %1358 = vmatprep.subr.bf16.mxu0 0
  %1359 = vmatpush1.bf16.msra.mxu0 0
  %1360 = vmatprep.subr.bf16.mxu0 0
  %1361 = vmatpush1.bf16.msra.mxu0 0
  %1362 = vmatprep.subr.bf16.mxu0 0
  %1363 = vmatpush1.bf16.msra.mxu0 0
  %1364 = vmatprep.subr.bf16.mxu0 0
  %1365 = vmatpush1.bf16.msra.mxu0 0
  %1366 = vmatprep.subr.bf16.mxu0 0
  %1367 = vmatpush1.bf16.msra.mxu0 0
  %1368 = vmatprep.subr.bf16.mxu0 0
  %1369 = vmatpush1.bf16.msra.mxu0 0
  %1370 = vmatprep.subr.bf16.mxu0 0
  %1371 = vmatpush1.bf16.msra.mxu0 0
  %1372 = vmatprep.subr.bf16.mxu0 0
  %1373 = vmatpush1.bf16.msra.mxu0 0
  %1374 = vmatprep.mubr.bf16.mxu0 0
  %1375 = vmatmul.mubr.bf16.gmra.mrb[0].mxu0 %v1341
  %v1376 = vpop.f32.mrb[0].mxu0
  %v1377 = vadd.f32 0.0, %v1376
  %v1378 = vpop.f32.mrb[0].mxu0
  %v1379 = vadd.f32 0.0, %v1378
  %v1380 = vpop.f32.mrb[0].mxu0
  %v1381 = vadd.f32 0.0, %v1380
  %v1382 = vpop.f32.mrb[0].mxu0
  %v1383 = vadd.f32 0.0, %v1382
  %1384 = vdwg.mxu0
  %1385 = vmatprep.subr.bf16.mxu0 %v169
  %1386 = vmatpush1.bf16.msra.mxu0 %v168
  %1387 = vmatprep.subr.bf16.mxu0 %v173
  %1388 = vmatpush1.bf16.msra.mxu0 %v172
  %1389 = vmatprep.subr.bf16.mxu0 %v177
  %1390 = vmatpush1.bf16.msra.mxu0 %v176
  %1391 = vmatprep.subr.bf16.mxu0 %v181
  %1392 = vmatpush1.bf16.msra.mxu0 %v180
  %1393 = vmatprep.subr.bf16.mxu0 %v185
  %1394 = vmatpush1.bf16.msra.mxu0 %v184
  %1395 = vmatprep.subr.bf16.mxu0 %v189
  %1396 = vmatpush1.bf16.msra.mxu0 %v188
  %1397 = vmatprep.subr.bf16.mxu0 %v193
  %1398 = vmatpush1.bf16.msra.mxu0 %v192
  %1399 = vmatprep.subr.bf16.mxu0 %v197
  %1400 = vmatpush1.bf16.msra.mxu0 %v196
  %1401 = vmatprep.subr.bf16.mxu0 0
  %1402 = vmatpush1.bf16.msra.mxu0 0
  %1403 = vmatprep.subr.bf16.mxu0 0
  %1404 = vmatpush1.bf16.msra.mxu0 0
  %1405 = vmatprep.subr.bf16.mxu0 0
  %1406 = vmatpush1.bf16.msra.mxu0 0
  %1407 = vmatprep.subr.bf16.mxu0 0
  %1408 = vmatpush1.bf16.msra.mxu0 0
  %1409 = vmatprep.subr.bf16.mxu0 0
  %1410 = vmatpush1.bf16.msra.mxu0 0
  %1411 = vmatprep.subr.bf16.mxu0 0
  %1412 = vmatpush1.bf16.msra.mxu0 0
  %1413 = vmatprep.subr.bf16.mxu0 0
  %1414 = vmatpush1.bf16.msra.mxu0 0
  %1415 = vmatprep.subr.bf16.mxu0 0
  %1416 = vmatpush1.bf16.msra.mxu0 0
  %1417 = vmatprep.mubr.bf16.mxu0 0
  %1418 = vmatmul.mubr.bf16.gmra.mrb[0].mxu0 %v1341
  %v1419 = vpop.f32.mrb[0].mxu0
  %v1420 = vadd.f32 0.0, %v1419
  %v1421 = vpop.f32.mrb[0].mxu0
  %v1422 = vadd.f32 0.0, %v1421
  %v1423 = vpop.f32.mrb[0].mxu0
  %v1424 = vadd.f32 0.0, %v1423
  %v1425 = vpop.f32.mrb[0].mxu0
  %v1426 = vadd.f32 0.0, %v1425
  %1427 = vdwg.mxu0
  %v1428 = vadd.f32 %v1333, %v1377
  %v1429 = vadd.f32 %v1334, %v1379
  %v1430 = vadd.f32 %v1335, %v1420
  %v1431 = vadd.f32 %v1336, %v1422
  %v1432 = vadd.f32 %v1337, %v1381
  %v1433 = vadd.f32 %v1338, %v1383
  %v1434 = vadd.f32 %v1339, %v1424
  %v1435 = vadd.f32 %v1340, %v1426
  %v1436 = vxor.u32 %v1428, 2147483648
  %v1437 = vxor.u32 %v1432, 2147483648
  %v1438 = vmul.f32 %v1436, 1.442695
  %v1439 = vpow.pop %v1438
  %v1440 = vmul.f32 %v1437, 1.442695
  %v1441 = vpow.pop %v1440
  %v1442 = vadd.f32 %v1439, 1.0
  %v1443 = vadd.f32 %v1441, 1.0
  %v1444 = vrcp.pop %v1442
  %v1445 = vmul.f32 1.0, %v1444
  %v1446 = vrcp.pop %v1443
  %v1447 = vmul.f32 1.0, %v1446
  %v1448 = vxor.u32 %v1429, 2147483648
  %v1449 = vxor.u32 %v1433, 2147483648
  %v1450 = vmul.f32 %v1448, 1.442695
  %v1451 = vpow.pop %v1450
  %v1452 = vmul.f32 %v1449, 1.442695
  %v1453 = vpow.pop %v1452
  %v1454 = vadd.f32 %v1451, 1.0
  %v1455 = vadd.f32 %v1453, 1.0
  %v1456 = vrcp.pop %v1454
  %v1457 = vmul.f32 1.0, %v1456
  %v1458 = vrcp.pop %v1455
  %v1459 = vmul.f32 1.0, %v1458
  %v1460 = vtanh.pop %v1430
  %v1461 = vtanh.pop %v1434
  %v1462 = vxor.u32 %v1431, 2147483648
  %v1463 = vxor.u32 %v1435, 2147483648
  %v1464 = vmul.f32 %v1462, 1.442695
  %v1465 = vpow.pop %v1464
  %v1466 = vmul.f32 %v1463, 1.442695
  %v1467 = vpow.pop %v1466
  %v1468 = vadd.f32 %v1465, 1.0
  %v1469 = vadd.f32 %v1467, 1.0
  %v1470 = vrcp.pop %v1468
  %v1471 = vmul.f32 1.0, %v1470
  %v1472 = vrcp.pop %v1469
  %v1473 = vmul.f32 1.0, %v1472
  %v1474 = vmul.f32 %v1457, %v1319
  %v1475 = vmul.f32 %v1459, %v1320
  %v1476 = vmul.f32 %v1445, %v1460
  %v1477 = vmul.f32 %v1447, %v1461
  %v1478 = vadd.f32 %v1474, %v1476
  %v1479 = vadd.f32 %v1475, %v1477
  %v1480 = vtanh.pop %v1478
  %v1481 = vtanh.pop %v1479
  %v1482 = vmul.f32 %v1471, %v1480
  %v1483 = vmul.f32 %v1473, %v1481
  %s1484 = scalar_lea.vmem %s4, 112
  %1485 = vst [vmem:[%s1484] sm:$0xff] %v1482
  %1486 = vst [vmem:[%s1484 + $0x8] sm:$0xff] %v1483
  %1487 = vst [vmem:[%s5] sm:$0xff] %v1482
  %1488 = vst [vmem:[%s5 + $0x8] sm:$0xff] %v1483
  %1489 = vst [vmem:[%s6] sm:$0xff] %v1478
  %1490 = vst [vmem:[%s6 + $0x8] sm:$0xff] %v1479
  // Predicated region
  $region18: #{_lambda_.6} parent=0 // pred_check
    _
  $region19: #{_lambda_.6} parent=0 // pred_check_branch
    %1492 = sbr.rel (0) target = $region21
  $region20: #{_lambda_.6} parent=0 // pred_region
    _
  $region21: #{_lambda_.6} parent=0 // pred_fallthru
    _
  // Predicated region
  $region22: #{_lambda_.6} parent=0 // pred_check
    _
  $region23: #{_lambda_.6} parent=0 // pred_check_branch
    %1494 = sbr.rel (0) target = $region25
  $region24: #{_lambda_.6} parent=0 // pred_region
    _
  $region25: #{_lambda_.6} parent=0 // pred_fallthru
    _
  // Predicated region
  $region26: #{_lambda_.6} parent=0 // pred_check
    _
  $region27: #{_lambda_.6} parent=0 // pred_check_branch
    %1496 = sbr.rel (0) target = $region29
  $region28: #{_lambda_.6} parent=0 // pred_region
    _
  $region29: #{_lambda_.6} parent=0 // pred_fallthru
    _
  // Predicated region
  $region30: #{_lambda_.6} parent=0 // pred_check
    _
  $region31: #{_lambda_.6} parent=0 // pred_check_branch
    %1498 = sbr.rel (0) target = $region33
  $region32: #{_lambda_.6} parent=0 // pred_region
    _
  $region33: #{_lambda_.6} parent=0 // pred_fallthru
    _
  // Predicated region
  $region34: #{_lambda_.6} parent=0 // pred_check
    _
  $region35: #{_lambda_.6} parent=0 // pred_check_branch
    %1500 = sbr.rel (0) target = $region37
  $region36: #{_lambda_.6} parent=0 // pred_region
    _
  $region37: #{_lambda_.6} parent=0 // pred_fallthru
    _
  // Predicated region
  $region38: #{_lambda_.6} parent=0 // pred_check
    _
  $region39: #{_lambda_.6} parent=0 // pred_check_branch
    %1502 = sbr.rel (0) target = $region41
  $region40: #{_lambda_.6} parent=0 // pred_region
    _
  $region41: #{_lambda_.6} parent=0 // pred_fallthru
    _

</llo_original>
